<compile_context>
chip_gen: v7x
topology: tpu7x:2x2x1
jax: 0.10.0
libtpu: 0.0.40
codegen_flags: <defaults>
</compile_context>

<pallas_src>
import math

import jax
import jax.numpy as jnp
from jax.experimental import pallas as pl
from jax.experimental.pallas import tpu as pltpu


# --------------------------------------------------------------------------
# helpers used inside the kernel
# --------------------------------------------------------------------------
def _erf(x):
    # Abramowitz & Stegun 7.1.26, |error| < 1.5e-7: matches PyTorch's exact
    # erf-GELU to f32 precision using only exp/abs/where.
    a1, a2, a3, a4, a5 = (0.254829592, -0.284496736, 1.421413741,
                          -1.453152027, 1.061405429)
    p = 0.3275911
    ax = jnp.abs(x)
    t = 1.0 / (1.0 + p * ax)
    poly = ((((a5 * t + a4) * t + a3) * t + a2) * t + a1) * t
    y = 1.0 - poly * jnp.exp(-ax * ax)
    return jnp.where(x >= 0.0, y, -y)


def _layer_norm(v, g, b):
    mu = jnp.mean(v, axis=-1, keepdims=True)
    var = jnp.mean(jnp.square(v - mu), axis=-1, keepdims=True)
    return (v - mu) * jax.lax.rsqrt(var + 1e-5) * g + b


# --------------------------------------------------------------------------
# fused ETA kernel factory (one grid step == one batch element)
# --------------------------------------------------------------------------
def make_eta_kernel(seq, emb, n_cat, chan_pairs):
    n_units = len(chan_pairs)
    inv_sqrt_dk = 1.0 / math.sqrt(emb)      # d_k = q.shape[-1] = emb
    inv_sqrt2 = 1.0 / math.sqrt(2.0)

    def kernel(*refs):
        (xc_ref, cat_ref, tv0g_ref, tv0b_ref, w1_ref, b1_ref, w2_ref, b2_ref,
         pe_ref, bnsc_ref, bnsh_ref, scm_ref, scp_ref) = refs[:13]
        unit_refs = refs[13:13 + 4 * n_units]
        (ff1w_ref, ff1b_ref, ff2w_ref, ff2b_ref, lng_ref, lnb_ref,
         fc0w_ref, fc0b_ref, fc2w_ref, fc2b_ref) = refs[13 + 4 * n_units:-1]
        o_ref = refs[-1]

        # ---- continuous-feature path: LN -> FC -> FC + residual ----------
        xc = xc_ref[0].astype(jnp.float32)                       # [seq, f]
        xn = _layer_norm(xc, tv0g_ref[...], tv0b_ref[...])
        y1 = jnp.dot(xn, w1_ref[...],
                     preferred_element_type=jnp.float32) + b1_ref[...]
        y2 = jnp.dot(y1, w2_ref[...],
                     preferred_element_type=jnp.float32) + b2_ref[...]
        dense_chan = y2 + y1                                      # [seq, emb]

        # ---- channel stack + positional encoding + BatchNorm2d (eval) ----
        pe = pe_ref[...]
        chans = [(cat_ref[0, c] + pe) * bnsc_ref[c] + bnsh_ref[c]
                 for c in range(n_cat)]
        chans.append((dense_chan + pe) * bnsc_ref[n_cat] + bnsh_ref[n_cat])

        # lane-shift matrices: (x @ scm)[:, e] = x[:, e-1]; (x @ scp)[:, e] = x[:, e+1]
        scm = scm_ref[...]
        scp = scp_ref[...]

        # ---- compressor: one MXU matmul per unit + per-channel attention --
        for u, (c_in, c_out) in enumerate(chan_pairs):
            wbig_ref, bbig_ref, usc_ref, ush_ref = unit_refs[4 * u:4 * u + 4]
            blocks = []
            for ci in range(c_in):
                xch = chans[ci]
                blocks.append(jnp.dot(xch, scm,
                                      preferred_element_type=jnp.float32))
                blocks.append(xch)
                blocks.append(jnp.dot(xch, scp,
                                      preferred_element_type=jnp.float32))
            a_mat = jnp.concatenate(blocks, axis=0)      # [c_in*3*seq, emb]
            # single MXU matmul -> q,k,v for every output channel
            qkv = jnp.dot(wbig_ref[...], a_mat,
                          preferred_element_type=jnp.float32) + bbig_ref[...]
            new_chans = []
            for co in range(c_out):
                q = qkv[co * seq:(co + 1) * seq]
                k = qkv[(c_out + co) * seq:(c_out + co + 1) * seq]
                v = qkv[(2 * c_out + co) * seq:(2 * c_out + co + 1) * seq]
                s = jax.lax.dot_general(
                    q, k, (((1,), (1,)), ((), ())),
                    preferred_element_type=jnp.float32) * inv_sqrt_dk
                s = s - jnp.max(s, axis=-1, keepdims=True)
                e = jnp.exp(s)
                attn = e / jnp.sum(e, axis=-1, keepdims=True)
                av = jnp.dot(attn, v, preferred_element_type=jnp.float32)
                res = av + q                  # dropout(av) + q, eval identity
                new_chans.append(res * usc_ref[co] + ush_ref[co])   # BN affine
            chans = new_chans

        # ---- head: FF(GELU) -> LayerNorm -> FCend0 -> relu -> FCend2 ------
        h0 = chans[0]                                             # [seq, hid]
        h = jnp.dot(h0, ff1w_ref[...],
                    preferred_element_type=jnp.float32) + ff1b_ref[...]
        h = 0.5 * h * (1.0 + _erf(h * inv_sqrt2))                 # exact GELU
        h = jnp.dot(h, ff2w_ref[...],
                    preferred_element_type=jnp.float32) + ff2b_ref[...]
        hn = _layer_norm(h, lng_ref[...], lnb_ref[...])
        h = jnp.dot(hn, fc0w_ref[...],
                    preferred_element_type=jnp.float32) + fc0b_ref[...]
        h = jnp.maximum(h, 0.0)
        o = jnp.dot(h, fc2w_ref[...],
                    preferred_element_type=jnp.float32) + fc2b_ref[...]
        o_ref[0] = o.astype(o_ref.dtype)        # lane-dense [seq, 128] store

    return kernel


# --------------------------------------------------------------------------
# ETA forward (glue + single fused kernel call)
# --------------------------------------------------------------------------
def eta_forward(params, config, x):
    b, seq, _ = x.shape
    emb = config['embedding_dim']
    hid = config['hidden_size']
    out_size = config['output_size']
    tvcc = config['tvcv_cols']
    tvlc = config['tvlv_cols']
    n_cat = len(tvcc)
    f = len(tvlc)
    out_pad = 128
    eps = 1e-5
    assert emb == hid and out_size <= out_pad

    # time-varying categorical embeddings (gather = plain-JAX glue)
    cat_chans = jnp.stack(
        [jnp.take(params['emb'][i], x[:, :, col].astype(jnp.int32), axis=0)
         for i, col in enumerate(tvcc)], axis=1)            # [B, n_cat, S, E]
    x_cont = x[:, :, jnp.array(tvlc)]                       # [B, S, f]

    # eval-mode BatchNorm2d folded to per-channel scale/shift
    # TODO(synk): training-mode BatchNorm (batch statistics) not implemented.
    bn_scale = params['bn_g'] / jnp.sqrt(params['bn_var'] + eps)
    bn_shift = params['bn_b'] - params['bn_mean'] * bn_scale
    pe_slice = params['pe'][:seq]                           # [S, E]

    # embedding-axis (dx) shift matrices used inside the kernel
    sc_m1 = jnp.eye(emb, k=1, dtype=jnp.float32)   # (x@sc_m1)[:,e] = x[:,e-1]
    sc_p1 = jnp.eye(emb, k=-1, dtype=jnp.float32)  # (x@sc_p1)[:,e] = x[:,e+1]
    # seq-axis (dy) shift matrices folded into the conv weights on the host
    s_row = [jnp.eye(seq, k=-1, dtype=jnp.float32),
             jnp.eye(seq, dtype=jnp.float32),
             jnp.eye(seq, k=1, dtype=jnp.float32)]

    smem_spec = pl.BlockSpec(memory_space=pltpu.MemorySpace.SMEM)

    def _const_spec(arr):
        nd = arr.ndim
        return pl.BlockSpec(arr.shape, lambda i, _n=nd: (0,) * _n)

    args, specs = [], []

    def _add(arr, spec=None):
        args.append(arr)
        specs.append(_const_spec(arr) if spec is None else spec)

    _add(x_cont, pl.BlockSpec((1, seq, f), lambda i: (i, 0, 0)))
    _add(cat_chans, pl.BlockSpec((1, n_cat, seq, emb), lambda i: (i, 0, 0, 0)))
    _add(params['tvll0_g'].reshape(1, f))
    _add(params['tvll0_b'].reshape(1, f))
    _add(params['tvll1_w']); _add(params['tvll1_b'].reshape(1, emb))
    _add(params['tvll2_w']); _add(params['tvll2_b'].reshape(1, emb))
    _add(pe_slice)
    _add(bn_scale, smem_spec); _add(bn_shift, smem_spec)
    _add(sc_m1); _add(sc_p1)

    # conv q/k/v weights: dy taps folded via sum_dy kron(W_dy, S_row(dy))
    chan_pairs = []
    for up in params['compressor']:
        c_out, c_in = int(up['wq'].shape[0]), int(up['wq'].shape[1])
        chan_pairs.append((c_in, c_out))
        w_all = jnp.concatenate([up['wq'], up['wk'], up['wv']], axis=0)
        w_big = sum(
            jnp.kron(w_all[:, :, dy, :].reshape(3 * c_out, c_in * 3),
                     s_row[dy])
            for dy in range(3))                 # [3*c_out*S, c_in*3*S]
        b_big = jnp.repeat(
            jnp.concatenate([up['bq'], up['bk'], up['bv']]), seq)[:, None]
        u_sc = up['bn_gamma'] / jnp.sqrt(up['bn_var'] + eps)
        u_sh = up['bn_beta'] - up['bn_mean'] * u_sc
        _add(w_big); _add(b_big); _add(u_sc, smem_spec); _add(u_sh, smem_spec)

    # lane-dense head output: pad FCend2 to 128 output lanes
    fc2w_pad = jnp.zeros((hid, out_pad), jnp.float32).at[:, :out_size].set(
        params['fcend2_w'])
    fc2b_pad = jnp.zeros((1, out_pad), jnp.float32).at[:, :out_size].set(
        params['fcend2_b'].reshape(1, out_size))

    _add(params['ff1_w']); _add(params['ff1_b'].reshape(1, hid))
    _add(params['ff2_w']); _add(params['ff2_b'].reshape(1, hid))
    _add(params['lnmha_g'].reshape(1, hid))
    _add(params['lnmha_b'].reshape(1, hid))
    _add(params['fcend0_w']); _add(params['fcend0_b'].reshape(1, hid))
    _add(fc2w_pad); _add(fc2b_pad)

    kernel = make_eta_kernel(seq, emb, n_cat, chan_pairs)
    out = pl.pallas_call(
        kernel,
        out_shape=jax.ShapeDtypeStruct((b, seq, out_pad), jnp.float32),
        grid=(b,),
        in_specs=specs,
        out_specs=pl.BlockSpec((1, seq, out_pad), lambda i: (i, 0, 0)),
        compiler_params=pltpu.CompilerParams(
            dimension_semantics=("parallel",)),
    )(*args)
    return out[:, :, :out_size]


# --------------------------------------------------------------------------
# deterministic parameter construction
# --------------------------------------------------------------------------
def make_positional_encoding(d_model, max_len=240):
    position = jnp.arange(max_len, dtype=jnp.float32)[:, None]
    div_term = jnp.exp(jnp.arange(0, d_model, 2, dtype=jnp.float32)
                       * (-math.log(10000.0) / d_model))
    s = jnp.sin(position * div_term)
    c = jnp.cos(position * div_term)
    return jnp.stack([s, c], axis=-1).reshape(max_len, d_model)


def init_params(key, config):
    emb_dim = config['embedding_dim']
    hid = config['hidden_size']
    out_size = config['output_size']
    tvcc = config['tvcv_cols']
    f = config['input_size'] - len(tvcc)
    c = len(tvcc) + 1
    num_layer = config['num_layer']
    assert c > 2 * num_layer, 'Input channel must be greater than 2*num_layer'
    assert emb_dim == hid, 'forward requires embedding_dim == hidden_size'

    keys = iter(jax.random.split(key, 256))

    def nrm(shape, scale=0.1):
        return scale * jax.random.normal(next(keys), shape, jnp.float32)

    p = {}
    p['emb'] = [nrm((v, emb_dim), 0.5) for v in config['tv_emb_size']]
    p['tvll0_g'] = 1.0 + nrm((f,))
    p['tvll0_b'] = nrm((f,))
    p['tvll1_w'] = nrm((f, emb_dim), 0.3)
    p['tvll1_b'] = nrm((emb_dim,))
    p['tvll2_w'] = nrm((emb_dim, emb_dim), 0.15)
    p['tvll2_b'] = nrm((emb_dim,))
    p['pe'] = make_positional_encoding(hid, 240)
    p['bn_g'] = 1.0 + nrm((c,))
    p['bn_b'] = nrm((c,))
    p['bn_mean'] = nrm((c,))
    p['bn_var'] = 0.5 + jnp.abs(nrm((c,), 0.5))

    chan_pairs = [(c - 2 * i, c - 2 * (i + 1)) for i in range(num_layer)]
    chan_pairs.append((c - 2 * num_layer, 1))          # lastconv -> 1 channel
    units = []
    for (cin, cout) in chan_pairs:
        units.append(dict(
            wq=nrm((cout, cin, 3, 3), 0.2), bq=nrm((cout,)),
            wk=nrm((cout, cin, 3, 3), 0.2), bk=nrm((cout,)),
            wv=nrm((cout, cin, 3, 3), 0.2), bv=nrm((cout,)),
            bn_gamma=1.0 + nrm((cout,)), bn_beta=nrm((cout,)),
            bn_mean=nrm((cout,)), bn_var=0.5 + jnp.abs(nrm((cout,), 0.5)),
        ))
    p['compressor'] = units

    p['ff1_w'] = nrm((hid, hid), 0.15); p['ff1_b'] = nrm((hid,))
    p['ff2_w'] = nrm((hid, hid), 0.15); p['ff2_b'] = nrm((hid,))
    p['lnmha_g'] = 1.0 + nrm((hid,));   p['lnmha_b'] = nrm((hid,))
    p['fcend0_w'] = nrm((hid, hid), 0.15); p['fcend0_b'] = nrm((hid,))
    p['fcend2_w'] = nrm((hid, out_size), 0.15); p['fcend2_b'] = nrm((out_size,))
    return p


if __name__ == "__main__":
    config = {
        'input_size': 9,
        'hidden_size': 32,       # forward-path constraint: == embedding_dim
        'embedding_dim': 32,
        'num_layer': 1,
        'tvcv_cols': [0, 1, 2],
        'tvlv_cols': [3, 4, 5, 6, 7, 8],
        'tv_emb_size': [5, 7, 9],
        'output_size': 4,
        'sos': 0,
        'eos': 1,
    }
    batch, seq = 2, 8

    root = jax.random.PRNGKey(0)
    k_par, k_cat, k_cont = jax.random.split(root, 3)
    params = init_params(k_par, config)

    # build input: categorical columns hold integer codes, rest is continuous
    cat_cols = []
    cat_keys = jax.random.split(k_cat, len(config['tv_emb_size']))
    for kk, vocab in zip(cat_keys, config['tv_emb_size']):
        cat_cols.append(
            jax.random.randint(kk, (batch, seq, 1), 0, vocab).astype(jnp.float32))
    cont = jax.random.normal(
        k_cont, (batch, seq, len(config['tvlv_cols'])), jnp.float32)
    x = jnp.concatenate(cat_cols + [cont], axis=-1)     # [B, S, input_size]

    out = eta_forward(params, config, x)
    out = jax.block_until_ready(out)
    assert out.shape == (batch, seq, config['output_size'])
    assert bool(jnp.all(jnp.isfinite(out)))
    print("KERNEL_OK")
</pallas_src>

<mosaic_0001>
module attributes {stable_mosaic.version = 11 : i64} {
  func.func @kernel(%arg0: i32, %arg1: memref<1x8x6xf32, #tpu.memory_space<vmem>>, %arg2: memref<1x3x8x32xf32, #tpu.memory_space<vmem>>, %arg3: memref<1x6xf32, #tpu.memory_space<vmem>>, %arg4: memref<1x6xf32, #tpu.memory_space<vmem>>, %arg5: memref<6x32xf32, #tpu.memory_space<vmem>>, %arg6: memref<1x32xf32, #tpu.memory_space<vmem>>, %arg7: memref<32x32xf32, #tpu.memory_space<vmem>>, %arg8: memref<1x32xf32, #tpu.memory_space<vmem>>, %arg9: memref<8x32xf32, #tpu.memory_space<vmem>>, %arg10: memref<4xf32, #tpu.memory_space<smem>>, %arg11: memref<4xf32, #tpu.memory_space<smem>>, %arg12: memref<32x32xf32, #tpu.memory_space<vmem>>, %arg13: memref<32x32xf32, #tpu.memory_space<vmem>>, %arg14: memref<48x96xf32, #tpu.memory_space<vmem>>, %arg15: memref<48x1xf32, #tpu.memory_space<vmem>>, %arg16: memref<2xf32, #tpu.memory_space<smem>>, %arg17: memref<2xf32, #tpu.memory_space<smem>>, %arg18: memref<24x48xf32, #tpu.memory_space<vmem>>, %arg19: memref<24x1xf32, #tpu.memory_space<vmem>>, %arg20: memref<1xf32, #tpu.memory_space<smem>>, %arg21: memref<1xf32, #tpu.memory_space<smem>>, %arg22: memref<32x32xf32, #tpu.memory_space<vmem>>, %arg23: memref<1x32xf32, #tpu.memory_space<vmem>>, %arg24: memref<32x32xf32, #tpu.memory_space<vmem>>, %arg25: memref<1x32xf32, #tpu.memory_space<vmem>>, %arg26: memref<1x32xf32, #tpu.memory_space<vmem>>, %arg27: memref<1x32xf32, #tpu.memory_space<vmem>>, %arg28: memref<32x32xf32, #tpu.memory_space<vmem>>, %arg29: memref<1x32xf32, #tpu.memory_space<vmem>>, %arg30: memref<32x128xf32, #tpu.memory_space<vmem>>, %arg31: memref<1x128xf32, #tpu.memory_space<vmem>>, %arg32: memref<1x8x128xf32, #tpu.memory_space<vmem>>) attributes {dimension_semantics = [#tpu.dimension_semantics<parallel>], iteration_bounds = array<i64: 2>, scalar_prefetch = 0 : i64, scratch_operands = 0 : i64, tpu.core_type = #tpu.core_type<tc>, window_params = [{transform_indices = @transform_0, window_bounds = array<i64: 1, 8, 6>}, {transform_indices = @transform_1, window_bounds = array<i64: 1, 3, 8, 32>}, {pipeline_mode = #tpu.pipeline_mode<synchronous>, transform_indices = @transform_2, window_bounds = array<i64: 1, 6>}, {pipeline_mode = #tpu.pipeline_mode<synchronous>, transform_indices = @transform_3, window_bounds = array<i64: 1, 6>}, {pipeline_mode = #tpu.pipeline_mode<synchronous>, transform_indices = @transform_4, window_bounds = array<i64: 6, 32>}, {pipeline_mode = #tpu.pipeline_mode<synchronous>, transform_indices = @transform_5, window_bounds = array<i64: 1, 32>}, {pipeline_mode = #tpu.pipeline_mode<synchronous>, transform_indices = @transform_6, window_bounds = array<i64: 32, 32>}, {pipeline_mode = #tpu.pipeline_mode<synchronous>, transform_indices = @transform_7, window_bounds = array<i64: 1, 32>}, {pipeline_mode = #tpu.pipeline_mode<synchronous>, transform_indices = @transform_8, window_bounds = array<i64: 8, 32>}, {transform_indices = @transform_9, window_bounds = array<i64: 4>}, {transform_indices = @transform_10, window_bounds = array<i64: 4>}, {pipeline_mode = #tpu.pipeline_mode<synchronous>, transform_indices = @transform_11, window_bounds = array<i64: 32, 32>}, {pipeline_mode = #tpu.pipeline_mode<synchronous>, transform_indices = @transform_12, window_bounds = array<i64: 32, 32>}, {pipeline_mode = #tpu.pipeline_mode<synchronous>, transform_indices = @transform_13, window_bounds = array<i64: 48, 96>}, {pipeline_mode = #tpu.pipeline_mode<synchronous>, transform_indices = @transform_14, window_bounds = array<i64: 48, 1>}, {transform_indices = @transform_15, window_bounds = array<i64: 2>}, {transform_indices = @transform_16, window_bounds = array<i64: 2>}, {pipeline_mode = #tpu.pipeline_mode<synchronous>, transform_indices = @transform_17, window_bounds = array<i64: 24, 48>}, {pipeline_mode = #tpu.pipeline_mode<synchronous>, transform_indices = @transform_18, window_bounds = array<i64: 24, 1>}, {transform_indices = @transform_19, window_bounds = array<i64: 1>}, {transform_indices = @transform_20, window_bounds = array<i64: 1>}, {pipeline_mode = #tpu.pipeline_mode<synchronous>, transform_indices = @transform_21, window_bounds = array<i64: 32, 32>}, {pipeline_mode = #tpu.pipeline_mode<synchronous>, transform_indices = @transform_22, window_bounds = array<i64: 1, 32>}, {pipeline_mode = #tpu.pipeline_mode<synchronous>, transform_indices = @transform_23, window_bounds = array<i64: 32, 32>}, {pipeline_mode = #tpu.pipeline_mode<synchronous>, transform_indices = @transform_24, window_bounds = array<i64: 1, 32>}, {pipeline_mode = #tpu.pipeline_mode<synchronous>, transform_indices = @transform_25, window_bounds = array<i64: 1, 32>}, {pipeline_mode = #tpu.pipeline_mode<synchronous>, transform_indices = @transform_26, window_bounds = array<i64: 1, 32>}, {pipeline_mode = #tpu.pipeline_mode<synchronous>, transform_indices = @transform_27, window_bounds = array<i64: 32, 32>}, {pipeline_mode = #tpu.pipeline_mode<synchronous>, transform_indices = @transform_28, window_bounds = array<i64: 1, 32>}, {pipeline_mode = #tpu.pipeline_mode<synchronous>, transform_indices = @transform_29, window_bounds = array<i64: 32, 128>}, {pipeline_mode = #tpu.pipeline_mode<synchronous>, transform_indices = @transform_30, window_bounds = array<i64: 1, 128>}, {transform_indices = @transform_31, window_bounds = array<i64: 1, 8, 128>}]} {
    %c0 = arith.constant 0 : index
    %c0_0 = arith.constant 0 : index
    %c0_1 = arith.constant 0 : index
    %0 = vector.load %arg1[%c0, %c0_0, %c0_1] : memref<1x8x6xf32, #tpu.memory_space<vmem>>, vector<1x8x6xf32>
    %1 = vector.shape_cast %0 : vector<1x8x6xf32> to vector<8x6xf32>
    %c0_2 = arith.constant 0 : index
    %c0_3 = arith.constant 0 : index
    %2 = vector.load %arg3[%c0_2, %c0_3] : memref<1x6xf32, #tpu.memory_space<vmem>>, vector<1x6xf32>
    %c0_4 = arith.constant 0 : index
    %c0_5 = arith.constant 0 : index
    %3 = vector.load %arg4[%c0_4, %c0_5] : memref<1x6xf32, #tpu.memory_space<vmem>>, vector<1x6xf32>
    %cst = arith.constant dense<0.000000e+00> : vector<8xf32>
    %4 = vector.multi_reduction <add>, %1, %cst [1] : vector<8x6xf32> to vector<8xf32>
    %5 = vector.shape_cast %4 : vector<8xf32> to vector<8x1xf32>
    %cst_6 = arith.constant 6.000000e+00 : f32
    %6 = vector.broadcast %cst_6 : f32 to vector<8x1xf32>
    %7 = arith.divf %5, %6 : vector<8x1xf32>
    %8 = vector.broadcast %7 : vector<8x1xf32> to vector<8x6xf32>
    %9 = arith.subf %1, %8 : vector<8x6xf32>
    %10 = arith.mulf %9, %9 : vector<8x6xf32>
    %cst_7 = arith.constant dense<0.000000e+00> : vector<8xf32>
    %11 = vector.multi_reduction <add>, %10, %cst_7 [1] : vector<8x6xf32> to vector<8xf32>
    %12 = vector.shape_cast %11 : vector<8xf32> to vector<8x1xf32>
    %cst_8 = arith.constant 6.000000e+00 : f32
    %13 = vector.broadcast %cst_8 : f32 to vector<8x1xf32>
    %14 = arith.divf %12, %13 : vector<8x1xf32>
    %15 = vector.broadcast %7 : vector<8x1xf32> to vector<8x6xf32>
    %16 = arith.subf %1, %15 : vector<8x6xf32>
    %cst_9 = arith.constant 9.99999974E-6 : f32
    %17 = vector.broadcast %cst_9 : f32 to vector<8x1xf32>
    %18 = arith.addf %14, %17 : vector<8x1xf32>
    %19 = math.rsqrt %18 : vector<8x1xf32>
    %20 = vector.broadcast %19 : vector<8x1xf32> to vector<8x6xf32>
    %21 = arith.mulf %16, %20 : vector<8x6xf32>
    %22 = vector.broadcast %2 : vector<1x6xf32> to vector<8x6xf32>
    %23 = arith.mulf %21, %22 : vector<8x6xf32>
    %24 = vector.broadcast %3 : vector<1x6xf32> to vector<8x6xf32>
    %25 = arith.addf %23, %24 : vector<8x6xf32>
    %c0_10 = arith.constant 0 : index
    %c0_11 = arith.constant 0 : index
    %26 = vector.load %arg5[%c0_10, %c0_11] : memref<6x32xf32, #tpu.memory_space<vmem>>, vector<6x32xf32>
    %cst_12 = arith.constant dense<0.000000e+00> : vector<8x32xf32>
    %27 = tpu.matmul %25, %26, %cst_12 {dimension_numbers = #tpu.dot_dimension_numbers<[1], [0], [0], [1], [0, 0, 1, 1], [], []>} : vector<8x6xf32>, vector<6x32xf32>, vector<8x32xf32> -> vector<8x32xf32>
    %c0_13 = arith.constant 0 : index
    %c0_14 = arith.constant 0 : index
    %28 = vector.load %arg6[%c0_13, %c0_14] : memref<1x32xf32, #tpu.memory_space<vmem>>, vector<1x32xf32>
    %29 = vector.broadcast %28 : vector<1x32xf32> to vector<8x32xf32>
    %30 = arith.addf %27, %29 : vector<8x32xf32>
    %c0_15 = arith.constant 0 : index
    %c0_16 = arith.constant 0 : index
    %31 = vector.load %arg7[%c0_15, %c0_16] : memref<32x32xf32, #tpu.memory_space<vmem>>, vector<32x32xf32>
    %cst_17 = arith.constant dense<0.000000e+00> : vector<8x32xf32>
    %32 = tpu.matmul %30, %31, %cst_17 {dimension_numbers = #tpu.dot_dimension_numbers<[1], [0], [0], [1], [0, 0, 1, 1], [], []>} : vector<8x32xf32>, vector<32x32xf32>, vector<8x32xf32> -> vector<8x32xf32>
    %c0_18 = arith.constant 0 : index
    %c0_19 = arith.constant 0 : index
    %33 = vector.load %arg8[%c0_18, %c0_19] : memref<1x32xf32, #tpu.memory_space<vmem>>, vector<1x32xf32>
    %34 = vector.broadcast %33 : vector<1x32xf32> to vector<8x32xf32>
    %35 = arith.addf %32, %34 : vector<8x32xf32>
    %36 = arith.addf %35, %30 : vector<8x32xf32>
    %c0_20 = arith.constant 0 : index
    %c0_21 = arith.constant 0 : index
    %37 = vector.load %arg9[%c0_20, %c0_21] : memref<8x32xf32, #tpu.memory_space<vmem>>, vector<8x32xf32>
    %c0_22 = arith.constant 0 : index
    %c0_23 = arith.constant 0 : index
    %c0_24 = arith.constant 0 : index
    %c0_25 = arith.constant 0 : index
    %38 = vector.load %arg2[%c0_22, %c0_23, %c0_24, %c0_25] : memref<1x3x8x32xf32, #tpu.memory_space<vmem>>, vector<1x1x8x32xf32>
    %39 = vector.shape_cast %38 : vector<1x1x8x32xf32> to vector<8x32xf32>
    %40 = arith.addf %39, %37 : vector<8x32xf32>
    %c0_26 = arith.constant 0 : index
    %41 = memref.load %arg10[%c0_26] : memref<4xf32, #tpu.memory_space<smem>>
    %42 = vector.broadcast %41 : f32 to vector<8x32xf32>
    %43 = arith.mulf %40, %42 : vector<8x32xf32>
    %c0_27 = arith.constant 0 : index
    %44 = memref.load %arg11[%c0_27] : memref<4xf32, #tpu.memory_space<smem>>
    %45 = vector.broadcast %44 : f32 to vector<8x32xf32>
    %46 = arith.addf %43, %45 : vector<8x32xf32>
    %c0_28 = arith.constant 0 : index
    %c1 = arith.constant 1 : index
    %c0_29 = arith.constant 0 : index
    %c0_30 = arith.constant 0 : index
    %47 = vector.load %arg2[%c0_28, %c1, %c0_29, %c0_30] : memref<1x3x8x32xf32, #tpu.memory_space<vmem>>, vector<1x1x8x32xf32>
    %48 = vector.shape_cast %47 : vector<1x1x8x32xf32> to vector<8x32xf32>
    %49 = arith.addf %48, %37 : vector<8x32xf32>
    %c1_31 = arith.constant 1 : index
    %50 = memref.load %arg10[%c1_31] : memref<4xf32, #tpu.memory_space<smem>>
    %51 = vector.broadcast %50 : f32 to vector<8x32xf32>
    %52 = arith.mulf %49, %51 : vector<8x32xf32>
    %c1_32 = arith.constant 1 : index
    %53 = memref.load %arg11[%c1_32] : memref<4xf32, #tpu.memory_space<smem>>
    %54 = vector.broadcast %53 : f32 to vector<8x32xf32>
    %55 = arith.addf %52, %54 : vector<8x32xf32>
    %c0_33 = arith.constant 0 : index
    %c2 = arith.constant 2 : index
    %c0_34 = arith.constant 0 : index
    %c0_35 = arith.constant 0 : index
    %56 = vector.load %arg2[%c0_33, %c2, %c0_34, %c0_35] : memref<1x3x8x32xf32, #tpu.memory_space<vmem>>, vector<1x1x8x32xf32>
    %57 = vector.shape_cast %56 : vector<1x1x8x32xf32> to vector<8x32xf32>
    %58 = arith.addf %57, %37 : vector<8x32xf32>
    %c2_36 = arith.constant 2 : index
    %59 = memref.load %arg10[%c2_36] : memref<4xf32, #tpu.memory_space<smem>>
    %60 = vector.broadcast %59 : f32 to vector<8x32xf32>
    %61 = arith.mulf %58, %60 : vector<8x32xf32>
    %c2_37 = arith.constant 2 : index
    %62 = memref.load %arg11[%c2_37] : memref<4xf32, #tpu.memory_space<smem>>
    %63 = vector.broadcast %62 : f32 to vector<8x32xf32>
    %64 = arith.addf %61, %63 : vector<8x32xf32>
    %65 = arith.addf %36, %37 : vector<8x32xf32>
    %c3 = arith.constant 3 : index
    %66 = memref.load %arg10[%c3] : memref<4xf32, #tpu.memory_space<smem>>
    %67 = vector.broadcast %66 : f32 to vector<8x32xf32>
    %68 = arith.mulf %65, %67 : vector<8x32xf32>
    %c3_38 = arith.constant 3 : index
    %69 = memref.load %arg11[%c3_38] : memref<4xf32, #tpu.memory_space<smem>>
    %70 = vector.broadcast %69 : f32 to vector<8x32xf32>
    %71 = arith.addf %68, %70 : vector<8x32xf32>
    %c0_39 = arith.constant 0 : index
    %c0_40 = arith.constant 0 : index
    %72 = vector.load %arg12[%c0_39, %c0_40] : memref<32x32xf32, #tpu.memory_space<vmem>>, vector<32x32xf32>
    %c0_41 = arith.constant 0 : index
    %c0_42 = arith.constant 0 : index
    %73 = vector.load %arg13[%c0_41, %c0_42] : memref<32x32xf32, #tpu.memory_space<vmem>>, vector<32x32xf32>
    %cst_43 = arith.constant dense<0.000000e+00> : vector<8x32xf32>
    %74 = tpu.matmul %46, %72, %cst_43 {dimension_numbers = #tpu.dot_dimension_numbers<[1], [0], [0], [1], [0, 0, 1, 1], [], []>} : vector<8x32xf32>, vector<32x32xf32>, vector<8x32xf32> -> vector<8x32xf32>
    %cst_44 = arith.constant dense<0.000000e+00> : vector<8x32xf32>
    %75 = tpu.matmul %46, %73, %cst_44 {dimension_numbers = #tpu.dot_dimension_numbers<[1], [0], [0], [1], [0, 0, 1, 1], [], []>} : vector<8x32xf32>, vector<32x32xf32>, vector<8x32xf32> -> vector<8x32xf32>
    %cst_45 = arith.constant dense<0.000000e+00> : vector<8x32xf32>
    %76 = tpu.matmul %55, %72, %cst_45 {dimension_numbers = #tpu.dot_dimension_numbers<[1], [0], [0], [1], [0, 0, 1, 1], [], []>} : vector<8x32xf32>, vector<32x32xf32>, vector<8x32xf32> -> vector<8x32xf32>
    %cst_46 = arith.constant dense<0.000000e+00> : vector<8x32xf32>
    %77 = tpu.matmul %55, %73, %cst_46 {dimension_numbers = #tpu.dot_dimension_numbers<[1], [0], [0], [1], [0, 0, 1, 1], [], []>} : vector<8x32xf32>, vector<32x32xf32>, vector<8x32xf32> -> vector<8x32xf32>
    %cst_47 = arith.constant dense<0.000000e+00> : vector<8x32xf32>
    %78 = tpu.matmul %64, %72, %cst_47 {dimension_numbers = #tpu.dot_dimension_numbers<[1], [0], [0], [1], [0, 0, 1, 1], [], []>} : vector<8x32xf32>, vector<32x32xf32>, vector<8x32xf32> -> vector<8x32xf32>
    %cst_48 = arith.constant dense<0.000000e+00> : vector<8x32xf32>
    %79 = tpu.matmul %64, %73, %cst_48 {dimension_numbers = #tpu.dot_dimension_numbers<[1], [0], [0], [1], [0, 0, 1, 1], [], []>} : vector<8x32xf32>, vector<32x32xf32>, vector<8x32xf32> -> vector<8x32xf32>
    %cst_49 = arith.constant dense<0.000000e+00> : vector<8x32xf32>
    %80 = tpu.matmul %71, %72, %cst_49 {dimension_numbers = #tpu.dot_dimension_numbers<[1], [0], [0], [1], [0, 0, 1, 1], [], []>} : vector<8x32xf32>, vector<32x32xf32>, vector<8x32xf32> -> vector<8x32xf32>
    %cst_50 = arith.constant dense<0.000000e+00> : vector<8x32xf32>
    %81 = tpu.matmul %71, %73, %cst_50 {dimension_numbers = #tpu.dot_dimension_numbers<[1], [0], [0], [1], [0, 0, 1, 1], [], []>} : vector<8x32xf32>, vector<32x32xf32>, vector<8x32xf32> -> vector<8x32xf32>
    %82 = tpu.concatenate %74, %46, %75, %76, %55, %77, %78, %64, %79, %80, %71, %81 in 0 : vector<8x32xf32>, vector<8x32xf32>, vector<8x32xf32>, vector<8x32xf32>, vector<8x32xf32>, vector<8x32xf32>, vector<8x32xf32>, vector<8x32xf32>, vector<8x32xf32>, vector<8x32xf32>, vector<8x32xf32>, vector<8x32xf32> -> vector<96x32xf32>
    %c0_51 = arith.constant 0 : index
    %c0_52 = arith.constant 0 : index
    %83 = vector.load %arg14[%c0_51, %c0_52] : memref<48x96xf32, #tpu.memory_space<vmem>>, vector<48x96xf32>
    %cst_53 = arith.constant dense<0.000000e+00> : vector<48x32xf32>
    %84 = tpu.matmul %83, %82, %cst_53 {dimension_numbers = #tpu.dot_dimension_numbers<[1], [0], [0], [1], [0, 0, 1, 1], [], []>} : vector<48x96xf32>, vector<96x32xf32>, vector<48x32xf32> -> vector<48x32xf32>
    %c0_54 = arith.constant 0 : index
    %c0_55 = arith.constant 0 : index
    %85 = vector.load %arg15[%c0_54, %c0_55] : memref<48x1xf32, #tpu.memory_space<vmem>>, vector<48x1xf32>
    %86 = vector.broadcast %85 : vector<48x1xf32> to vector<48x32xf32>
    %87 = arith.addf %84, %86 : vector<48x32xf32>
    %88 = vector.extract_strided_slice %87 {offsets = [0, 0], sizes = [8, 32], strides = [1, 1]} : vector<48x32xf32> to vector<8x32xf32>
    %89 = vector.extract_strided_slice %87 {offsets = [16, 0], sizes = [8, 32], strides = [1, 1]} : vector<48x32xf32> to vector<8x32xf32>
    %90 = vector.extract_strided_slice %87 {offsets = [32, 0], sizes = [8, 32], strides = [1, 1]} : vector<48x32xf32> to vector<8x32xf32>
    %cst_56 = arith.constant dense<0.000000e+00> : vector<8x8xf32>
    %91 = tpu.matmul %88, %89, %cst_56 {dimension_numbers = #tpu.dot_dimension_numbers<[1], [1], [0], [0], [0, 0, 1, 0], [], []>} : vector<8x32xf32>, vector<8x32xf32>, vector<8x8xf32> -> vector<8x8xf32>
    %cst_57 = arith.constant 0.176776692 : f32
    %92 = vector.broadcast %cst_57 : f32 to vector<8x8xf32>
    %93 = arith.mulf %91, %92 : vector<8x8xf32>
    %cst_58 = arith.constant dense<0xFF800000> : vector<8xf32>
    %94 = vector.multi_reduction <maximumf>, %93, %cst_58 [1] : vector<8x8xf32> to vector<8xf32>
    %95 = vector.shape_cast %94 : vector<8xf32> to vector<8x1xf32>
    %96 = vector.broadcast %95 : vector<8x1xf32> to vector<8x8xf32>
    %97 = arith.subf %93, %96 : vector<8x8xf32>
    %98 = math.exp %97 : vector<8x8xf32>
    %cst_59 = arith.constant dense<0.000000e+00> : vector<8xf32>
    %99 = vector.multi_reduction <add>, %98, %cst_59 [1] : vector<8x8xf32> to vector<8xf32>
    %100 = vector.shape_cast %99 : vector<8xf32> to vector<8x1xf32>
    %101 = vector.broadcast %100 : vector<8x1xf32> to vector<8x8xf32>
    %102 = arith.divf %98, %101 : vector<8x8xf32>
    %cst_60 = arith.constant dense<0.000000e+00> : vector<8x32xf32>
    %103 = tpu.matmul %102, %90, %cst_60 {dimension_numbers = #tpu.dot_dimension_numbers<[1], [0], [0], [1], [0, 0, 1, 1], [], []>} : vector<8x8xf32>, vector<8x32xf32>, vector<8x32xf32> -> vector<8x32xf32>
    %104 = arith.addf %103, %88 : vector<8x32xf32>
    %c0_61 = arith.constant 0 : index
    %105 = memref.load %arg16[%c0_61] : memref<2xf32, #tpu.memory_space<smem>>
    %106 = vector.broadcast %105 : f32 to vector<8x32xf32>
    %107 = arith.mulf %104, %106 : vector<8x32xf32>
    %c0_62 = arith.constant 0 : index
    %108 = memref.load %arg17[%c0_62] : memref<2xf32, #tpu.memory_space<smem>>
    %109 = vector.broadcast %108 : f32 to vector<8x32xf32>
    %110 = arith.addf %107, %109 : vector<8x32xf32>
    %111 = vector.extract_strided_slice %87 {offsets = [8, 0], sizes = [8, 32], strides = [1, 1]} : vector<48x32xf32> to vector<8x32xf32>
    %112 = vector.extract_strided_slice %87 {offsets = [24, 0], sizes = [8, 32], strides = [1, 1]} : vector<48x32xf32> to vector<8x32xf32>
    %113 = vector.extract_strided_slice %87 {offsets = [40, 0], sizes = [8, 32], strides = [1, 1]} : vector<48x32xf32> to vector<8x32xf32>
    %cst_63 = arith.constant dense<0.000000e+00> : vector<8x8xf32>
    %114 = tpu.matmul %111, %112, %cst_63 {dimension_numbers = #tpu.dot_dimension_numbers<[1], [1], [0], [0], [0, 0, 1, 0], [], []>} : vector<8x32xf32>, vector<8x32xf32>, vector<8x8xf32> -> vector<8x8xf32>
    %cst_64 = arith.constant 0.176776692 : f32
    %115 = vector.broadcast %cst_64 : f32 to vector<8x8xf32>
    %116 = arith.mulf %114, %115 : vector<8x8xf32>
    %cst_65 = arith.constant dense<0xFF800000> : vector<8xf32>
    %117 = vector.multi_reduction <maximumf>, %116, %cst_65 [1] : vector<8x8xf32> to vector<8xf32>
    %118 = vector.shape_cast %117 : vector<8xf32> to vector<8x1xf32>
    %119 = vector.broadcast %118 : vector<8x1xf32> to vector<8x8xf32>
    %120 = arith.subf %116, %119 : vector<8x8xf32>
    %121 = math.exp %120 : vector<8x8xf32>
    %cst_66 = arith.constant dense<0.000000e+00> : vector<8xf32>
    %122 = vector.multi_reduction <add>, %121, %cst_66 [1] : vector<8x8xf32> to vector<8xf32>
    %123 = vector.shape_cast %122 : vector<8xf32> to vector<8x1xf32>
    %124 = vector.broadcast %123 : vector<8x1xf32> to vector<8x8xf32>
    %125 = arith.divf %121, %124 : vector<8x8xf32>
    %cst_67 = arith.constant dense<0.000000e+00> : vector<8x32xf32>
    %126 = tpu.matmul %125, %113, %cst_67 {dimension_numbers = #tpu.dot_dimension_numbers<[1], [0], [0], [1], [0, 0, 1, 1], [], []>} : vector<8x8xf32>, vector<8x32xf32>, vector<8x32xf32> -> vector<8x32xf32>
    %127 = arith.addf %126, %111 : vector<8x32xf32>
    %c1_68 = arith.constant 1 : index
    %128 = memref.load %arg16[%c1_68] : memref<2xf32, #tpu.memory_space<smem>>
    %129 = vector.broadcast %128 : f32 to vector<8x32xf32>
    %130 = arith.mulf %127, %129 : vector<8x32xf32>
    %c1_69 = arith.constant 1 : index
    %131 = memref.load %arg17[%c1_69] : memref<2xf32, #tpu.memory_space<smem>>
    %132 = vector.broadcast %131 : f32 to vector<8x32xf32>
    %133 = arith.addf %130, %132 : vector<8x32xf32>
    %cst_70 = arith.constant dense<0.000000e+00> : vector<8x32xf32>
    %134 = tpu.matmul %110, %72, %cst_70 {dimension_numbers = #tpu.dot_dimension_numbers<[1], [0], [0], [1], [0, 0, 1, 1], [], []>} : vector<8x32xf32>, vector<32x32xf32>, vector<8x32xf32> -> vector<8x32xf32>
    %cst_71 = arith.constant dense<0.000000e+00> : vector<8x32xf32>
    %135 = tpu.matmul %110, %73, %cst_71 {dimension_numbers = #tpu.dot_dimension_numbers<[1], [0], [0], [1], [0, 0, 1, 1], [], []>} : vector<8x32xf32>, vector<32x32xf32>, vector<8x32xf32> -> vector<8x32xf32>
    %cst_72 = arith.constant dense<0.000000e+00> : vector<8x32xf32>
    %136 = tpu.matmul %133, %72, %cst_72 {dimension_numbers = #tpu.dot_dimension_numbers<[1], [0], [0], [1], [0, 0, 1, 1], [], []>} : vector<8x32xf32>, vector<32x32xf32>, vector<8x32xf32> -> vector<8x32xf32>
    %cst_73 = arith.constant dense<0.000000e+00> : vector<8x32xf32>
    %137 = tpu.matmul %133, %73, %cst_73 {dimension_numbers = #tpu.dot_dimension_numbers<[1], [0], [0], [1], [0, 0, 1, 1], [], []>} : vector<8x32xf32>, vector<32x32xf32>, vector<8x32xf32> -> vector<8x32xf32>
    %138 = tpu.concatenate %134, %110, %135, %136, %133, %137 in 0 : vector<8x32xf32>, vector<8x32xf32>, vector<8x32xf32>, vector<8x32xf32>, vector<8x32xf32>, vector<8x32xf32> -> vector<48x32xf32>
    %c0_74 = arith.constant 0 : index
    %c0_75 = arith.constant 0 : index
    %139 = vector.load %arg18[%c0_74, %c0_75] : memref<24x48xf32, #tpu.memory_space<vmem>>, vector<24x48xf32>
    %cst_76 = arith.constant dense<0.000000e+00> : vector<24x32xf32>
    %140 = tpu.matmul %139, %138, %cst_76 {dimension_numbers = #tpu.dot_dimension_numbers<[1], [0], [0], [1], [0, 0, 1, 1], [], []>} : vector<24x48xf32>, vector<48x32xf32>, vector<24x32xf32> -> vector<24x32xf32>
    %c0_77 = arith.constant 0 : index
    %c0_78 = arith.constant 0 : index
    %141 = vector.load %arg19[%c0_77, %c0_78] : memref<24x1xf32, #tpu.memory_space<vmem>>, vector<24x1xf32>
    %142 = vector.broadcast %141 : vector<24x1xf32> to vector<24x32xf32>
    %143 = arith.addf %140, %142 : vector<24x32xf32>
    %144 = vector.extract_strided_slice %143 {offsets = [0, 0], sizes = [8, 32], strides = [1, 1]} : vector<24x32xf32> to vector<8x32xf32>
    %145 = vector.extract_strided_slice %143 {offsets = [8, 0], sizes = [8, 32], strides = [1, 1]} : vector<24x32xf32> to vector<8x32xf32>
    %146 = vector.extract_strided_slice %143 {offsets = [16, 0], sizes = [8, 32], strides = [1, 1]} : vector<24x32xf32> to vector<8x32xf32>
    %cst_79 = arith.constant dense<0.000000e+00> : vector<8x8xf32>
    %147 = tpu.matmul %144, %145, %cst_79 {dimension_numbers = #tpu.dot_dimension_numbers<[1], [1], [0], [0], [0, 0, 1, 0], [], []>} : vector<8x32xf32>, vector<8x32xf32>, vector<8x8xf32> -> vector<8x8xf32>
    %cst_80 = arith.constant 0.176776692 : f32
    %148 = vector.broadcast %cst_80 : f32 to vector<8x8xf32>
    %149 = arith.mulf %147, %148 : vector<8x8xf32>
    %cst_81 = arith.constant dense<0xFF800000> : vector<8xf32>
    %150 = vector.multi_reduction <maximumf>, %149, %cst_81 [1] : vector<8x8xf32> to vector<8xf32>
    %151 = vector.shape_cast %150 : vector<8xf32> to vector<8x1xf32>
    %152 = vector.broadcast %151 : vector<8x1xf32> to vector<8x8xf32>
    %153 = arith.subf %149, %152 : vector<8x8xf32>
    %154 = math.exp %153 : vector<8x8xf32>
    %cst_82 = arith.constant dense<0.000000e+00> : vector<8xf32>
    %155 = vector.multi_reduction <add>, %154, %cst_82 [1] : vector<8x8xf32> to vector<8xf32>
    %156 = vector.shape_cast %155 : vector<8xf32> to vector<8x1xf32>
    %157 = vector.broadcast %156 : vector<8x1xf32> to vector<8x8xf32>
    %158 = arith.divf %154, %157 : vector<8x8xf32>
    %cst_83 = arith.constant dense<0.000000e+00> : vector<8x32xf32>
    %159 = tpu.matmul %158, %146, %cst_83 {dimension_numbers = #tpu.dot_dimension_numbers<[1], [0], [0], [1], [0, 0, 1, 1], [], []>} : vector<8x8xf32>, vector<8x32xf32>, vector<8x32xf32> -> vector<8x32xf32>
    %160 = arith.addf %159, %144 : vector<8x32xf32>
    %c0_84 = arith.constant 0 : index
    %161 = memref.load %arg20[%c0_84] : memref<1xf32, #tpu.memory_space<smem>>
    %162 = vector.broadcast %161 : f32 to vector<8x32xf32>
    %163 = arith.mulf %160, %162 : vector<8x32xf32>
    %c0_85 = arith.constant 0 : index
    %164 = memref.load %arg21[%c0_85] : memref<1xf32, #tpu.memory_space<smem>>
    %165 = vector.broadcast %164 : f32 to vector<8x32xf32>
    %166 = arith.addf %163, %165 : vector<8x32xf32>
    %c0_86 = arith.constant 0 : index
    %c0_87 = arith.constant 0 : index
    %167 = vector.load %arg22[%c0_86, %c0_87] : memref<32x32xf32, #tpu.memory_space<vmem>>, vector<32x32xf32>
    %cst_88 = arith.constant dense<0.000000e+00> : vector<8x32xf32>
    %168 = tpu.matmul %166, %167, %cst_88 {dimension_numbers = #tpu.dot_dimension_numbers<[1], [0], [0], [1], [0, 0, 1, 1], [], []>} : vector<8x32xf32>, vector<32x32xf32>, vector<8x32xf32> -> vector<8x32xf32>
    %c0_89 = arith.constant 0 : index
    %c0_90 = arith.constant 0 : index
    %169 = vector.load %arg23[%c0_89, %c0_90] : memref<1x32xf32, #tpu.memory_space<vmem>>, vector<1x32xf32>
    %170 = vector.broadcast %169 : vector<1x32xf32> to vector<8x32xf32>
    %171 = arith.addf %168, %170 : vector<8x32xf32>
    %cst_91 = arith.constant 5.000000e-01 : f32
    %172 = vector.broadcast %cst_91 : f32 to vector<8x32xf32>
    %173 = arith.mulf %172, %171 : vector<8x32xf32>
    %cst_92 = arith.constant 0.707106769 : f32
    %174 = vector.broadcast %cst_92 : f32 to vector<8x32xf32>
    %175 = arith.mulf %171, %174 : vector<8x32xf32>
    %176 = math.absf %175 : vector<8x32xf32>
    %cst_93 = arith.constant 0.327591091 : f32
    %177 = vector.broadcast %cst_93 : f32 to vector<8x32xf32>
    %178 = arith.mulf %177, %176 : vector<8x32xf32>
    %cst_94 = arith.constant 1.000000e+00 : f32
    %179 = vector.broadcast %cst_94 : f32 to vector<8x32xf32>
    %180 = arith.addf %179, %178 : vector<8x32xf32>
    %cst_95 = arith.constant 1.000000e+00 : f32
    %181 = vector.broadcast %cst_95 : f32 to vector<8x32xf32>
    %182 = arith.divf %181, %180 : vector<8x32xf32>
    %cst_96 = arith.constant 1.06140542 : f32
    %183 = vector.broadcast %cst_96 : f32 to vector<8x32xf32>
    %184 = arith.mulf %183, %182 : vector<8x32xf32>
    %cst_97 = arith.constant -1.45315206 : f32
    %185 = vector.broadcast %cst_97 : f32 to vector<8x32xf32>
    %186 = arith.addf %184, %185 : vector<8x32xf32>
    %187 = arith.mulf %186, %182 : vector<8x32xf32>
    %cst_98 = arith.constant 1.42141378 : f32
    %188 = vector.broadcast %cst_98 : f32 to vector<8x32xf32>
    %189 = arith.addf %187, %188 : vector<8x32xf32>
    %190 = arith.mulf %189, %182 : vector<8x32xf32>
    %cst_99 = arith.constant -0.284496725 : f32
    %191 = vector.broadcast %cst_99 : f32 to vector<8x32xf32>
    %192 = arith.addf %190, %191 : vector<8x32xf32>
    %193 = arith.mulf %192, %182 : vector<8x32xf32>
    %cst_100 = arith.constant 0.254829586 : f32
    %194 = vector.broadcast %cst_100 : f32 to vector<8x32xf32>
    %195 = arith.addf %193, %194 : vector<8x32xf32>
    %196 = arith.mulf %195, %182 : vector<8x32xf32>
    %cst_101 = arith.constant 0.000000e+00 : f32
    %197 = vector.broadcast %cst_101 : f32 to vector<8x32xf32>
    %198 = arith.subf %197, %176 : vector<8x32xf32>
    %199 = arith.mulf %198, %176 : vector<8x32xf32>
    %200 = math.exp %199 : vector<8x32xf32>
    %201 = arith.mulf %196, %200 : vector<8x32xf32>
    %cst_102 = arith.constant 1.000000e+00 : f32
    %202 = vector.broadcast %cst_102 : f32 to vector<8x32xf32>
    %203 = arith.subf %202, %201 : vector<8x32xf32>
    %cst_103 = arith.constant 0.000000e+00 : f32
    %204 = vector.broadcast %cst_103 : f32 to vector<8x32xf32>
    %205 = arith.cmpf oge, %175, %204 : vector<8x32xf32>
    %cst_104 = arith.constant 0.000000e+00 : f32
    %206 = vector.broadcast %cst_104 : f32 to vector<8x32xf32>
    %207 = arith.subf %206, %203 : vector<8x32xf32>
    %208 = arith.select %205, %203, %207 : vector<8x32xi1>, vector<8x32xf32>
    %cst_105 = arith.constant 1.000000e+00 : f32
    %209 = vector.broadcast %cst_105 : f32 to vector<8x32xf32>
    %210 = arith.addf %209, %208 : vector<8x32xf32>
    %211 = arith.mulf %173, %210 : vector<8x32xf32>
    %c0_106 = arith.constant 0 : index
    %c0_107 = arith.constant 0 : index
    %212 = vector.load %arg24[%c0_106, %c0_107] : memref<32x32xf32, #tpu.memory_space<vmem>>, vector<32x32xf32>
    %cst_108 = arith.constant dense<0.000000e+00> : vector<8x32xf32>
    %213 = tpu.matmul %211, %212, %cst_108 {dimension_numbers = #tpu.dot_dimension_numbers<[1], [0], [0], [1], [0, 0, 1, 1], [], []>} : vector<8x32xf32>, vector<32x32xf32>, vector<8x32xf32> -> vector<8x32xf32>
    %c0_109 = arith.constant 0 : index
    %c0_110 = arith.constant 0 : index
    %214 = vector.load %arg25[%c0_109, %c0_110] : memref<1x32xf32, #tpu.memory_space<vmem>>, vector<1x32xf32>
    %215 = vector.broadcast %214 : vector<1x32xf32> to vector<8x32xf32>
    %216 = arith.addf %213, %215 : vector<8x32xf32>
    %c0_111 = arith.constant 0 : index
    %c0_112 = arith.constant 0 : index
    %217 = vector.load %arg26[%c0_111, %c0_112] : memref<1x32xf32, #tpu.memory_space<vmem>>, vector<1x32xf32>
    %c0_113 = arith.constant 0 : index
    %c0_114 = arith.constant 0 : index
    %218 = vector.load %arg27[%c0_113, %c0_114] : memref<1x32xf32, #tpu.memory_space<vmem>>, vector<1x32xf32>
    %cst_115 = arith.constant dense<0.000000e+00> : vector<8xf32>
    %219 = vector.multi_reduction <add>, %216, %cst_115 [1] : vector<8x32xf32> to vector<8xf32>
    %220 = vector.shape_cast %219 : vector<8xf32> to vector<8x1xf32>
    %cst_116 = arith.constant 3.200000e+01 : f32
    %221 = vector.broadcast %cst_116 : f32 to vector<8x1xf32>
    %222 = arith.divf %220, %221 : vector<8x1xf32>
    %223 = vector.broadcast %222 : vector<8x1xf32> to vector<8x32xf32>
    %224 = arith.subf %216, %223 : vector<8x32xf32>
    %225 = arith.mulf %224, %224 : vector<8x32xf32>
    %cst_117 = arith.constant dense<0.000000e+00> : vector<8xf32>
    %226 = vector.multi_reduction <add>, %225, %cst_117 [1] : vector<8x32xf32> to vector<8xf32>
    %227 = vector.shape_cast %226 : vector<8xf32> to vector<8x1xf32>
    %cst_118 = arith.constant 3.200000e+01 : f32
    %228 = vector.broadcast %cst_118 : f32 to vector<8x1xf32>
    %229 = arith.divf %227, %228 : vector<8x1xf32>
    %230 = vector.broadcast %222 : vector<8x1xf32> to vector<8x32xf32>
    %231 = arith.subf %216, %230 : vector<8x32xf32>
    %cst_119 = arith.constant 9.99999974E-6 : f32
    %232 = vector.broadcast %cst_119 : f32 to vector<8x1xf32>
    %233 = arith.addf %229, %232 : vector<8x1xf32>
    %234 = math.rsqrt %233 : vector<8x1xf32>
    %235 = vector.broadcast %234 : vector<8x1xf32> to vector<8x32xf32>
    %236 = arith.mulf %231, %235 : vector<8x32xf32>
    %237 = vector.broadcast %217 : vector<1x32xf32> to vector<8x32xf32>
    %238 = arith.mulf %236, %237 : vector<8x32xf32>
    %239 = vector.broadcast %218 : vector<1x32xf32> to vector<8x32xf32>
    %240 = arith.addf %238, %239 : vector<8x32xf32>
    %c0_120 = arith.constant 0 : index
    %c0_121 = arith.constant 0 : index
    %241 = vector.load %arg28[%c0_120, %c0_121] : memref<32x32xf32, #tpu.memory_space<vmem>>, vector<32x32xf32>
    %cst_122 = arith.constant dense<0.000000e+00> : vector<8x32xf32>
    %242 = tpu.matmul %240, %241, %cst_122 {dimension_numbers = #tpu.dot_dimension_numbers<[1], [0], [0], [1], [0, 0, 1, 1], [], []>} : vector<8x32xf32>, vector<32x32xf32>, vector<8x32xf32> -> vector<8x32xf32>
    %c0_123 = arith.constant 0 : index
    %c0_124 = arith.constant 0 : index
    %243 = vector.load %arg29[%c0_123, %c0_124] : memref<1x32xf32, #tpu.memory_space<vmem>>, vector<1x32xf32>
    %244 = vector.broadcast %243 : vector<1x32xf32> to vector<8x32xf32>
    %245 = arith.addf %242, %244 : vector<8x32xf32>
    %cst_125 = arith.constant 0.000000e+00 : f32
    %246 = vector.broadcast %cst_125 : f32 to vector<8x32xf32>
    %247 = arith.maximumf %245, %246 : vector<8x32xf32>
    %c0_126 = arith.constant 0 : index
    %c0_127 = arith.constant 0 : index
    %248 = vector.load %arg30[%c0_126, %c0_127] : memref<32x128xf32, #tpu.memory_space<vmem>>, vector<32x128xf32>
    %cst_128 = arith.constant dense<0.000000e+00> : vector<8x128xf32>
    %249 = tpu.matmul %247, %248, %cst_128 {dimension_numbers = #tpu.dot_dimension_numbers<[1], [0], [0], [1], [0, 0, 1, 1], [], []>} : vector<8x32xf32>, vector<32x128xf32>, vector<8x128xf32> -> vector<8x128xf32>
    %c0_129 = arith.constant 0 : index
    %c0_130 = arith.constant 0 : index
    %250 = vector.load %arg31[%c0_129, %c0_130] : memref<1x128xf32, #tpu.memory_space<vmem>>, vector<1x128xf32>
    %251 = vector.broadcast %250 : vector<1x128xf32> to vector<8x128xf32>
    %252 = arith.addf %249, %251 : vector<8x128xf32>
    %c0_131 = arith.constant 0 : index
    %c0_132 = arith.constant 0 : index
    %c0_133 = arith.constant 0 : index
    %253 = vector.load %arg32[%c0_131, %c0_132, %c0_133] : memref<1x8x128xf32, #tpu.memory_space<vmem>>, vector<1x8x128xf32>
    %254 = vector.shape_cast %253 : vector<1x8x128xf32> to vector<8x128xf32>
    %255 = vector.shape_cast %252 : vector<8x128xf32> to vector<1x8x128xf32>
    tpu.vector_store %arg32[%c0_131, %c0_132, %c0_133], %255 {strides = array<i32>} : memref<1x8x128xf32, #tpu.memory_space<vmem>>, vector<1x8x128xf32>,
    return
  }
  func.func @transform_0(%arg0: i32) -> (i32, i32, i32) {
    %c0_i32 = arith.constant 0 : i32
    %c0_i32_0 = arith.constant 0 : i32
    %c0_i32_1 = arith.constant 0 : i32
    return %arg0, %c0_i32, %c0_i32_0 : i32, i32, i32
  }
  func.func @transform_1(%arg0: i32) -> (i32, i32, i32, i32) {
    %c0_i32 = arith.constant 0 : i32
    %c0_i32_0 = arith.constant 0 : i32
    %c0_i32_1 = arith.constant 0 : i32
    %c0_i32_2 = arith.constant 0 : i32
    return %arg0, %c0_i32, %c0_i32_0, %c0_i32_1 : i32, i32, i32, i32
  }
  func.func @transform_2(%arg0: i32) -> (i32, i32) {
    %c0_i32 = arith.constant 0 : i32
    %c0_i32_0 = arith.constant 0 : i32
    %c0_i32_1 = arith.constant 0 : i32
    return %c0_i32, %c0_i32_0 : i32, i32
  }
  func.func @transform_3(%arg0: i32) -> (i32, i32) {
    %c0_i32 = arith.constant 0 : i32
    %c0_i32_0 = arith.constant 0 : i32
    %c0_i32_1 = arith.constant 0 : i32
    return %c0_i32, %c0_i32_0 : i32, i32
  }
  func.func @transform_4(%arg0: i32) -> (i32, i32) {
    %c0_i32 = arith.constant 0 : i32
    %c0_i32_0 = arith.constant 0 : i32
    %c0_i32_1 = arith.constant 0 : i32
    return %c0_i32, %c0_i32_0 : i32, i32
  }
  func.func @transform_5(%arg0: i32) -> (i32, i32) {
    %c0_i32 = arith.constant 0 : i32
    %c0_i32_0 = arith.constant 0 : i32
    %c0_i32_1 = arith.constant 0 : i32
    return %c0_i32, %c0_i32_0 : i32, i32
  }
  func.func @transform_6(%arg0: i32) -> (i32, i32) {
    %c0_i32 = arith.constant 0 : i32
    %c0_i32_0 = arith.constant 0 : i32
    %c0_i32_1 = arith.constant 0 : i32
    return %c0_i32, %c0_i32_0 : i32, i32
  }
  func.func @transform_7(%arg0: i32) -> (i32, i32) {
    %c0_i32 = arith.constant 0 : i32
    %c0_i32_0 = arith.constant 0 : i32
    %c0_i32_1 = arith.constant 0 : i32
    return %c0_i32, %c0_i32_0 : i32, i32
  }
  func.func @transform_8(%arg0: i32) -> (i32, i32) {
    %c0_i32 = arith.constant 0 : i32
    %c0_i32_0 = arith.constant 0 : i32
    %c0_i32_1 = arith.constant 0 : i32
    return %c0_i32, %c0_i32_0 : i32, i32
  }
  func.func @transform_9(%arg0: i32) -> i32 {
    %c0_i32 = arith.constant 0 : i32
    %c0_i32_0 = arith.constant 0 : i32
    return %c0_i32 : i32
  }
  func.func @transform_10(%arg0: i32) -> i32 {
    %c0_i32 = arith.constant 0 : i32
    %c0_i32_0 = arith.constant 0 : i32
    return %c0_i32 : i32
  }
  func.func @transform_11(%arg0: i32) -> (i32, i32) {
    %c0_i32 = arith.constant 0 : i32
    %c0_i32_0 = arith.constant 0 : i32
    %c0_i32_1 = arith.constant 0 : i32
    return %c0_i32, %c0_i32_0 : i32, i32
  }
  func.func @transform_12(%arg0: i32) -> (i32, i32) {
    %c0_i32 = arith.constant 0 : i32
    %c0_i32_0 = arith.constant 0 : i32
    %c0_i32_1 = arith.constant 0 : i32
    return %c0_i32, %c0_i32_0 : i32, i32
  }
  func.func @transform_13(%arg0: i32) -> (i32, i32) {
    %c0_i32 = arith.constant 0 : i32
    %c0_i32_0 = arith.constant 0 : i32
    %c0_i32_1 = arith.constant 0 : i32
    return %c0_i32, %c0_i32_0 : i32, i32
  }
  func.func @transform_14(%arg0: i32) -> (i32, i32) {
    %c0_i32 = arith.constant 0 : i32
    %c0_i32_0 = arith.constant 0 : i32
    %c0_i32_1 = arith.constant 0 : i32
    return %c0_i32, %c0_i32_0 : i32, i32
  }
  func.func @transform_15(%arg0: i32) -> i32 {
    %c0_i32 = arith.constant 0 : i32
    %c0_i32_0 = arith.constant 0 : i32
    return %c0_i32 : i32
  }
  func.func @transform_16(%arg0: i32) -> i32 {
    %c0_i32 = arith.constant 0 : i32
    %c0_i32_0 = arith.constant 0 : i32
    return %c0_i32 : i32
  }
  func.func @transform_17(%arg0: i32) -> (i32, i32) {
    %c0_i32 = arith.constant 0 : i32
    %c0_i32_0 = arith.constant 0 : i32
    %c0_i32_1 = arith.constant 0 : i32
    return %c0_i32, %c0_i32_0 : i32, i32
  }
  func.func @transform_18(%arg0: i32) -> (i32, i32) {
    %c0_i32 = arith.constant 0 : i32
    %c0_i32_0 = arith.constant 0 : i32
    %c0_i32_1 = arith.constant 0 : i32
    return %c0_i32, %c0_i32_0 : i32, i32
  }
  func.func @transform_19(%arg0: i32) -> i32 {
    %c0_i32 = arith.constant 0 : i32
    %c0_i32_0 = arith.constant 0 : i32
    return %c0_i32 : i32
  }
  func.func @transform_20(%arg0: i32) -> i32 {
    %c0_i32 = arith.constant 0 : i32
    %c0_i32_0 = arith.constant 0 : i32
    return %c0_i32 : i32
  }
  func.func @transform_21(%arg0: i32) -> (i32, i32) {
    %c0_i32 = arith.constant 0 : i32
    %c0_i32_0 = arith.constant 0 : i32
    %c0_i32_1 = arith.constant 0 : i32
    return %c0_i32, %c0_i32_0 : i32, i32
  }
  func.func @transform_22(%arg0: i32) -> (i32, i32) {
    %c0_i32 = arith.constant 0 : i32
    %c0_i32_0 = arith.constant 0 : i32
    %c0_i32_1 = arith.constant 0 : i32
    return %c0_i32, %c0_i32_0 : i32, i32
  }
  func.func @transform_23(%arg0: i32) -> (i32, i32) {
    %c0_i32 = arith.constant 0 : i32
    %c0_i32_0 = arith.constant 0 : i32
    %c0_i32_1 = arith.constant 0 : i32
    return %c0_i32, %c0_i32_0 : i32, i32
  }
  func.func @transform_24(%arg0: i32) -> (i32, i32) {
    %c0_i32 = arith.constant 0 : i32
    %c0_i32_0 = arith.constant 0 : i32
    %c0_i32_1 = arith.constant 0 : i32
    return %c0_i32, %c0_i32_0 : i32, i32
  }
  func.func @transform_25(%arg0: i32) -> (i32, i32) {
    %c0_i32 = arith.constant 0 : i32
    %c0_i32_0 = arith.constant 0 : i32
    %c0_i32_1 = arith.constant 0 : i32
    return %c0_i32, %c0_i32_0 : i32, i32
  }
  func.func @transform_26(%arg0: i32) -> (i32, i32) {
    %c0_i32 = arith.constant 0 : i32
    %c0_i32_0 = arith.constant 0 : i32
    %c0_i32_1 = arith.constant 0 : i32
    return %c0_i32, %c0_i32_0 : i32, i32
  }
  func.func @transform_27(%arg0: i32) -> (i32, i32) {
    %c0_i32 = arith.constant 0 : i32
    %c0_i32_0 = arith.constant 0 : i32
    %c0_i32_1 = arith.constant 0 : i32
    return %c0_i32, %c0_i32_0 : i32, i32
  }
  func.func @transform_28(%arg0: i32) -> (i32, i32) {
    %c0_i32 = arith.constant 0 : i32
    %c0_i32_0 = arith.constant 0 : i32
    %c0_i32_1 = arith.constant 0 : i32
    return %c0_i32, %c0_i32_0 : i32, i32
  }
  func.func @transform_29(%arg0: i32) -> (i32, i32) {
    %c0_i32 = arith.constant 0 : i32
    %c0_i32_0 = arith.constant 0 : i32
    %c0_i32_1 = arith.constant 0 : i32
    return %c0_i32, %c0_i32_0 : i32, i32
  }
  func.func @transform_30(%arg0: i32) -> (i32, i32) {
    %c0_i32 = arith.constant 0 : i32
    %c0_i32_0 = arith.constant 0 : i32
    %c0_i32_1 = arith.constant 0 : i32
    return %c0_i32, %c0_i32_0 : i32, i32
  }
  func.func @transform_31(%arg0: i32) -> (i32, i32, i32) {
    %c0_i32 = arith.constant 0 : i32
    %c0_i32_0 = arith.constant 0 : i32
    %c0_i32_1 = arith.constant 0 : i32
    return %arg0, %c0_i32, %c0_i32_0 : i32, i32, i32
  }
}

</mosaic_0001>

<llo_original>
// kernel: tpu_custom_call.1
$region0: #{tpu_custom_call.1}
  #allocation0 [shape = 'u32[]', space=smem, size = 0x4, offset = 0x4, fixed_abs, tag = 'smem constant byte address 0x4 - core index']
  #allocation1 [shape = 'u32[144,128]{1,0:T(1,128)}', space=vmem, size = 0x12000, scoped, tag = 'internal scratch']
  #allocation2 [shape = 'f32[1]{0:T(128)S(6)}', space=smem, size = 0x200, scoped, tag = 'scoped memory for tpu_custom_call.1']
  #allocation3 [shape = 'f32[1]{0:T(128)S(6)}', space=smem, size = 0x200, scoped, tag = 'scoped memory for tpu_custom_call.1']
  %s0 = inlined_call_operand.smem [shape: u32[32], index: -1, kind: input, shape index: {}]
  %s1 = sld [smem:[%s0]]
  %s2 = scalar_lea.smem %s0, 1
  %s3 = sld [smem:[%s2]]
  %s4 = scalar_lea.smem %s0, 2
  %s5 = sld [smem:[%s4]]
  %s6 = scalar_lea.smem %s0, 3
  %s7 = sld [smem:[%s6]]
  %s8 = scalar_lea.smem %s0, 4
  %s9 = sld [smem:[%s8]]
  %s10 = scalar_lea.smem %s0, 5
  %s11 = sld [smem:[%s10]]
  %s12 = scalar_lea.smem %s0, 6
  %s13 = sld [smem:[%s12]]
  %s14 = scalar_lea.smem %s0, 7
  %s15 = sld [smem:[%s14]]
  %s16 = scalar_lea.smem %s0, 8
  %s17 = sld [smem:[%s16]]
  %s18 = scalar_lea.smem %s0, 9
  %s19 = sld [smem:[%s18]]
  %s20 = scalar_lea.smem %s0, 10
  %s21 = sld [smem:[%s20]]
  %s22 = scalar_lea.smem %s0, 11
  %s23 = sld [smem:[%s22]]
  %s24 = scalar_lea.smem %s0, 12
  %s25 = sld [smem:[%s24]]
  %s26 = scalar_lea.smem %s0, 13
  %s27 = sld [smem:[%s26]]
  %s28 = scalar_lea.smem %s0, 14
  %s29 = sld [smem:[%s28]]
  %s30 = scalar_lea.smem %s0, 15
  %s31 = sld [smem:[%s30]]
  %s32 = scalar_lea.smem %s0, 16
  %s33 = sld [smem:[%s32]]
  %s34 = scalar_lea.smem %s0, 17
  %s35 = sld [smem:[%s34]]
  %s36 = scalar_lea.smem %s0, 18
  %s37 = sld [smem:[%s36]]
  %s38 = scalar_lea.smem %s0, 19
  %s39 = sld [smem:[%s38]]
  %s40 = scalar_lea.smem %s0, 20
  %s41 = sld [smem:[%s40]]
  %s42 = scalar_lea.smem %s0, 21
  %s43 = sld [smem:[%s42]]
  %s44 = scalar_lea.smem %s0, 22
  %s45 = sld [smem:[%s44]]
  %s46 = scalar_lea.smem %s0, 23
  %s47 = sld [smem:[%s46]]
  %s48 = scalar_lea.smem %s0, 24
  %s49 = sld [smem:[%s48]]
  %s50 = scalar_lea.smem %s0, 25
  %s51 = sld [smem:[%s50]]
  %s52 = scalar_lea.smem %s0, 26
  %s53 = sld [smem:[%s52]]
  %s54 = scalar_lea.smem %s0, 27
  %s55 = sld [smem:[%s54]]
  %s56 = scalar_lea.smem %s0, 28
  %s57 = sld [smem:[%s56]]
  %s58 = scalar_lea.smem %s0, 29
  %s59 = sld [smem:[%s58]]
  %s60 = scalar_lea.smem %s0, 30
  %s61 = sld [smem:[%s60]]
  %s62 = scalar_lea.smem %s0, 31
  %s63 = sld [smem:[%s62]]
  %s64 = sld [smem:[#allocation0]]
  $region225: #{tpu_custom_call.1} parent=0
    _
  %s66 = ssub.s32 1, %s64
  %s67 = scalar_select 0, %s66, %s64
  %68 = sst [smem:[#allocation2]] %s39
  %69 = sst [smem:[#allocation3]] %s41
  $region1: #{tpu_custom_call.1} parent=0
    #allocation4 [shape = 'u8[512]{0}', space=vmem, size = 0x400, scoped, tag = 'input window, operand 2, single buffered']
    #allocation5 [shape = 's32[2]{0}', space=sflag, size = 0x8, scoped, tag = 'scoped memory for tpu_custom_call.1']
    #allocation6 [shape = 's32[2]{0}', space=sflag, size = 0x8, scoped, tag = 'scoped memory for tpu_custom_call.1']
    #allocation7 [shape = 's32[2]{0}', space=sflag, size = 0x8, scoped, tag = 'scoped memory for tpu_custom_call.1']
    #allocation8 [shape = 'u8[512]{0}', space=vmem, size = 0x400, scoped, tag = 'input window, operand 3, single buffered']
    #allocation9 [shape = 's32[1]{0}', space=sflag, size = 0x4, scoped, tag = 'scoped memory for tpu_custom_call.1']
    #allocation10 [shape = 'u8[4096]{0}', space=vmem, size = 0x1000, scoped, tag = 'input window, operand 4, single buffered']
    #allocation11 [shape = 'u8[512]{0}', space=vmem, size = 0x400, scoped, tag = 'input window, operand 5, single buffered']
    #allocation12 [shape = 's32[1]{0}', space=sflag, size = 0x4, scoped, tag = 'scoped memory for tpu_custom_call.1']
    #allocation13 [shape = 'u8[512]{0}', space=vmem, size = 0x400, scoped, tag = 'input window, operand 7, single buffered']
    #allocation14 [shape = 'u8[4096]{0}', space=vmem, size = 0x1000, scoped, tag = 'input window, operand 8, single buffered']
    #allocation15 [shape = 's32[1]{0}', space=sflag, size = 0x4, scoped, tag = 'scoped memory for tpu_custom_call.1']
    #allocation16 [shape = 'u8[512]{0}', space=smem, size = 0x200, scoped, tag = 'input window, operand 9, single buffered']
    #allocation17 [shape = 'u8[512]{0}', space=smem, size = 0x200, scoped, tag = 'input window, operand 10, single buffered']
    #allocation18 [shape = 's32[1]{0}', space=sflag, size = 0x4, scoped, tag = 'scoped memory for tpu_custom_call.1']
    #allocation19 [shape = 'u8[16384]{0}', space=vmem, size = 0x4000, scoped, tag = 'input window, operand 11, single buffered']
    #allocation20 [shape = 'u8[16384]{0}', space=vmem, size = 0x4000, scoped, tag = 'input window, operand 12, single buffered']
    #allocation21 [shape = 's32[1]{0}', space=sflag, size = 0x4, scoped, tag = 'scoped memory for tpu_custom_call.1']
    #allocation22 [shape = 'u8[512]{0}', space=smem, size = 0x200, scoped, tag = 'input window, operand 15, single buffered']
    #allocation23 [shape = 'u8[512]{0}', space=smem, size = 0x200, scoped, tag = 'input window, operand 16, single buffered']
    #allocation24 [shape = 's32[1]{0}', space=sflag, size = 0x4, scoped, tag = 'scoped memory for tpu_custom_call.1']
    #allocation25 [shape = 'u8[12288]{0}', space=vmem, size = 0x3000, scoped, tag = 'input window, operand 17, single buffered']
    #allocation26 [shape = 'u8[512]{0}', space=vmem, size = 0x400, scoped, tag = 'input window, operand 22, single buffered']
    #allocation27 [shape = 's32[1]{0}', space=sflag, size = 0x4, scoped, tag = 'scoped memory for tpu_custom_call.1']
    #allocation28 [shape = 'u8[16384]{0}', space=vmem, size = 0x4000, scoped, tag = 'input window, operand 23, single buffered']
    #allocation29 [shape = 'u8[512]{0}', space=vmem, size = 0x400, scoped, tag = 'input window, operand 24, single buffered']
    #allocation30 [shape = 's32[1]{0}', space=sflag, size = 0x4, scoped, tag = 'scoped memory for tpu_custom_call.1']
    #allocation31 [shape = 'u8[16384]{0}', space=vmem, size = 0x4000, scoped, tag = 'input window, operand 29, single buffered']
    #allocation32 [shape = 'u8[8192]{0}', space=vmem, size = 0x2000, scoped, tag = 'output window, operand 0']
    %70 = vsyncpa [#allocation5], 0
    %71 = vsyncpa [#allocation9], 0
    %72 = vsyncpa [#allocation12], 0
    %73 = vsyncpa [#allocation15], 0
    %74 = vsyncpa [#allocation7], 0
    %75 = vsyncpa [#allocation18], 0
    %76 = vsyncpa [#allocation21], 0
    %77 = vsyncpa [#allocation24], 0
    %78 = vsyncpa [#allocation27], 0
    %79 = vsyncpa [#allocation30], 0
    %80 = vsyncpa [#allocation6], 0
    %s81 = scalar_lea.sflag [#allocation6], 1
    %82 = vsyncpa %s81, 0
    loop: start=0, step=1, limit=4
    $region2: #{tpu_custom_call.1} parent=1 // loop_pre_header
      _
    $region3: #{tpu_custom_call.1} parent=1 // loop_header
      %s84 = sphi 0, %s88
      %p85 = scmp.ge.s32.totalorder %s84, 4
      %s94 = sphi 0, %s96
      %s97 = sphi 0, %s94
      %s98 = sphi 0, %s97
      %s114 = sphi 0, %s98
      %s120 = sphi 0, %s122
      %s123 = sphi 0, %s120
      %s124 = sphi 0, %s123
      %s140 = sphi 0, %s124
      %s144 = sphi 0, %s144
      %s146 = sphi 0, %s144
      %s147 = sphi 0, %s146
      %s161 = sphi 0, %s147
      %s165 = sphi 0, %s165
      %s167 = sphi 0, %s165
      %s168 = sphi 0, %s167
      %s182 = sphi 0, %s168
      %s186 = sphi 0, %s186
      %s188 = sphi 0, %s186
      %s189 = sphi 0, %s188
      %s203 = sphi 0, %s189
      %s207 = sphi 0, %s207
      %s209 = sphi 0, %s207
      %s210 = sphi 0, %s209
      %s224 = sphi 0, %s210
      %s228 = sphi 0, %s228
      %s230 = sphi 0, %s228
      %s231 = sphi 0, %s230
      %s245 = sphi 0, %s231
      %s249 = sphi 0, %s249
      %s251 = sphi 0, %s249
      %s252 = sphi 0, %s251
      %s266 = sphi 0, %s252
      %s270 = sphi 0, %s270
      %s272 = sphi 0, %s270
      %s273 = sphi 0, %s272
      %s287 = sphi 0, %s273
      %s291 = sphi 0, %s291
      %s293 = sphi 0, %s291
      %s294 = sphi 0, %s293
      %s308 = sphi 0, %s294
      %s312 = sphi 0, %s312
      %s314 = sphi 0, %s312
      %s315 = sphi 0, %s314
      %s329 = sphi 0, %s315
      %s333 = sphi 0, %s333
      %s335 = sphi 0, %s333
      %s336 = sphi 0, %s335
      %s350 = sphi 0, %s336
      %s354 = sphi 0, %s354
      %s356 = sphi 0, %s354
      %s357 = sphi 0, %s356
      %s371 = sphi 0, %s357
      %s375 = sphi 0, %s375
      %s377 = sphi 0, %s375
      %s378 = sphi 0, %s377
      %s392 = sphi 0, %s378
      %s396 = sphi 0, %s396
      %s398 = sphi 0, %s396
      %s399 = sphi 0, %s398
      %s413 = sphi 0, %s399
      %s417 = sphi 0, %s417
      %s419 = sphi 0, %s417
      %s420 = sphi 0, %s419
      %s434 = sphi 0, %s420
      %s438 = sphi 0, %s438
      %s440 = sphi 0, %s438
      %s441 = sphi 0, %s440
      %s455 = sphi 0, %s441
      %s459 = sphi 0, %s459
      %s461 = sphi 0, %s459
      %s462 = sphi 0, %s461
      %s476 = sphi 0, %s462
      %s480 = sphi 0, %s480
      %s482 = sphi 0, %s480
      %s483 = sphi 0, %s482
      %s497 = sphi 0, %s483
      %s501 = sphi 0, %s501
      %s503 = sphi 0, %s501
      %s504 = sphi 0, %s503
      %s518 = sphi 0, %s504
      %s522 = sphi 0, %s522
      %s524 = sphi 0, %s522
      %s525 = sphi 0, %s524
      %s539 = sphi 0, %s525
      %s543 = sphi 0, %s543
      %s545 = sphi 0, %s543
      %s546 = sphi 0, %s545
      %s560 = sphi 0, %s546
      %s564 = sphi 0, %s564
      %s566 = sphi 0, %s564
      %s567 = sphi 0, %s566
      %s581 = sphi 0, %s567
      %s585 = sphi 0, %s585
      %s587 = sphi 0, %s585
      %s588 = sphi 0, %s587
      %s602 = sphi 0, %s588
      %s606 = sphi 0, %s606
      %s608 = sphi 0, %s606
      %s609 = sphi 0, %s608
      %s623 = sphi 0, %s609
      %s627 = sphi 0, %s627
      %s629 = sphi 0, %s627
      %s630 = sphi 0, %s629
      %s644 = sphi 0, %s630
      %s648 = sphi 0, %s648
      %s650 = sphi 0, %s648
      %s651 = sphi 0, %s650
      %s665 = sphi 0, %s651
      %s669 = sphi 0, %s669
      %s671 = sphi 0, %s669
      %s672 = sphi 0, %s671
      %s686 = sphi 0, %s672
      %s690 = sphi 0, %s690
      %s692 = sphi 0, %s690
      %s693 = sphi 0, %s692
      %s707 = sphi 0, %s693
      %s711 = sphi 0, %s711
      %s713 = sphi 0, %s711
      %s714 = sphi 0, %s713
      %s728 = sphi 0, %s714
      %s732 = sphi 0, %s732
      %s734 = sphi 0, %s732
      %s735 = sphi 0, %s734
      %s749 = sphi 0, %s735
      %s755 = sphi 0, %s757
      %s758 = sphi 0, %s755
      %s759 = sphi 0, %s758
      %s775 = sphi 0, %s759
    $region4: #{tpu_custom_call.1} parent=1 // loop_header_branch
      %87 = sbr.rel (%p85) target = $region8
    $region5: #{tpu_custom_call.1} parent=1 // loop_body
      %s89 = ssub.s32 %s84, 1
      %s90 = ssub.s32 %s84, 2
      %s91 = sadd.s32 %s84, 1
      %s92 = ssub.s32 %s84, %s91
      %p93 = scmp.eq.s32.totalorder %s92, 0
      %s95 = sadd.s32 %s94, 1
      %s96 = scalar_select %p93, %s94, %s95
      %p99 = pneg %p93
      %p100 = scmp.eq.s32.totalorder %s84, 1
      %p101 = por %p99, %p100
      %p102 = scmp.ne.s32.totalorder %s94, %s97
      %p103 = scmp.eq.s32.totalorder %s84, 0
      %p104 = por %p102, %p103
      %p105 = scmp.ne.s32.totalorder %s94, %s97
      %p106 = scmp.eq.s32.totalorder %s89, 1
      %p107 = por %p105, %p106
      %p108 = scmp.ne.s32.totalorder %s97, %s98
      %p109 = scmp.eq.s32.totalorder %s89, 0
      %p110 = por %p108, %p109
      %p111 = scmp.ne.s32.totalorder %s97, %s98
      %p112 = scmp.eq.s32.totalorder %s90, 1
      %p113 = por %p111, %p112
      %p115 = scmp.ne.s32.totalorder %s98, %s114
      %p116 = scmp.eq.s32.totalorder %s90, 0
      %p117 = por %p115, %p116
      %s118 = ssub.s32 %s84, %s91
      %p119 = scmp.eq.s32.totalorder %s118, 0
      %s121 = sadd.s32 %s120, 1
      %s122 = scalar_select %p119, %s120, %s121
      %p125 = pneg %p119
      %p126 = scmp.eq.s32.totalorder %s84, 1
      %p127 = por %p125, %p126
      %p128 = scmp.ne.s32.totalorder %s120, %s123
      %p129 = scmp.eq.s32.totalorder %s84, 0
      %p130 = por %p128, %p129
      %p131 = scmp.ne.s32.totalorder %s120, %s123
      %p132 = scmp.eq.s32.totalorder %s89, 1
      %p133 = por %p131, %p132
      %p134 = scmp.ne.s32.totalorder %s123, %s124
      %p135 = scmp.eq.s32.totalorder %s89, 0
      %p136 = por %p134, %p135
      %p137 = scmp.ne.s32.totalorder %s123, %s124
      %p138 = scmp.eq.s32.totalorder %s90, 1
      %p139 = por %p137, %p138
      %p141 = scmp.ne.s32.totalorder %s124, %s140
      %p142 = scmp.eq.s32.totalorder %s90, 0
      %p143 = por %p141, %p142
      %s145 = sadd.s32 %s144, 1
      %p148 = scmp.eq.s32.totalorder %s84, 1
      %p149 = scmp.ne.s32.totalorder %s144, %s146
      %p150 = scmp.eq.s32.totalorder %s84, 0
      %p151 = por %p149, %p150
      %p152 = scmp.ne.s32.totalorder %s144, %s146
      %p153 = scmp.eq.s32.totalorder %s89, 1
      %p154 = por %p152, %p153
      %p155 = scmp.ne.s32.totalorder %s146, %s147
      %p156 = scmp.eq.s32.totalorder %s89, 0
      %p157 = por %p155, %p156
      %p158 = scmp.ne.s32.totalorder %s146, %s147
      %p159 = scmp.eq.s32.totalorder %s90, 1
      %p160 = por %p158, %p159
      %p162 = scmp.ne.s32.totalorder %s147, %s161
      %p163 = scmp.eq.s32.totalorder %s90, 0
      %p164 = por %p162, %p163
      %s166 = sadd.s32 %s165, 1
      %p169 = scmp.eq.s32.totalorder %s84, 1
      %p170 = scmp.ne.s32.totalorder %s165, %s167
      %p171 = scmp.eq.s32.totalorder %s84, 0
      %p172 = por %p170, %p171
      %p173 = scmp.ne.s32.totalorder %s165, %s167
      %p174 = scmp.eq.s32.totalorder %s89, 1
      %p175 = por %p173, %p174
      %p176 = scmp.ne.s32.totalorder %s167, %s168
      %p177 = scmp.eq.s32.totalorder %s89, 0
      %p178 = por %p176, %p177
      %p179 = scmp.ne.s32.totalorder %s167, %s168
      %p180 = scmp.eq.s32.totalorder %s90, 1
      %p181 = por %p179, %p180
      %p183 = scmp.ne.s32.totalorder %s168, %s182
      %p184 = scmp.eq.s32.totalorder %s90, 0
      %p185 = por %p183, %p184
      %s187 = sadd.s32 %s186, 1
      %p190 = scmp.eq.s32.totalorder %s84, 1
      %p191 = scmp.ne.s32.totalorder %s186, %s188
      %p192 = scmp.eq.s32.totalorder %s84, 0
      %p193 = por %p191, %p192
      %p194 = scmp.ne.s32.totalorder %s186, %s188
      %p195 = scmp.eq.s32.totalorder %s89, 1
      %p196 = por %p194, %p195
      %p197 = scmp.ne.s32.totalorder %s188, %s189
      %p198 = scmp.eq.s32.totalorder %s89, 0
      %p199 = por %p197, %p198
      %p200 = scmp.ne.s32.totalorder %s188, %s189
      %p201 = scmp.eq.s32.totalorder %s90, 1
      %p202 = por %p200, %p201
      %p204 = scmp.ne.s32.totalorder %s189, %s203
      %p205 = scmp.eq.s32.totalorder %s90, 0
      %p206 = por %p204, %p205
      %s208 = sadd.s32 %s207, 1
      %p211 = scmp.eq.s32.totalorder %s84, 1
      %p212 = scmp.ne.s32.totalorder %s207, %s209
      %p213 = scmp.eq.s32.totalorder %s84, 0
      %p214 = por %p212, %p213
      %p215 = scmp.ne.s32.totalorder %s207, %s209
      %p216 = scmp.eq.s32.totalorder %s89, 1
      %p217 = por %p215, %p216
      %p218 = scmp.ne.s32.totalorder %s209, %s210
      %p219 = scmp.eq.s32.totalorder %s89, 0
      %p220 = por %p218, %p219
      %p221 = scmp.ne.s32.totalorder %s209, %s210
      %p222 = scmp.eq.s32.totalorder %s90, 1
      %p223 = por %p221, %p222
      %p225 = scmp.ne.s32.totalorder %s210, %s224
      %p226 = scmp.eq.s32.totalorder %s90, 0
      %p227 = por %p225, %p226
      %s229 = sadd.s32 %s228, 1
      %p232 = scmp.eq.s32.totalorder %s84, 1
      %p233 = scmp.ne.s32.totalorder %s228, %s230
      %p234 = scmp.eq.s32.totalorder %s84, 0
      %p235 = por %p233, %p234
      %p236 = scmp.ne.s32.totalorder %s228, %s230
      %p237 = scmp.eq.s32.totalorder %s89, 1
      %p238 = por %p236, %p237
      %p239 = scmp.ne.s32.totalorder %s230, %s231
      %p240 = scmp.eq.s32.totalorder %s89, 0
      %p241 = por %p239, %p240
      %p242 = scmp.ne.s32.totalorder %s230, %s231
      %p243 = scmp.eq.s32.totalorder %s90, 1
      %p244 = por %p242, %p243
      %p246 = scmp.ne.s32.totalorder %s231, %s245
      %p247 = scmp.eq.s32.totalorder %s90, 0
      %p248 = por %p246, %p247
      %s250 = sadd.s32 %s249, 1
      %p253 = scmp.eq.s32.totalorder %s84, 1
      %p254 = scmp.ne.s32.totalorder %s249, %s251
      %p255 = scmp.eq.s32.totalorder %s84, 0
      %p256 = por %p254, %p255
      %p257 = scmp.ne.s32.totalorder %s249, %s251
      %p258 = scmp.eq.s32.totalorder %s89, 1
      %p259 = por %p257, %p258
      %p260 = scmp.ne.s32.totalorder %s251, %s252
      %p261 = scmp.eq.s32.totalorder %s89, 0
      %p262 = por %p260, %p261
      %p263 = scmp.ne.s32.totalorder %s251, %s252
      %p264 = scmp.eq.s32.totalorder %s90, 1
      %p265 = por %p263, %p264
      %p267 = scmp.ne.s32.totalorder %s252, %s266
      %p268 = scmp.eq.s32.totalorder %s90, 0
      %p269 = por %p267, %p268
      %s271 = sadd.s32 %s270, 1
      %p274 = scmp.eq.s32.totalorder %s84, 1
      %p275 = scmp.ne.s32.totalorder %s270, %s272
      %p276 = scmp.eq.s32.totalorder %s84, 0
      %p277 = por %p275, %p276
      %p278 = scmp.ne.s32.totalorder %s270, %s272
      %p279 = scmp.eq.s32.totalorder %s89, 1
      %p280 = por %p278, %p279
      %p281 = scmp.ne.s32.totalorder %s272, %s273
      %p282 = scmp.eq.s32.totalorder %s89, 0
      %p283 = por %p281, %p282
      %p284 = scmp.ne.s32.totalorder %s272, %s273
      %p285 = scmp.eq.s32.totalorder %s90, 1
      %p286 = por %p284, %p285
      %p288 = scmp.ne.s32.totalorder %s273, %s287
      %p289 = scmp.eq.s32.totalorder %s90, 0
      %p290 = por %p288, %p289
      %s292 = sadd.s32 %s291, 1
      %p295 = scmp.eq.s32.totalorder %s84, 1
      %p296 = scmp.ne.s32.totalorder %s291, %s293
      %p297 = scmp.eq.s32.totalorder %s84, 0
      %p298 = por %p296, %p297
      %p299 = scmp.ne.s32.totalorder %s291, %s293
      %p300 = scmp.eq.s32.totalorder %s89, 1
      %p301 = por %p299, %p300
      %p302 = scmp.ne.s32.totalorder %s293, %s294
      %p303 = scmp.eq.s32.totalorder %s89, 0
      %p304 = por %p302, %p303
      %p305 = scmp.ne.s32.totalorder %s293, %s294
      %p306 = scmp.eq.s32.totalorder %s90, 1
      %p307 = por %p305, %p306
      %p309 = scmp.ne.s32.totalorder %s294, %s308
      %p310 = scmp.eq.s32.totalorder %s90, 0
      %p311 = por %p309, %p310
      %s313 = sadd.s32 %s312, 1
      %p316 = scmp.eq.s32.totalorder %s84, 1
      %p317 = scmp.ne.s32.totalorder %s312, %s314
      %p318 = scmp.eq.s32.totalorder %s84, 0
      %p319 = por %p317, %p318
      %p320 = scmp.ne.s32.totalorder %s312, %s314
      %p321 = scmp.eq.s32.totalorder %s89, 1
      %p322 = por %p320, %p321
      %p323 = scmp.ne.s32.totalorder %s314, %s315
      %p324 = scmp.eq.s32.totalorder %s89, 0
      %p325 = por %p323, %p324
      %p326 = scmp.ne.s32.totalorder %s314, %s315
      %p327 = scmp.eq.s32.totalorder %s90, 1
      %p328 = por %p326, %p327
      %p330 = scmp.ne.s32.totalorder %s315, %s329
      %p331 = scmp.eq.s32.totalorder %s90, 0
      %p332 = por %p330, %p331
      %s334 = sadd.s32 %s333, 1
      %p337 = scmp.eq.s32.totalorder %s84, 1
      %p338 = scmp.ne.s32.totalorder %s333, %s335
      %p339 = scmp.eq.s32.totalorder %s84, 0
      %p340 = por %p338, %p339
      %p341 = scmp.ne.s32.totalorder %s333, %s335
      %p342 = scmp.eq.s32.totalorder %s89, 1
      %p343 = por %p341, %p342
      %p344 = scmp.ne.s32.totalorder %s335, %s336
      %p345 = scmp.eq.s32.totalorder %s89, 0
      %p346 = por %p344, %p345
      %p347 = scmp.ne.s32.totalorder %s335, %s336
      %p348 = scmp.eq.s32.totalorder %s90, 1
      %p349 = por %p347, %p348
      %p351 = scmp.ne.s32.totalorder %s336, %s350
      %p352 = scmp.eq.s32.totalorder %s90, 0
      %p353 = por %p351, %p352
      %s355 = sadd.s32 %s354, 1
      %p358 = scmp.eq.s32.totalorder %s84, 1
      %p359 = scmp.ne.s32.totalorder %s354, %s356
      %p360 = scmp.eq.s32.totalorder %s84, 0
      %p361 = por %p359, %p360
      %p362 = scmp.ne.s32.totalorder %s354, %s356
      %p363 = scmp.eq.s32.totalorder %s89, 1
      %p364 = por %p362, %p363
      %p365 = scmp.ne.s32.totalorder %s356, %s357
      %p366 = scmp.eq.s32.totalorder %s89, 0
      %p367 = por %p365, %p366
      %p368 = scmp.ne.s32.totalorder %s356, %s357
      %p369 = scmp.eq.s32.totalorder %s90, 1
      %p370 = por %p368, %p369
      %p372 = scmp.ne.s32.totalorder %s357, %s371
      %p373 = scmp.eq.s32.totalorder %s90, 0
      %p374 = por %p372, %p373
      %s376 = sadd.s32 %s375, 1
      %p379 = scmp.eq.s32.totalorder %s84, 1
      %p380 = scmp.ne.s32.totalorder %s375, %s377
      %p381 = scmp.eq.s32.totalorder %s84, 0
      %p382 = por %p380, %p381
      %p383 = scmp.ne.s32.totalorder %s375, %s377
      %p384 = scmp.eq.s32.totalorder %s89, 1
      %p385 = por %p383, %p384
      %p386 = scmp.ne.s32.totalorder %s377, %s378
      %p387 = scmp.eq.s32.totalorder %s89, 0
      %p388 = por %p386, %p387
      %p389 = scmp.ne.s32.totalorder %s377, %s378
      %p390 = scmp.eq.s32.totalorder %s90, 1
      %p391 = por %p389, %p390
      %p393 = scmp.ne.s32.totalorder %s378, %s392
      %p394 = scmp.eq.s32.totalorder %s90, 0
      %p395 = por %p393, %p394
      %s397 = sadd.s32 %s396, 1
      %p400 = scmp.eq.s32.totalorder %s84, 1
      %p401 = scmp.ne.s32.totalorder %s396, %s398
      %p402 = scmp.eq.s32.totalorder %s84, 0
      %p403 = por %p401, %p402
      %p404 = scmp.ne.s32.totalorder %s396, %s398
      %p405 = scmp.eq.s32.totalorder %s89, 1
      %p406 = por %p404, %p405
      %p407 = scmp.ne.s32.totalorder %s398, %s399
      %p408 = scmp.eq.s32.totalorder %s89, 0
      %p409 = por %p407, %p408
      %p410 = scmp.ne.s32.totalorder %s398, %s399
      %p411 = scmp.eq.s32.totalorder %s90, 1
      %p412 = por %p410, %p411
      %p414 = scmp.ne.s32.totalorder %s399, %s413
      %p415 = scmp.eq.s32.totalorder %s90, 0
      %p416 = por %p414, %p415
      %s418 = sadd.s32 %s417, 1
      %p421 = scmp.eq.s32.totalorder %s84, 1
      %p422 = scmp.ne.s32.totalorder %s417, %s419
      %p423 = scmp.eq.s32.totalorder %s84, 0
      %p424 = por %p422, %p423
      %p425 = scmp.ne.s32.totalorder %s417, %s419
      %p426 = scmp.eq.s32.totalorder %s89, 1
      %p427 = por %p425, %p426
      %p428 = scmp.ne.s32.totalorder %s419, %s420
      %p429 = scmp.eq.s32.totalorder %s89, 0
      %p430 = por %p428, %p429
      %p431 = scmp.ne.s32.totalorder %s419, %s420
      %p432 = scmp.eq.s32.totalorder %s90, 1
      %p433 = por %p431, %p432
      %p435 = scmp.ne.s32.totalorder %s420, %s434
      %p436 = scmp.eq.s32.totalorder %s90, 0
      %p437 = por %p435, %p436
      %s439 = sadd.s32 %s438, 1
      %p442 = scmp.eq.s32.totalorder %s84, 1
      %p443 = scmp.ne.s32.totalorder %s438, %s440
      %p444 = scmp.eq.s32.totalorder %s84, 0
      %p445 = por %p443, %p444
      %p446 = scmp.ne.s32.totalorder %s438, %s440
      %p447 = scmp.eq.s32.totalorder %s89, 1
      %p448 = por %p446, %p447
      %p449 = scmp.ne.s32.totalorder %s440, %s441
      %p450 = scmp.eq.s32.totalorder %s89, 0
      %p451 = por %p449, %p450
      %p452 = scmp.ne.s32.totalorder %s440, %s441
      %p453 = scmp.eq.s32.totalorder %s90, 1
      %p454 = por %p452, %p453
      %p456 = scmp.ne.s32.totalorder %s441, %s455
      %p457 = scmp.eq.s32.totalorder %s90, 0
      %p458 = por %p456, %p457
      %s460 = sadd.s32 %s459, 1
      %p463 = scmp.eq.s32.totalorder %s84, 1
      %p464 = scmp.ne.s32.totalorder %s459, %s461
      %p465 = scmp.eq.s32.totalorder %s84, 0
      %p466 = por %p464, %p465
      %p467 = scmp.ne.s32.totalorder %s459, %s461
      %p468 = scmp.eq.s32.totalorder %s89, 1
      %p469 = por %p467, %p468
      %p470 = scmp.ne.s32.totalorder %s461, %s462
      %p471 = scmp.eq.s32.totalorder %s89, 0
      %p472 = por %p470, %p471
      %p473 = scmp.ne.s32.totalorder %s461, %s462
      %p474 = scmp.eq.s32.totalorder %s90, 1
      %p475 = por %p473, %p474
      %p477 = scmp.ne.s32.totalorder %s462, %s476
      %p478 = scmp.eq.s32.totalorder %s90, 0
      %p479 = por %p477, %p478
      %s481 = sadd.s32 %s480, 1
      %p484 = scmp.eq.s32.totalorder %s84, 1
      %p485 = scmp.ne.s32.totalorder %s480, %s482
      %p486 = scmp.eq.s32.totalorder %s84, 0
      %p487 = por %p485, %p486
      %p488 = scmp.ne.s32.totalorder %s480, %s482
      %p489 = scmp.eq.s32.totalorder %s89, 1
      %p490 = por %p488, %p489
      %p491 = scmp.ne.s32.totalorder %s482, %s483
      %p492 = scmp.eq.s32.totalorder %s89, 0
      %p493 = por %p491, %p492
      %p494 = scmp.ne.s32.totalorder %s482, %s483
      %p495 = scmp.eq.s32.totalorder %s90, 1
      %p496 = por %p494, %p495
      %p498 = scmp.ne.s32.totalorder %s483, %s497
      %p499 = scmp.eq.s32.totalorder %s90, 0
      %p500 = por %p498, %p499
      %s502 = sadd.s32 %s501, 1
      %p505 = scmp.eq.s32.totalorder %s84, 1
      %p506 = scmp.ne.s32.totalorder %s501, %s503
      %p507 = scmp.eq.s32.totalorder %s84, 0
      %p508 = por %p506, %p507
      %p509 = scmp.ne.s32.totalorder %s501, %s503
      %p510 = scmp.eq.s32.totalorder %s89, 1
      %p511 = por %p509, %p510
      %p512 = scmp.ne.s32.totalorder %s503, %s504
      %p513 = scmp.eq.s32.totalorder %s89, 0
      %p514 = por %p512, %p513
      %p515 = scmp.ne.s32.totalorder %s503, %s504
      %p516 = scmp.eq.s32.totalorder %s90, 1
      %p517 = por %p515, %p516
      %p519 = scmp.ne.s32.totalorder %s504, %s518
      %p520 = scmp.eq.s32.totalorder %s90, 0
      %p521 = por %p519, %p520
      %s523 = sadd.s32 %s522, 1
      %p526 = scmp.eq.s32.totalorder %s84, 1
      %p527 = scmp.ne.s32.totalorder %s522, %s524
      %p528 = scmp.eq.s32.totalorder %s84, 0
      %p529 = por %p527, %p528
      %p530 = scmp.ne.s32.totalorder %s522, %s524
      %p531 = scmp.eq.s32.totalorder %s89, 1
      %p532 = por %p530, %p531
      %p533 = scmp.ne.s32.totalorder %s524, %s525
      %p534 = scmp.eq.s32.totalorder %s89, 0
      %p535 = por %p533, %p534
      %p536 = scmp.ne.s32.totalorder %s524, %s525
      %p537 = scmp.eq.s32.totalorder %s90, 1
      %p538 = por %p536, %p537
      %p540 = scmp.ne.s32.totalorder %s525, %s539
      %p541 = scmp.eq.s32.totalorder %s90, 0
      %p542 = por %p540, %p541
      %s544 = sadd.s32 %s543, 1
      %p547 = scmp.eq.s32.totalorder %s84, 1
      %p548 = scmp.ne.s32.totalorder %s543, %s545
      %p549 = scmp.eq.s32.totalorder %s84, 0
      %p550 = por %p548, %p549
      %p551 = scmp.ne.s32.totalorder %s543, %s545
      %p552 = scmp.eq.s32.totalorder %s89, 1
      %p553 = por %p551, %p552
      %p554 = scmp.ne.s32.totalorder %s545, %s546
      %p555 = scmp.eq.s32.totalorder %s89, 0
      %p556 = por %p554, %p555
      %p557 = scmp.ne.s32.totalorder %s545, %s546
      %p558 = scmp.eq.s32.totalorder %s90, 1
      %p559 = por %p557, %p558
      %p561 = scmp.ne.s32.totalorder %s546, %s560
      %p562 = scmp.eq.s32.totalorder %s90, 0
      %p563 = por %p561, %p562
      %s565 = sadd.s32 %s564, 1
      %p568 = scmp.eq.s32.totalorder %s84, 1
      %p569 = scmp.ne.s32.totalorder %s564, %s566
      %p570 = scmp.eq.s32.totalorder %s84, 0
      %p571 = por %p569, %p570
      %p572 = scmp.ne.s32.totalorder %s564, %s566
      %p573 = scmp.eq.s32.totalorder %s89, 1
      %p574 = por %p572, %p573
      %p575 = scmp.ne.s32.totalorder %s566, %s567
      %p576 = scmp.eq.s32.totalorder %s89, 0
      %p577 = por %p575, %p576
      %p578 = scmp.ne.s32.totalorder %s566, %s567
      %p579 = scmp.eq.s32.totalorder %s90, 1
      %p580 = por %p578, %p579
      %p582 = scmp.ne.s32.totalorder %s567, %s581
      %p583 = scmp.eq.s32.totalorder %s90, 0
      %p584 = por %p582, %p583
      %s586 = sadd.s32 %s585, 1
      %p589 = scmp.eq.s32.totalorder %s84, 1
      %p590 = scmp.ne.s32.totalorder %s585, %s587
      %p591 = scmp.eq.s32.totalorder %s84, 0
      %p592 = por %p590, %p591
      %p593 = scmp.ne.s32.totalorder %s585, %s587
      %p594 = scmp.eq.s32.totalorder %s89, 1
      %p595 = por %p593, %p594
      %p596 = scmp.ne.s32.totalorder %s587, %s588
      %p597 = scmp.eq.s32.totalorder %s89, 0
      %p598 = por %p596, %p597
      %p599 = scmp.ne.s32.totalorder %s587, %s588
      %p600 = scmp.eq.s32.totalorder %s90, 1
      %p601 = por %p599, %p600
      %p603 = scmp.ne.s32.totalorder %s588, %s602
      %p604 = scmp.eq.s32.totalorder %s90, 0
      %p605 = por %p603, %p604
      %s607 = sadd.s32 %s606, 1
      %p610 = scmp.eq.s32.totalorder %s84, 1
      %p611 = scmp.ne.s32.totalorder %s606, %s608
      %p612 = scmp.eq.s32.totalorder %s84, 0
      %p613 = por %p611, %p612
      %p614 = scmp.ne.s32.totalorder %s606, %s608
      %p615 = scmp.eq.s32.totalorder %s89, 1
      %p616 = por %p614, %p615
      %p617 = scmp.ne.s32.totalorder %s608, %s609
      %p618 = scmp.eq.s32.totalorder %s89, 0
      %p619 = por %p617, %p618
      %p620 = scmp.ne.s32.totalorder %s608, %s609
      %p621 = scmp.eq.s32.totalorder %s90, 1
      %p622 = por %p620, %p621
      %p624 = scmp.ne.s32.totalorder %s609, %s623
      %p625 = scmp.eq.s32.totalorder %s90, 0
      %p626 = por %p624, %p625
      %s628 = sadd.s32 %s627, 1
      %p631 = scmp.eq.s32.totalorder %s84, 1
      %p632 = scmp.ne.s32.totalorder %s627, %s629
      %p633 = scmp.eq.s32.totalorder %s84, 0
      %p634 = por %p632, %p633
      %p635 = scmp.ne.s32.totalorder %s627, %s629
      %p636 = scmp.eq.s32.totalorder %s89, 1
      %p637 = por %p635, %p636
      %p638 = scmp.ne.s32.totalorder %s629, %s630
      %p639 = scmp.eq.s32.totalorder %s89, 0
      %p640 = por %p638, %p639
      %p641 = scmp.ne.s32.totalorder %s629, %s630
      %p642 = scmp.eq.s32.totalorder %s90, 1
      %p643 = por %p641, %p642
      %p645 = scmp.ne.s32.totalorder %s630, %s644
      %p646 = scmp.eq.s32.totalorder %s90, 0
      %p647 = por %p645, %p646
      %s649 = sadd.s32 %s648, 1
      %p652 = scmp.eq.s32.totalorder %s84, 1
      %p653 = scmp.ne.s32.totalorder %s648, %s650
      %p654 = scmp.eq.s32.totalorder %s84, 0
      %p655 = por %p653, %p654
      %p656 = scmp.ne.s32.totalorder %s648, %s650
      %p657 = scmp.eq.s32.totalorder %s89, 1
      %p658 = por %p656, %p657
      %p659 = scmp.ne.s32.totalorder %s650, %s651
      %p660 = scmp.eq.s32.totalorder %s89, 0
      %p661 = por %p659, %p660
      %p662 = scmp.ne.s32.totalorder %s650, %s651
      %p663 = scmp.eq.s32.totalorder %s90, 1
      %p664 = por %p662, %p663
      %p666 = scmp.ne.s32.totalorder %s651, %s665
      %p667 = scmp.eq.s32.totalorder %s90, 0
      %p668 = por %p666, %p667
      %s670 = sadd.s32 %s669, 1
      %p673 = scmp.eq.s32.totalorder %s84, 1
      %p674 = scmp.ne.s32.totalorder %s669, %s671
      %p675 = scmp.eq.s32.totalorder %s84, 0
      %p676 = por %p674, %p675
      %p677 = scmp.ne.s32.totalorder %s669, %s671
      %p678 = scmp.eq.s32.totalorder %s89, 1
      %p679 = por %p677, %p678
      %p680 = scmp.ne.s32.totalorder %s671, %s672
      %p681 = scmp.eq.s32.totalorder %s89, 0
      %p682 = por %p680, %p681
      %p683 = scmp.ne.s32.totalorder %s671, %s672
      %p684 = scmp.eq.s32.totalorder %s90, 1
      %p685 = por %p683, %p684
      %p687 = scmp.ne.s32.totalorder %s672, %s686
      %p688 = scmp.eq.s32.totalorder %s90, 0
      %p689 = por %p687, %p688
      %s691 = sadd.s32 %s690, 1
      %p694 = scmp.eq.s32.totalorder %s84, 1
      %p695 = scmp.ne.s32.totalorder %s690, %s692
      %p696 = scmp.eq.s32.totalorder %s84, 0
      %p697 = por %p695, %p696
      %p698 = scmp.ne.s32.totalorder %s690, %s692
      %p699 = scmp.eq.s32.totalorder %s89, 1
      %p700 = por %p698, %p699
      %p701 = scmp.ne.s32.totalorder %s692, %s693
      %p702 = scmp.eq.s32.totalorder %s89, 0
      %p703 = por %p701, %p702
      %p704 = scmp.ne.s32.totalorder %s692, %s693
      %p705 = scmp.eq.s32.totalorder %s90, 1
      %p706 = por %p704, %p705
      %p708 = scmp.ne.s32.totalorder %s693, %s707
      %p709 = scmp.eq.s32.totalorder %s90, 0
      %p710 = por %p708, %p709
      %s712 = sadd.s32 %s711, 1
      %p715 = scmp.eq.s32.totalorder %s84, 1
      %p716 = scmp.ne.s32.totalorder %s711, %s713
      %p717 = scmp.eq.s32.totalorder %s84, 0
      %p718 = por %p716, %p717
      %p719 = scmp.ne.s32.totalorder %s711, %s713
      %p720 = scmp.eq.s32.totalorder %s89, 1
      %p721 = por %p719, %p720
      %p722 = scmp.ne.s32.totalorder %s713, %s714
      %p723 = scmp.eq.s32.totalorder %s89, 0
      %p724 = por %p722, %p723
      %p725 = scmp.ne.s32.totalorder %s713, %s714
      %p726 = scmp.eq.s32.totalorder %s90, 1
      %p727 = por %p725, %p726
      %p729 = scmp.ne.s32.totalorder %s714, %s728
      %p730 = scmp.eq.s32.totalorder %s90, 0
      %p731 = por %p729, %p730
      %s733 = sadd.s32 %s732, 1
      %p736 = scmp.eq.s32.totalorder %s84, 1
      %p737 = scmp.ne.s32.totalorder %s732, %s734
      %p738 = scmp.eq.s32.totalorder %s84, 0
      %p739 = por %p737, %p738
      %p740 = scmp.ne.s32.totalorder %s732, %s734
      %p741 = scmp.eq.s32.totalorder %s89, 1
      %p742 = por %p740, %p741
      %p743 = scmp.ne.s32.totalorder %s734, %s735
      %p744 = scmp.eq.s32.totalorder %s89, 0
      %p745 = por %p743, %p744
      %p746 = scmp.ne.s32.totalorder %s734, %s735
      %p747 = scmp.eq.s32.totalorder %s90, 1
      %p748 = por %p746, %p747
      %p750 = scmp.ne.s32.totalorder %s735, %s749
      %p751 = scmp.eq.s32.totalorder %s90, 0
      %p752 = por %p750, %p751
      %s753 = ssub.s32 %s84, %s91
      %p754 = scmp.eq.s32.totalorder %s753, 0
      %s756 = sadd.s32 %s755, 1
      %s757 = scalar_select %p754, %s755, %s756
      %p760 = pneg %p754
      %p761 = scmp.eq.s32.totalorder %s84, 1
      %p762 = por %p760, %p761
      %p763 = scmp.ne.s32.totalorder %s755, %s758
      %p764 = scmp.eq.s32.totalorder %s84, 0
      %p765 = por %p763, %p764
      %p766 = scmp.ne.s32.totalorder %s755, %s758
      %p767 = scmp.eq.s32.totalorder %s89, 1
      %p768 = por %p766, %p767
      %p769 = scmp.ne.s32.totalorder %s758, %s759
      %p770 = scmp.eq.s32.totalorder %s89, 0
      %p771 = por %p769, %p770
      %p772 = scmp.ne.s32.totalorder %s758, %s759
      %p773 = scmp.eq.s32.totalorder %s90, 1
      %p774 = por %p772, %p773
      %p776 = scmp.ne.s32.totalorder %s759, %s775
      %p777 = scmp.eq.s32.totalorder %s90, 0
      %p778 = por %p776, %p777
      %p779 = scmp.le.s32.totalorder 1, %s84
      %p780 = scmp.lt.s32.totalorder %s84, 3
      %p781 = pnand %p779, %p780
      %p782 = pneg %p781
      // Predicated region
      $region9: #{tpu_custom_call.1} parent=5 // pred_check
        _
      $region10: #{tpu_custom_call.1} parent=5 // pred_check_branch
        %784 = sbr.rel (%p781) target = $region12
      $region11: #{tpu_custom_call.1} parent=5 // pred_region
        %s785 = ssub.s32 %s84, 1
        // Predicated region
        $region13: #{tpu_custom_call.1} parent=11 // pred_check
          %p786 = pneg %p157
        $region14: #{tpu_custom_call.1} parent=11 // pred_check_branch
          %788 = sbr.rel (%p786) target = $region16
        $region15: #{tpu_custom_call.1} parent=11 // pred_region
          %s790 = ssub.s32 16, 16
          %791 = vsyncadd [#allocation5], %s790
          %s793 = sshll.u32 [#allocation4], 4
          %s794 = int_to_ptr.vmem [resolvable:$true] %s793
          %796 = dma.hbm_to_vmem [thread:$0]  %s5, 16, %s794, [#allocation5]
        $region16: #{tpu_custom_call.1} parent=11 // pred_fallthru
          _
        // Predicated region
        $region17: #{tpu_custom_call.1} parent=11 // pred_check
          %p797 = pneg %p178
        $region18: #{tpu_custom_call.1} parent=11 // pred_check_branch
          %799 = sbr.rel (%p797) target = $region20
        $region19: #{tpu_custom_call.1} parent=11 // pred_region
          %s801 = ssub.s32 16, 16
          %802 = vsyncadd [#allocation9], %s801
          %s804 = sshll.u32 [#allocation8], 4
          %s805 = int_to_ptr.vmem [resolvable:$true] %s804
          %807 = dma.hbm_to_vmem [thread:$0]  %s7, 16, %s805, [#allocation9]
        $region20: #{tpu_custom_call.1} parent=11 // pred_fallthru
          _
        // Predicated region
        $region21: #{tpu_custom_call.1} parent=11 // pred_check
          %p808 = pneg %p199
        $region22: #{tpu_custom_call.1} parent=11 // pred_check_branch
          %810 = sbr.rel (%p808) target = $region24
        $region23: #{tpu_custom_call.1} parent=11 // pred_region
          %s812 = ssub.s32 128, 128
          %813 = vsyncadd [#allocation9], %s812
          %s815 = sshll.u32 [#allocation10], 4
          %s816 = int_to_ptr.vmem [resolvable:$true] %s815
          %818 = dma.hbm_to_vmem [thread:$0]  %s9, 128, %s816, [#allocation9]
        $region24: #{tpu_custom_call.1} parent=11 // pred_fallthru
          _
        // Predicated region
        $region25: #{tpu_custom_call.1} parent=11 // pred_check
          %p819 = pneg %p220
        $region26: #{tpu_custom_call.1} parent=11 // pred_check_branch
          %821 = sbr.rel (%p819) target = $region28
        $region27: #{tpu_custom_call.1} parent=11 // pred_region
          %s823 = ssub.s32 16, 16
          %824 = vsyncadd [#allocation12], %s823
          %s826 = sshll.u32 [#allocation11], 4
          %s827 = int_to_ptr.vmem [resolvable:$true] %s826
          %829 = dma.hbm_to_vmem [thread:$0]  %s11, 16, %s827, [#allocation12]
        $region28: #{tpu_custom_call.1} parent=11 // pred_fallthru
          _
        // Predicated region
        $region29: #{tpu_custom_call.1} parent=11 // pred_check
          %p830 = pneg %p241
        $region30: #{tpu_custom_call.1} parent=11 // pred_check_branch
          %832 = sbr.rel (%p830) target = $region32
        $region31: #{tpu_custom_call.1} parent=11 // pred_region
          _
        $region32: #{tpu_custom_call.1} parent=11 // pred_fallthru
          _
        // Predicated region
        $region33: #{tpu_custom_call.1} parent=11 // pred_check
          %p833 = pneg %p262
        $region34: #{tpu_custom_call.1} parent=11 // pred_check_branch
          %835 = sbr.rel (%p833) target = $region36
        $region35: #{tpu_custom_call.1} parent=11 // pred_region
          %s837 = ssub.s32 16, 16
          %838 = vsyncadd [#allocation12], %s837
          %s840 = sshll.u32 [#allocation13], 4
          %s841 = int_to_ptr.vmem [resolvable:$true] %s840
          %843 = dma.hbm_to_vmem [thread:$0]  %s15, 16, %s841, [#allocation12]
        $region36: #{tpu_custom_call.1} parent=11 // pred_fallthru
          _
        // Predicated region
        $region37: #{tpu_custom_call.1} parent=11 // pred_check
          %p844 = pneg %p283
        $region38: #{tpu_custom_call.1} parent=11 // pred_check_branch
          %846 = sbr.rel (%p844) target = $region40
        $region39: #{tpu_custom_call.1} parent=11 // pred_region
          %s848 = ssub.s32 128, 128
          %849 = vsyncadd [#allocation15], %s848
          %s851 = sshll.u32 [#allocation14], 4
          %s852 = int_to_ptr.vmem [resolvable:$true] %s851
          %854 = dma.hbm_to_vmem [thread:$0]  %s17, 128, %s852, [#allocation15]
        $region40: #{tpu_custom_call.1} parent=11 // pred_fallthru
          _
        // Predicated region
        $region41: #{tpu_custom_call.1} parent=11 // pred_check
          %p855 = pneg %p304
        $region42: #{tpu_custom_call.1} parent=11 // pred_check_branch
          %857 = sbr.rel (%p855) target = $region44
        $region43: #{tpu_custom_call.1} parent=11 // pred_region
          %s859 = ssub.s32 16, 16
          %860 = vsyncadd [#allocation7], %s859
          %863 = dma.hbm_to_smem %s19, 16, [#allocation16], [#allocation7]
        $region44: #{tpu_custom_call.1} parent=11 // pred_fallthru
          _
        // Predicated region
        $region45: #{tpu_custom_call.1} parent=11 // pred_check
          %p864 = pneg %p325
        $region46: #{tpu_custom_call.1} parent=11 // pred_check_branch
          %866 = sbr.rel (%p864) target = $region48
        $region47: #{tpu_custom_call.1} parent=11 // pred_region
          %s868 = ssub.s32 16, 16
          %869 = vsyncadd [#allocation18], %s868
          %872 = dma.hbm_to_smem %s21, 16, [#allocation17], [#allocation18]
        $region48: #{tpu_custom_call.1} parent=11 // pred_fallthru
          _
        // Predicated region
        $region49: #{tpu_custom_call.1} parent=11 // pred_check
          %p873 = pneg %p346
        $region50: #{tpu_custom_call.1} parent=11 // pred_check_branch
          %875 = sbr.rel (%p873) target = $region52
        $region51: #{tpu_custom_call.1} parent=11 // pred_region
          %s877 = ssub.s32 512, 512
          %878 = vsyncadd [#allocation15], %s877
          %s879 = sshll.u32 [#allocation19], 4
          %s880 = int_to_ptr.vmem [resolvable:$true] %s879
          %885 = dma.hbm_to_vmem [thread:$0]  %s23, 512, %s880, [#allocation15], 128, 128, 8
        $region52: #{tpu_custom_call.1} parent=11 // pred_fallthru
          _
        // Predicated region
        $region53: #{tpu_custom_call.1} parent=11 // pred_check
          %p886 = pneg %p367
        $region54: #{tpu_custom_call.1} parent=11 // pred_check_branch
          %888 = sbr.rel (%p886) target = $region56
        $region55: #{tpu_custom_call.1} parent=11 // pred_region
          %s890 = ssub.s32 512, 512
          %891 = vsyncadd [#allocation21], %s890
          %s892 = sshll.u32 [#allocation20], 4
          %s893 = int_to_ptr.vmem [resolvable:$true] %s892
          %898 = dma.hbm_to_vmem [thread:$0]  %s25, 512, %s893, [#allocation21], 128, 128, 8
        $region56: #{tpu_custom_call.1} parent=11 // pred_fallthru
          _
        // Predicated region
        $region57: #{tpu_custom_call.1} parent=11 // pred_check
          %p899 = pneg %p388
        $region58: #{tpu_custom_call.1} parent=11 // pred_check_branch
          %901 = sbr.rel (%p899) target = $region60
        $region59: #{tpu_custom_call.1} parent=11 // pred_region
          _
        $region60: #{tpu_custom_call.1} parent=11 // pred_fallthru
          _
        // Predicated region
        $region61: #{tpu_custom_call.1} parent=11 // pred_check
          %p902 = pneg %p409
        $region62: #{tpu_custom_call.1} parent=11 // pred_check_branch
          %904 = sbr.rel (%p902) target = $region64
        $region63: #{tpu_custom_call.1} parent=11 // pred_region
          _
        $region64: #{tpu_custom_call.1} parent=11 // pred_fallthru
          _
        // Predicated region
        $region65: #{tpu_custom_call.1} parent=11 // pred_check
          %p905 = pneg %p430
        $region66: #{tpu_custom_call.1} parent=11 // pred_check_branch
          %907 = sbr.rel (%p905) target = $region68
        $region67: #{tpu_custom_call.1} parent=11 // pred_region
          %s909 = ssub.s32 16, 16
          %910 = vsyncadd [#allocation18], %s909
          %913 = dma.hbm_to_smem %s31, 16, [#allocation22], [#allocation18]
        $region68: #{tpu_custom_call.1} parent=11 // pred_fallthru
          _
        // Predicated region
        $region69: #{tpu_custom_call.1} parent=11 // pred_check
          %p914 = pneg %p451
        $region70: #{tpu_custom_call.1} parent=11 // pred_check_branch
          %916 = sbr.rel (%p914) target = $region72
        $region71: #{tpu_custom_call.1} parent=11 // pred_region
          %s918 = ssub.s32 16, 16
          %919 = vsyncadd [#allocation24], %s918
          %922 = dma.hbm_to_smem %s33, 16, [#allocation23], [#allocation24]
        $region72: #{tpu_custom_call.1} parent=11 // pred_fallthru
          _
        // Predicated region
        $region73: #{tpu_custom_call.1} parent=11 // pred_check
          %p923 = pneg %p472
        $region74: #{tpu_custom_call.1} parent=11 // pred_check_branch
          %925 = sbr.rel (%p923) target = $region76
        $region75: #{tpu_custom_call.1} parent=11 // pred_region
          %s927 = ssub.s32 384, 384
          %928 = vsyncadd [#allocation21], %s927
          %s929 = sshll.u32 [#allocation25], 4
          %s930 = int_to_ptr.vmem [resolvable:$true] %s929
          %935 = dma.hbm_to_vmem [thread:$0]  %s35, 384, %s930, [#allocation21], 128, 128, 8
        $region76: #{tpu_custom_call.1} parent=11 // pred_fallthru
          _
        // Predicated region
        $region77: #{tpu_custom_call.1} parent=11 // pred_check
          %p936 = pneg %p493
        $region78: #{tpu_custom_call.1} parent=11 // pred_check_branch
          %938 = sbr.rel (%p936) target = $region80
        $region79: #{tpu_custom_call.1} parent=11 // pred_region
          _
        $region80: #{tpu_custom_call.1} parent=11 // pred_fallthru
          _
        // Predicated region
        $region81: #{tpu_custom_call.1} parent=11 // pred_check
          %p939 = pneg %p514
        $region82: #{tpu_custom_call.1} parent=11 // pred_check_branch
          %941 = sbr.rel (%p939) target = $region84
        $region83: #{tpu_custom_call.1} parent=11 // pred_region
          _
        $region84: #{tpu_custom_call.1} parent=11 // pred_fallthru
          _
        // Predicated region
        $region85: #{tpu_custom_call.1} parent=11 // pred_check
          %p942 = pneg %p535
        $region86: #{tpu_custom_call.1} parent=11 // pred_check_branch
          %944 = sbr.rel (%p942) target = $region88
        $region87: #{tpu_custom_call.1} parent=11 // pred_region
          _
        $region88: #{tpu_custom_call.1} parent=11 // pred_fallthru
          _
        // Predicated region
        $region89: #{tpu_custom_call.1} parent=11 // pred_check
          %p945 = pneg %p556
        $region90: #{tpu_custom_call.1} parent=11 // pred_check_branch
          %947 = sbr.rel (%p945) target = $region92
        $region91: #{tpu_custom_call.1} parent=11 // pred_region
          _
        $region92: #{tpu_custom_call.1} parent=11 // pred_fallthru
          _
        // Predicated region
        $region93: #{tpu_custom_call.1} parent=11 // pred_check
          %p948 = pneg %p577
        $region94: #{tpu_custom_call.1} parent=11 // pred_check_branch
          %950 = sbr.rel (%p948) target = $region96
        $region95: #{tpu_custom_call.1} parent=11 // pred_region
          %s952 = ssub.s32 16, 16
          %953 = vsyncadd [#allocation27], %s952
          %s955 = sshll.u32 [#allocation26], 4
          %s956 = int_to_ptr.vmem [resolvable:$true] %s955
          %958 = dma.hbm_to_vmem [thread:$0]  %s45, 16, %s956, [#allocation27]
        $region96: #{tpu_custom_call.1} parent=11 // pred_fallthru
          _
        // Predicated region
        $region97: #{tpu_custom_call.1} parent=11 // pred_check
          %p959 = pneg %p598
        $region98: #{tpu_custom_call.1} parent=11 // pred_check_branch
          %961 = sbr.rel (%p959) target = $region100
        $region99: #{tpu_custom_call.1} parent=11 // pred_region
          %s963 = ssub.s32 512, 512
          %964 = vsyncadd [#allocation27], %s963
          %s965 = sshll.u32 [#allocation28], 4
          %s966 = int_to_ptr.vmem [resolvable:$true] %s965
          %971 = dma.hbm_to_vmem [thread:$0]  %s47, 512, %s966, [#allocation27], 128, 128, 8
        $region100: #{tpu_custom_call.1} parent=11 // pred_fallthru
          _
        // Predicated region
        $region101: #{tpu_custom_call.1} parent=11 // pred_check
          %p972 = pneg %p619
        $region102: #{tpu_custom_call.1} parent=11 // pred_check_branch
          %974 = sbr.rel (%p972) target = $region104
        $region103: #{tpu_custom_call.1} parent=11 // pred_region
          %s976 = ssub.s32 16, 16
          %977 = vsyncadd [#allocation30], %s976
          %s979 = sshll.u32 [#allocation29], 4
          %s980 = int_to_ptr.vmem [resolvable:$true] %s979
          %982 = dma.hbm_to_vmem [thread:$0]  %s49, 16, %s980, [#allocation30]
        $region104: #{tpu_custom_call.1} parent=11 // pred_fallthru
          _
        // Predicated region
        $region105: #{tpu_custom_call.1} parent=11 // pred_check
          %p983 = pneg %p640
        $region106: #{tpu_custom_call.1} parent=11 // pred_check_branch
          %985 = sbr.rel (%p983) target = $region108
        $region107: #{tpu_custom_call.1} parent=11 // pred_region
          _
        $region108: #{tpu_custom_call.1} parent=11 // pred_fallthru
          _
        // Predicated region
        $region109: #{tpu_custom_call.1} parent=11 // pred_check
          %p986 = pneg %p661
        $region110: #{tpu_custom_call.1} parent=11 // pred_check_branch
          %988 = sbr.rel (%p986) target = $region112
        $region111: #{tpu_custom_call.1} parent=11 // pred_region
          _
        $region112: #{tpu_custom_call.1} parent=11 // pred_fallthru
          _
        // Predicated region
        $region113: #{tpu_custom_call.1} parent=11 // pred_check
          %p989 = pneg %p682
        $region114: #{tpu_custom_call.1} parent=11 // pred_check_branch
          %991 = sbr.rel (%p989) target = $region116
        $region115: #{tpu_custom_call.1} parent=11 // pred_region
          _
        $region116: #{tpu_custom_call.1} parent=11 // pred_fallthru
          _
        // Predicated region
        $region117: #{tpu_custom_call.1} parent=11 // pred_check
          %p992 = pneg %p703
        $region118: #{tpu_custom_call.1} parent=11 // pred_check_branch
          %994 = sbr.rel (%p992) target = $region120
        $region119: #{tpu_custom_call.1} parent=11 // pred_region
          _
        $region120: #{tpu_custom_call.1} parent=11 // pred_fallthru
          _
        // Predicated region
        $region121: #{tpu_custom_call.1} parent=11 // pred_check
          %p995 = pneg %p724
        $region122: #{tpu_custom_call.1} parent=11 // pred_check_branch
          %997 = sbr.rel (%p995) target = $region124
        $region123: #{tpu_custom_call.1} parent=11 // pred_region
          %s999 = ssub.s32 512, 512
          %1000 = vsyncadd [#allocation30], %s999
          %s1001 = sshll.u32 [#allocation31], 4
          %s1002 = int_to_ptr.vmem [resolvable:$true] %s1001
          %1007 = dma.hbm_to_vmem [thread:$0]  %s59, 512, %s1002, [#allocation30], 128, 128, 8
        $region124: #{tpu_custom_call.1} parent=11 // pred_fallthru
          _
        // Predicated region
        $region125: #{tpu_custom_call.1} parent=11 // pred_check
          %p1008 = pneg %p745
        $region126: #{tpu_custom_call.1} parent=11 // pred_check_branch
          %1010 = sbr.rel (%p1008) target = $region128
        $region127: #{tpu_custom_call.1} parent=11 // pred_region
          _
        $region128: #{tpu_custom_call.1} parent=11 // pred_fallthru
          _
      $region12: #{tpu_custom_call.1} parent=5 // pred_fallthru
        _
      %p1011 = scmp.lt.s32.totalorder %s84, 2
      // Predicated region
      $region129: #{tpu_custom_call.1} parent=5 // pred_check
        %p1012 = pneg %p1011
      $region130: #{tpu_custom_call.1} parent=5 // pred_check_branch
        %1014 = sbr.rel (%p1012) target = $region132
      $region131: #{tpu_custom_call.1} parent=5 // pred_region
        // Predicated region
        $region133: #{tpu_custom_call.1} parent=131 // pred_check
          %p1015 = pneg %p104
        $region134: #{tpu_custom_call.1} parent=131 // pred_check_branch
          %1017 = sbr.rel (%p1015) target = $region136
        $region135: #{tpu_custom_call.1} parent=131 // pred_region
          %p1018 = scmp.lt.s32.totalorder %s84, 1
          %s1019 = scalar_select %p1018, %s84, 1
          %s1020 = smul.addr %s1019, 8
          %s1021 = scalar_lea.vmem %s1, %s1020
        $region136: #{tpu_custom_call.1} parent=131 // pred_fallthru
          _
        // Predicated region
        $region137: #{tpu_custom_call.1} parent=131 // pred_check
          %p1022 = pneg %p130
        $region138: #{tpu_custom_call.1} parent=131 // pred_check_branch
          %1024 = sbr.rel (%p1022) target = $region140
        $region139: #{tpu_custom_call.1} parent=131 // pred_region
          %p1025 = scmp.lt.s32.totalorder %s84, 1
          %s1026 = scalar_select %p1025, %s84, 1
          %s1027 = smul.addr %s1026, 3
          %s1028 = smul.addr %s1027, 8
          %s1029 = scalar_lea.vmem %s3, %s1028
        $region140: #{tpu_custom_call.1} parent=131 // pred_fallthru
          _
      $region132: #{tpu_custom_call.1} parent=5 // pred_fallthru
        _
      %p1030 = scmp.le.s32.totalorder 1, %s84
      %p1031 = scmp.lt.s32.totalorder %s84, 3
      %p1032 = pnand %p1030, %p1031
      %p1033 = pneg %p1032
      // Predicated region
      $region141: #{tpu_custom_call.1} parent=5 // pred_check
        _
      $region142: #{tpu_custom_call.1} parent=5 // pred_check_branch
        %1035 = sbr.rel (%p1032) target = $region144
      $region143: #{tpu_custom_call.1} parent=5 // pred_region
        %s1036 = ssub.s32 %s84, 1
        // Predicated region
        $region145: #{tpu_custom_call.1} parent=143 // pred_check
          %p1037 = pneg %p157
        $region146: #{tpu_custom_call.1} parent=143 // pred_check_branch
          %1039 = sbr.rel (%p1037) target = $region148
        $region147: #{tpu_custom_call.1} parent=143 // pred_region
          %1040 = dma.done [#allocation5], 16
        $region148: #{tpu_custom_call.1} parent=143 // pred_fallthru
          _
        // Predicated region
        $region149: #{tpu_custom_call.1} parent=143 // pred_check
          %p1041 = pneg %p178
        $region150: #{tpu_custom_call.1} parent=143 // pred_check_branch
          %1043 = sbr.rel (%p1041) target = $region152
        $region151: #{tpu_custom_call.1} parent=143 // pred_region
          %1044 = dma.done [#allocation9], 16
        $region152: #{tpu_custom_call.1} parent=143 // pred_fallthru
          _
        // Predicated region
        $region153: #{tpu_custom_call.1} parent=143 // pred_check
          %p1045 = pneg %p199
        $region154: #{tpu_custom_call.1} parent=143 // pred_check_branch
          %1047 = sbr.rel (%p1045) target = $region156
        $region155: #{tpu_custom_call.1} parent=143 // pred_region
          %1048 = dma.done [#allocation9], 128
        $region156: #{tpu_custom_call.1} parent=143 // pred_fallthru
          _
        // Predicated region
        $region157: #{tpu_custom_call.1} parent=143 // pred_check
          %p1049 = pneg %p220
        $region158: #{tpu_custom_call.1} parent=143 // pred_check_branch
          %1051 = sbr.rel (%p1049) target = $region160
        $region159: #{tpu_custom_call.1} parent=143 // pred_region
          %1052 = dma.done [#allocation12], 16
        $region160: #{tpu_custom_call.1} parent=143 // pred_fallthru
          _
        // Predicated region
        $region161: #{tpu_custom_call.1} parent=143 // pred_check
          %p1053 = pneg %p262
        $region162: #{tpu_custom_call.1} parent=143 // pred_check_branch
          %1055 = sbr.rel (%p1053) target = $region164
        $region163: #{tpu_custom_call.1} parent=143 // pred_region
          %1056 = dma.done [#allocation12], 16
        $region164: #{tpu_custom_call.1} parent=143 // pred_fallthru
          _
        // Predicated region
        $region165: #{tpu_custom_call.1} parent=143 // pred_check
          %p1057 = pneg %p283
        $region166: #{tpu_custom_call.1} parent=143 // pred_check_branch
          %1059 = sbr.rel (%p1057) target = $region168
        $region167: #{tpu_custom_call.1} parent=143 // pred_region
          %1060 = dma.done [#allocation15], 128
        $region168: #{tpu_custom_call.1} parent=143 // pred_fallthru
          _
        // Predicated region
        $region169: #{tpu_custom_call.1} parent=143 // pred_check
          %p1061 = pneg %p304
        $region170: #{tpu_custom_call.1} parent=143 // pred_check_branch
          %1063 = sbr.rel (%p1061) target = $region172
        $region171: #{tpu_custom_call.1} parent=143 // pred_region
          %1064 = dma.done [#allocation7], 16
        $region172: #{tpu_custom_call.1} parent=143 // pred_fallthru
          _
        // Predicated region
        $region173: #{tpu_custom_call.1} parent=143 // pred_check
          %p1065 = pneg %p325
        $region174: #{tpu_custom_call.1} parent=143 // pred_check_branch
          %1067 = sbr.rel (%p1065) target = $region176
        $region175: #{tpu_custom_call.1} parent=143 // pred_region
          %1068 = dma.done [#allocation18], 16
        $region176: #{tpu_custom_call.1} parent=143 // pred_fallthru
          _
        // Predicated region
        $region177: #{tpu_custom_call.1} parent=143 // pred_check
          %p1069 = pneg %p346
        $region178: #{tpu_custom_call.1} parent=143 // pred_check_branch
          %1071 = sbr.rel (%p1069) target = $region180
        $region179: #{tpu_custom_call.1} parent=143 // pred_region
          %1072 = dma.done [#allocation15], 512
        $region180: #{tpu_custom_call.1} parent=143 // pred_fallthru
          _
        // Predicated region
        $region181: #{tpu_custom_call.1} parent=143 // pred_check
          %p1073 = pneg %p367
        $region182: #{tpu_custom_call.1} parent=143 // pred_check_branch
          %1075 = sbr.rel (%p1073) target = $region184
        $region183: #{tpu_custom_call.1} parent=143 // pred_region
          %1076 = dma.done [#allocation21], 512
        $region184: #{tpu_custom_call.1} parent=143 // pred_fallthru
          _
        // Predicated region
        $region185: #{tpu_custom_call.1} parent=143 // pred_check
          %p1077 = pneg %p430
        $region186: #{tpu_custom_call.1} parent=143 // pred_check_branch
          %1079 = sbr.rel (%p1077) target = $region188
        $region187: #{tpu_custom_call.1} parent=143 // pred_region
          %1080 = dma.done [#allocation18], 16
        $region188: #{tpu_custom_call.1} parent=143 // pred_fallthru
          _
        // Predicated region
        $region189: #{tpu_custom_call.1} parent=143 // pred_check
          %p1081 = pneg %p451
        $region190: #{tpu_custom_call.1} parent=143 // pred_check_branch
          %1083 = sbr.rel (%p1081) target = $region192
        $region191: #{tpu_custom_call.1} parent=143 // pred_region
          %1084 = dma.done [#allocation24], 16
        $region192: #{tpu_custom_call.1} parent=143 // pred_fallthru
          _
        // Predicated region
        $region193: #{tpu_custom_call.1} parent=143 // pred_check
          %p1085 = pneg %p472
        $region194: #{tpu_custom_call.1} parent=143 // pred_check_branch
          %1087 = sbr.rel (%p1085) target = $region196
        $region195: #{tpu_custom_call.1} parent=143 // pred_region
          %1088 = dma.done [#allocation21], 384
        $region196: #{tpu_custom_call.1} parent=143 // pred_fallthru
          _
        // Predicated region
        $region197: #{tpu_custom_call.1} parent=143 // pred_check
          %p1089 = pneg %p577
        $region198: #{tpu_custom_call.1} parent=143 // pred_check_branch
          %1091 = sbr.rel (%p1089) target = $region200
        $region199: #{tpu_custom_call.1} parent=143 // pred_region
          %1092 = dma.done [#allocation27], 16
        $region200: #{tpu_custom_call.1} parent=143 // pred_fallthru
          _
        // Predicated region
        $region201: #{tpu_custom_call.1} parent=143 // pred_check
          %p1093 = pneg %p598
        $region202: #{tpu_custom_call.1} parent=143 // pred_check_branch
          %1095 = sbr.rel (%p1093) target = $region204
        $region203: #{tpu_custom_call.1} parent=143 // pred_region
          %1096 = dma.done [#allocation27], 512
        $region204: #{tpu_custom_call.1} parent=143 // pred_fallthru
          _
        // Predicated region
        $region205: #{tpu_custom_call.1} parent=143 // pred_check
          %p1097 = pneg %p619
        $region206: #{tpu_custom_call.1} parent=143 // pred_check_branch
          %1099 = sbr.rel (%p1097) target = $region208
        $region207: #{tpu_custom_call.1} parent=143 // pred_region
          %1100 = dma.done [#allocation30], 16
        $region208: #{tpu_custom_call.1} parent=143 // pred_fallthru
          _
        // Predicated region
        $region209: #{tpu_custom_call.1} parent=143 // pred_check
          %p1101 = pneg %p724
        $region210: #{tpu_custom_call.1} parent=143 // pred_check_branch
          %1103 = sbr.rel (%p1101) target = $region212
        $region211: #{tpu_custom_call.1} parent=143 // pred_region
          %1104 = dma.done [#allocation30], 512
        $region212: #{tpu_custom_call.1} parent=143 // pred_fallthru
          _
        %1105 = sfence
        %p1106 = scmp.lt.s32.totalorder %s89, 1
        %s1107 = scalar_select %p1106, %s89, 1
        %s1108 = smul.addr %s1107, 8
        %s1109 = scalar_lea.vmem %s1, %s1108
        %p1110 = pneg %p110
        %p1111 = pneg %p107
        %p1112 = scmp.lt.s32.totalorder %s89, 1
        %s1113 = scalar_select %p1112, %s89, 1
        %s1114 = smul.addr %s1113, 3
        %s1115 = smul.addr %s1114, 8
        %s1116 = scalar_lea.vmem %s3, %s1115
        %p1117 = pneg %p136
        %p1118 = pneg %p133
        %p1119 = pneg %p157
        %p1120 = pneg %p154
        %p1121 = pneg %p178
        %p1122 = pneg %p175
        %p1123 = pneg %p199
        %p1124 = pneg %p196
        %p1125 = pneg %p220
        %p1126 = pneg %p217
        %p1127 = pneg %p241
        %p1128 = pneg %p238
        %p1129 = pneg %p262
        %p1130 = pneg %p259
        %p1131 = pneg %p283
        %p1132 = pneg %p280
        %p1133 = pneg %p304
        %p1134 = pneg %p301
        %p1135 = pneg %p325
        %p1136 = pneg %p322
        %p1137 = pneg %p346
        %p1138 = pneg %p343
        %p1139 = pneg %p367
        %p1140 = pneg %p364
        %p1141 = pneg %p388
        %p1142 = pneg %p385
        %p1143 = pneg %p409
        %p1144 = pneg %p406
        %p1145 = pneg %p430
        %p1146 = pneg %p427
        %p1147 = pneg %p451
        %p1148 = pneg %p448
        %p1149 = pneg %p472
        %p1150 = pneg %p469
        %p1151 = pneg %p493
        %p1152 = pneg %p490
        %p1153 = pneg %p514
        %p1154 = pneg %p511
        %p1155 = pneg %p535
        %p1156 = pneg %p532
        %p1157 = pneg %p556
        %p1158 = pneg %p553
        %p1159 = pneg %p577
        %p1160 = pneg %p574
        %p1161 = pneg %p598
        %p1162 = pneg %p595
        %p1163 = pneg %p619
        %p1164 = pneg %p616
        %p1165 = pneg %p640
        %p1166 = pneg %p637
        %p1167 = pneg %p661
        %p1168 = pneg %p658
        %p1169 = pneg %p682
        %p1170 = pneg %p679
        %p1171 = pneg %p703
        %p1172 = pneg %p700
        %p1173 = pneg %p724
        %p1174 = pneg %p721
        %p1175 = pneg %p745
        %p1176 = pneg %p742
        %p1177 = pneg %p771
        %p1178 = pneg %p768
        %s1179 = sand.u32 %s758, 1
        %s1180 = scalar_lea.sflag [#allocation6], %s1179
        %s1181 = sand.u32 %s758, 1
        %s1182 = smul.addr %s1181, 8
        %s1183 = scalar_lea.vmem [#allocation32], %s1182
        %p1184 = scmp.lt.s32.totalorder %s89, 1
        %s1185 = scalar_select %p1184, %s89, 1
        %s1186 = smul.addr %s1185, 8
        %s1187 = scalar_lea.vmem %s1, %s1186
        %p1188 = scmp.lt.s32.totalorder %s89, 1
        %s1189 = scalar_select %p1188, %s89, 1
        %s1190 = smul.addr %s1189, 3
        %s1191 = smul.addr %s1190, 8
        %s1192 = scalar_lea.vmem %s3, %s1191
        %v1193 = vld [vmem:[%s1187] sm:$0xff]
        %v1194 = vld [vmem:[#allocation4] sm:$0x1]
        %v1195 = vld [vmem:[#allocation8] sm:$0x1]
        %vm1196 = vcmask 48128
        %v1197 = vsel %vm1196, %v1193, 0.0
        %1198 = vadd.xlane.f32.xlu0 %v1197
        %v1199 = vpop.xlane.xlu0 %1198
        %v1200 = vrcp.pop 6.0
        %v1201 = vmul.f32 %v1199, %v1200
        %v1202 = vsub.f32 %v1193, %v1201
        %v1203 = vmul.f32 %v1202, %v1202
        %v1204 = vsel %vm1196, %v1203, 0.0
        %1205 = vadd.xlane.f32.xlu0 %v1204
        %v1206 = vpop.xlane.xlu0 %1205
        %v1207 = vmul.f32 %v1206, %v1200
        %v1208 = vadd.f32 %v1207, 1e-05
        %v1209 = vrsqrt.pop %v1208
        %v1210 = vmul.f32 %v1202, %v1209
        %v1212 = vlaneseq
        %v1213 = vshrl.u32 %v1212, 7
        %v1214 = vsub.s32 0, %v1213
        %v1215 = vrot.slane %v1194, %v1214
        %v1217 = vmul.f32 %v1210, %v1215
        %v1219 = vlaneseq
        %v1220 = vshrl.u32 %v1219, 7
        %v1221 = vsub.s32 0, %v1220
        %v1222 = vrot.slane %v1195, %v1221
        %v1224 = vadd.f32 %v1217, %v1222
        %v1225 = vld [vmem:[#allocation10] sm:$0x3f]
        %v1226 = vld [vmem:[#allocation11] sm:$0x1]
        %v1228 = vlaneseq
        %v1229 = vshrl.u32 %v1228, 7
        %v1230 = vsub.s32 0, %v1229
        %v1231 = vrot.slane %v1226, %v1230
        %v1234 = vsel %vm1196, %v1224, 0
        %vm1236 = vcmask 1045504
        %v1238 = vsel %vm1236, %v1225, 0
        %1240 = vmatprep.subr.mxu0 0.0
        %1241 = vmatpush1.msra.mxu0 %v1238
        %1242 = vmatprep.subr.mxu0 0.0
        %1243 = vmatpush1.msra.mxu0 0.0
        %1244 = vmatprep.subr.mxu0 0.0
        %1245 = vmatpush1.msra.mxu0 0.0
        %1246 = vmatprep.subr.mxu0 0.0
        %1247 = vmatpush1.msra.mxu0 0.0
        %1248 = vmatprep.subr.mxu0 0.0
        %1249 = vmatpush1.msra.mxu0 0.0
        %1250 = vmatprep.subr.mxu0 0.0
        %1251 = vmatpush1.msra.mxu0 0.0
        %1252 = vmatprep.subr.mxu0 0.0
        %1253 = vmatpush1.msra.mxu0 0.0
        %1254 = vmatprep.subr.mxu0 0.0
        %1255 = vmatpush1.msra.mxu0 0.0
        %1256 = vmatprep.subr.mxu0 0.0
        %1257 = vmatpush1.msra.mxu0 0.0
        %1258 = vmatprep.subr.mxu0 0.0
        %1259 = vmatpush1.msra.mxu0 0.0
        %1260 = vmatprep.subr.mxu0 0.0
        %1261 = vmatpush1.msra.mxu0 0.0
        %1262 = vmatprep.subr.mxu0 0.0
        %1263 = vmatpush1.msra.mxu0 0.0
        %1264 = vmatprep.subr.mxu0 0.0
        %1265 = vmatpush1.msra.mxu0 0.0
        %1266 = vmatprep.subr.mxu0 0.0
        %1267 = vmatpush1.msra.mxu0 0.0
        %1268 = vmatprep.subr.mxu0 0.0
        %1269 = vmatpush1.msra.mxu0 0.0
        %1270 = vmatprep.subr.mxu0 0.0
        %1271 = vmatpush1.msra.mxu0 0.0
        %1272 = vmatprep.subr.mxu0 0.0
        %1273 = vmatpush1.msra.mxu0 0.0
        %1274 = vmatprep.subr.mxu0 0.0
        %1275 = vmatpush1.msra.mxu0 0.0
        %1276 = vmatprep.subr.mxu0 0.0
        %1277 = vmatpush1.msra.mxu0 0.0
        %1278 = vmatprep.subr.mxu0 0.0
        %1279 = vmatpush1.msra.mxu0 0.0
        %1280 = vmatprep.subr.mxu0 0.0
        %1281 = vmatpush1.msra.mxu0 0.0
        %1282 = vmatprep.subr.mxu0 0.0
        %1283 = vmatpush1.msra.mxu0 0.0
        %1284 = vmatprep.subr.mxu0 0.0
        %1285 = vmatpush1.msra.mxu0 0.0
        %1286 = vmatprep.subr.mxu0 0.0
        %1287 = vmatpush1.msra.mxu0 0.0
        %1288 = vmatprep.subr.mxu0 0.0
        %1289 = vmatpush1.msra.mxu0 0.0
        %1290 = vmatprep.subr.mxu0 0.0
        %1291 = vmatpush1.msra.mxu0 0.0
        %1292 = vmatprep.subr.mxu0 0.0
        %1293 = vmatpush1.msra.mxu0 0.0
        %1294 = vmatprep.subr.mxu0 0.0
        %1295 = vmatpush1.msra.mxu0 0.0
        %1296 = vmatprep.subr.mxu0 0.0
        %1297 = vmatpush1.msra.mxu0 0.0
        %1298 = vmatprep.subr.mxu0 0.0
        %1299 = vmatpush1.msra.mxu0 0.0
        %1300 = vmatprep.subr.mxu0 0.0
        %1301 = vmatpush1.msra.mxu0 0.0
        %1302 = vmatprep.subr.mxu0 0.0
        %1303 = vmatpush1.msra.mxu0 0.0
        %1304 = vmatprep.mubr.f32.mxu0 0.0
        %1305 = vmatmul.mubr.f32.gmra.mrb[0].mxu0 %v1234
        %v1306 = vpop.f32.mrb[0].mxu0
        %v1307 = vadd.f32 %v1231, %v1306
        %v1308 = vpop.f32.mrb[0].mxu0
        %1309 = vdwg.mxu0
        %v1310 = vld [vmem:[%s13] sm:$0xff]
        %v1311 = vld [vmem:[%s13 + $0x8] sm:$0xff]
        %v1312 = vld [vmem:[%s13 + $0x10] sm:$0xff]
        %v1313 = vld [vmem:[%s13 + $0x18] sm:$0xff]
        %v1314 = vld [vmem:[#allocation13] sm:$0x1]
        %v1316 = vlaneseq
        %v1317 = vshrl.u32 %v1316, 7
        %v1318 = vsub.s32 0, %v1317
        %v1319 = vrot.slane %v1314, %v1318
        %vm1321 = vcmask 261120
        %v1323 = vsel %vm1321, %v1307, 0
        %1325 = vmatprep.subr.mxu0 0.0
        %1326 = vmatpush1.msra.mxu0 %v1310
        %1327 = vmatprep.subr.mxu0 0.0
        %1328 = vmatpush1.msra.mxu0 %v1311
        %1329 = vmatprep.subr.mxu0 0.0
        %1330 = vmatpush1.msra.mxu0 %v1312
        %1331 = vmatprep.subr.mxu0 0.0
        %1332 = vmatpush1.msra.mxu0 %v1313
        %1333 = vmatprep.subr.mxu0 0.0
        %1334 = vmatpush1.msra.mxu0 0.0
        %1335 = vmatprep.subr.mxu0 0.0
        %1336 = vmatpush1.msra.mxu0 0.0
        %1337 = vmatprep.subr.mxu0 0.0
        %1338 = vmatpush1.msra.mxu0 0.0
        %1339 = vmatprep.subr.mxu0 0.0
        %1340 = vmatpush1.msra.mxu0 0.0
        %1341 = vmatprep.subr.mxu0 0.0
        %1342 = vmatpush1.msra.mxu0 0.0
        %1343 = vmatprep.subr.mxu0 0.0
        %1344 = vmatpush1.msra.mxu0 0.0
        %1345 = vmatprep.subr.mxu0 0.0
        %1346 = vmatpush1.msra.mxu0 0.0
        %1347 = vmatprep.subr.mxu0 0.0
        %1348 = vmatpush1.msra.mxu0 0.0
        %1349 = vmatprep.subr.mxu0 0.0
        %1350 = vmatpush1.msra.mxu0 0.0
        %1351 = vmatprep.subr.mxu0 0.0
        %1352 = vmatpush1.msra.mxu0 0.0
        %1353 = vmatprep.subr.mxu0 0.0
        %1354 = vmatpush1.msra.mxu0 0.0
        %1355 = vmatprep.subr.mxu0 0.0
        %1356 = vmatpush1.msra.mxu0 0.0
        %1357 = vmatprep.subr.mxu0 0.0
        %1358 = vmatpush1.msra.mxu0 0.0
        %1359 = vmatprep.subr.mxu0 0.0
        %1360 = vmatpush1.msra.mxu0 0.0
        %1361 = vmatprep.subr.mxu0 0.0
        %1362 = vmatpush1.msra.mxu0 0.0
        %1363 = vmatprep.subr.mxu0 0.0
        %1364 = vmatpush1.msra.mxu0 0.0
        %1365 = vmatprep.subr.mxu0 0.0
        %1366 = vmatpush1.msra.mxu0 0.0
        %1367 = vmatprep.subr.mxu0 0.0
        %1368 = vmatpush1.msra.mxu0 0.0
        %1369 = vmatprep.subr.mxu0 0.0
        %1370 = vmatpush1.msra.mxu0 0.0
        %1371 = vmatprep.subr.mxu0 0.0
        %1372 = vmatpush1.msra.mxu0 0.0
        %1373 = vmatprep.subr.mxu0 0.0
        %1374 = vmatpush1.msra.mxu0 0.0
        %1375 = vmatprep.subr.mxu0 0.0
        %1376 = vmatpush1.msra.mxu0 0.0
        %1377 = vmatprep.subr.mxu0 0.0
        %1378 = vmatpush1.msra.mxu0 0.0
        %1379 = vmatprep.subr.mxu0 0.0
        %1380 = vmatpush1.msra.mxu0 0.0
        %1381 = vmatprep.subr.mxu0 0.0
        %1382 = vmatpush1.msra.mxu0 0.0
        %1383 = vmatprep.subr.mxu0 0.0
        %1384 = vmatpush1.msra.mxu0 0.0
        %1385 = vmatprep.subr.mxu0 0.0
        %1386 = vmatpush1.msra.mxu0 0.0
        %1387 = vmatprep.subr.mxu0 0.0
        %1388 = vmatpush1.msra.mxu0 0.0
        %1389 = vmatprep.mubr.f32.mxu0 0.0
        %1390 = vmatmul.mubr.f32.gmra.mrb[0].mxu0 %v1323
        %v1391 = vpop.f32.mrb[0].mxu0
        %v1392 = vadd.f32 %v1319, %v1391
        %v1393 = vpop.f32.mrb[0].mxu0
        %1394 = vdwg.mxu0
        %v1395 = vadd.f32 %v1392, %v1307
        %v1396 = vld [vmem:[#allocation14] sm:$0xff]
        %v1397 = vld [vmem:[%s1192] sm:$0xff]
        %v1398 = vadd.f32 %v1397, %v1396
        %s1399 = sld [smem:[#allocation16]]
        %v1400 = vstv %s1399
        %v1401 = vmul.f32 %v1398, %v1400
        %s1402 = sld [smem:[#allocation17]]
        %v1403 = vstv %s1402
        %v1404 = vadd.f32 %v1401, %v1403
        %s1405 = scalar_lea.vmem %s1192, 8
        %v1406 = vld [vmem:[%s1405] sm:$0xff]
        %v1407 = vadd.f32 %v1406, %v1396
        %s1408 = sld [smem:[#allocation16 + $0x1]]
        %v1409 = vstv %s1408
        %v1410 = vmul.f32 %v1407, %v1409
        %s1411 = sld [smem:[#allocation17 + $0x1]]
        %v1412 = vstv %s1411
        %v1413 = vadd.f32 %v1410, %v1412
        %s1414 = scalar_lea.vmem %s1192, 16
        %v1415 = vld [vmem:[%s1414] sm:$0xff]
        %v1416 = vadd.f32 %v1415, %v1396
        %s1417 = sld [smem:[#allocation16 + $0x2]]
        %v1418 = vstv %s1417
        %v1419 = vmul.f32 %v1416, %v1418
        %s1420 = sld [smem:[#allocation17 + $0x2]]
        %v1421 = vstv %s1420
        %v1422 = vadd.f32 %v1419, %v1421
        %v1423 = vadd.f32 %v1395, %v1396
        %s1424 = sld [smem:[#allocation16 + $0x3]]
        %v1425 = vstv %s1424
        %v1426 = vmul.f32 %v1423, %v1425
        %s1427 = sld [smem:[#allocation17 + $0x3]]
        %v1428 = vstv %s1427
        %v1429 = vadd.f32 %v1426, %v1428
        %v1430 = vld [vmem:[#allocation19] sm:$0xff]
        %v1431 = vld [vmem:[#allocation19 + $0x8] sm:$0xff]
        %v1432 = vld [vmem:[#allocation19 + $0x10] sm:$0xff]
        %v1433 = vld [vmem:[#allocation19 + $0x18] sm:$0xff]
        %v1434 = vld [vmem:[#allocation20] sm:$0xff]
        %v1435 = vld [vmem:[#allocation20 + $0x8] sm:$0xff]
        %v1436 = vld [vmem:[#allocation20 + $0x10] sm:$0xff]
        %v1437 = vld [vmem:[#allocation20 + $0x18] sm:$0xff]
        %v1439 = vsel %vm1321, %v1404, 0
        %1441 = vmatprep.subr.mxu0 0.0
        %1442 = vmatpush1.msra.mxu0 %v1430
        %1443 = vmatprep.subr.mxu0 0.0
        %1444 = vmatpush1.msra.mxu0 %v1431
        %1445 = vmatprep.subr.mxu0 0.0
        %1446 = vmatpush1.msra.mxu0 %v1432
        %1447 = vmatprep.subr.mxu0 0.0
        %1448 = vmatpush1.msra.mxu0 %v1433
        %1449 = vmatprep.subr.mxu0 0.0
        %1450 = vmatpush1.msra.mxu0 0.0
        %1451 = vmatprep.subr.mxu0 0.0
        %1452 = vmatpush1.msra.mxu0 0.0
        %1453 = vmatprep.subr.mxu0 0.0
        %1454 = vmatpush1.msra.mxu0 0.0
        %1455 = vmatprep.subr.mxu0 0.0
        %1456 = vmatpush1.msra.mxu0 0.0
        %1457 = vmatprep.subr.mxu0 0.0
        %1458 = vmatpush1.msra.mxu0 0.0
        %1459 = vmatprep.subr.mxu0 0.0
        %1460 = vmatpush1.msra.mxu0 0.0
        %1461 = vmatprep.subr.mxu0 0.0
        %1462 = vmatpush1.msra.mxu0 0.0
        %1463 = vmatprep.subr.mxu0 0.0
        %1464 = vmatpush1.msra.mxu0 0.0
        %1465 = vmatprep.subr.mxu0 0.0
        %1466 = vmatpush1.msra.mxu0 0.0
        %1467 = vmatprep.subr.mxu0 0.0
        %1468 = vmatpush1.msra.mxu0 0.0
        %1469 = vmatprep.subr.mxu0 0.0
        %1470 = vmatpush1.msra.mxu0 0.0
        %1471 = vmatprep.subr.mxu0 0.0
        %1472 = vmatpush1.msra.mxu0 0.0
        %1473 = vmatprep.subr.mxu0 0.0
        %1474 = vmatpush1.msra.mxu0 0.0
        %1475 = vmatprep.subr.mxu0 0.0
        %1476 = vmatpush1.msra.mxu0 0.0
        %1477 = vmatprep.subr.mxu0 0.0
        %1478 = vmatpush1.msra.mxu0 0.0
        %1479 = vmatprep.subr.mxu0 0.0
        %1480 = vmatpush1.msra.mxu0 0.0
        %1481 = vmatprep.subr.mxu0 0.0
        %1482 = vmatpush1.msra.mxu0 0.0
        %1483 = vmatprep.subr.mxu0 0.0
        %1484 = vmatpush1.msra.mxu0 0.0
        %1485 = vmatprep.subr.mxu0 0.0
        %1486 = vmatpush1.msra.mxu0 0.0
        %1487 = vmatprep.subr.mxu0 0.0
        %1488 = vmatpush1.msra.mxu0 0.0
        %1489 = vmatprep.subr.mxu0 0.0
        %1490 = vmatpush1.msra.mxu0 0.0
        %1491 = vmatprep.subr.mxu0 0.0
        %1492 = vmatpush1.msra.mxu0 0.0
        %1493 = vmatprep.subr.mxu0 0.0
        %1494 = vmatpush1.msra.mxu0 0.0
        %1495 = vmatprep.subr.mxu0 0.0
        %1496 = vmatpush1.msra.mxu0 0.0
        %1497 = vmatprep.subr.mxu0 0.0
        %1498 = vmatpush1.msra.mxu0 0.0
        %1499 = vmatprep.subr.mxu0 0.0
        %1500 = vmatpush1.msra.mxu0 0.0
        %1501 = vmatprep.subr.mxu0 0.0
        %1502 = vmatpush1.msra.mxu0 0.0
        %1503 = vmatprep.subr.mxu0 0.0
        %1504 = vmatpush1.msra.mxu0 0.0
        %1505 = vmatprep.mubr.f32.mxu0 0.0
        %1506 = vmatmul.mubr.f32.gmra.mrb[0].mxu0 %v1439
        %v1507 = vpop.f32.mrb[0].mxu0
        %v1508 = vadd.f32 0.0, %v1507
        %v1509 = vpop.f32.mrb[0].mxu0
        %1510 = vdwg.mxu0
        %1511 = vmatprep.subr.mxu0 0.0
        %1512 = vmatpush1.msra.mxu0 %v1434
        %1513 = vmatprep.subr.mxu0 0.0
        %1514 = vmatpush1.msra.mxu0 %v1435
        %1515 = vmatprep.subr.mxu0 0.0
        %1516 = vmatpush1.msra.mxu0 %v1436
        %1517 = vmatprep.subr.mxu0 0.0
        %1518 = vmatpush1.msra.mxu0 %v1437
        %1519 = vmatprep.subr.mxu0 0.0
        %1520 = vmatpush1.msra.mxu0 0.0
        %1521 = vmatprep.subr.mxu0 0.0
        %1522 = vmatpush1.msra.mxu0 0.0
        %1523 = vmatprep.subr.mxu0 0.0
        %1524 = vmatpush1.msra.mxu0 0.0
        %1525 = vmatprep.subr.mxu0 0.0
        %1526 = vmatpush1.msra.mxu0 0.0
        %1527 = vmatprep.subr.mxu0 0.0
        %1528 = vmatpush1.msra.mxu0 0.0
        %1529 = vmatprep.subr.mxu0 0.0
        %1530 = vmatpush1.msra.mxu0 0.0
        %1531 = vmatprep.subr.mxu0 0.0
        %1532 = vmatpush1.msra.mxu0 0.0
        %1533 = vmatprep.subr.mxu0 0.0
        %1534 = vmatpush1.msra.mxu0 0.0
        %1535 = vmatprep.subr.mxu0 0.0
        %1536 = vmatpush1.msra.mxu0 0.0
        %1537 = vmatprep.subr.mxu0 0.0
        %1538 = vmatpush1.msra.mxu0 0.0
        %1539 = vmatprep.subr.mxu0 0.0
        %1540 = vmatpush1.msra.mxu0 0.0
        %1541 = vmatprep.subr.mxu0 0.0
        %1542 = vmatpush1.msra.mxu0 0.0
        %1543 = vmatprep.subr.mxu0 0.0
        %1544 = vmatpush1.msra.mxu0 0.0
        %1545 = vmatprep.subr.mxu0 0.0
        %1546 = vmatpush1.msra.mxu0 0.0
        %1547 = vmatprep.subr.mxu0 0.0
        %1548 = vmatpush1.msra.mxu0 0.0
        %1549 = vmatprep.subr.mxu0 0.0
        %1550 = vmatpush1.msra.mxu0 0.0
        %1551 = vmatprep.subr.mxu0 0.0
        %1552 = vmatpush1.msra.mxu0 0.0
        %1553 = vmatprep.subr.mxu0 0.0
        %1554 = vmatpush1.msra.mxu0 0.0
        %1555 = vmatprep.subr.mxu0 0.0
        %1556 = vmatpush1.msra.mxu0 0.0
        %1557 = vmatprep.subr.mxu0 0.0
        %1558 = vmatpush1.msra.mxu0 0.0
        %1559 = vmatprep.subr.mxu0 0.0
        %1560 = vmatpush1.msra.mxu0 0.0
        %1561 = vmatprep.subr.mxu0 0.0
        %1562 = vmatpush1.msra.mxu0 0.0
        %1563 = vmatprep.subr.mxu0 0.0
        %1564 = vmatpush1.msra.mxu0 0.0
        %1565 = vmatprep.subr.mxu0 0.0
        %1566 = vmatpush1.msra.mxu0 0.0
        %1567 = vmatprep.subr.mxu0 0.0
        %1568 = vmatpush1.msra.mxu0 0.0
        %1569 = vmatprep.subr.mxu0 0.0
        %1570 = vmatpush1.msra.mxu0 0.0
        %1571 = vmatprep.subr.mxu0 0.0
        %1572 = vmatpush1.msra.mxu0 0.0
        %1573 = vmatprep.subr.mxu0 0.0
        %1574 = vmatpush1.msra.mxu0 0.0
        %1575 = vmatprep.mubr.f32.mxu0 0.0
        %1576 = vmatmul.mubr.f32.gmra.mrb[0].mxu0 %v1439
        %v1577 = vpop.f32.mrb[0].mxu0
        %v1578 = vadd.f32 0.0, %v1577
        %v1579 = vpop.f32.mrb[0].mxu0
        %1580 = vdwg.mxu0
        %v1582 = vsel %vm1321, %v1413, 0
        %1584 = vmatprep.subr.mxu0 0.0
        %1585 = vmatpush1.msra.mxu0 %v1430
        %1586 = vmatprep.subr.mxu0 0.0
        %1587 = vmatpush1.msra.mxu0 %v1431
        %1588 = vmatprep.subr.mxu0 0.0
        %1589 = vmatpush1.msra.mxu0 %v1432
        %1590 = vmatprep.subr.mxu0 0.0
        %1591 = vmatpush1.msra.mxu0 %v1433
        %1592 = vmatprep.subr.mxu0 0.0
        %1593 = vmatpush1.msra.mxu0 0.0
        %1594 = vmatprep.subr.mxu0 0.0
        %1595 = vmatpush1.msra.mxu0 0.0
        %1596 = vmatprep.subr.mxu0 0.0
        %1597 = vmatpush1.msra.mxu0 0.0
        %1598 = vmatprep.subr.mxu0 0.0
        %1599 = vmatpush1.msra.mxu0 0.0
        %1600 = vmatprep.subr.mxu0 0.0
        %1601 = vmatpush1.msra.mxu0 0.0
        %1602 = vmatprep.subr.mxu0 0.0
        %1603 = vmatpush1.msra.mxu0 0.0
        %1604 = vmatprep.subr.mxu0 0.0
        %1605 = vmatpush1.msra.mxu0 0.0
        %1606 = vmatprep.subr.mxu0 0.0
        %1607 = vmatpush1.msra.mxu0 0.0
        %1608 = vmatprep.subr.mxu0 0.0
        %1609 = vmatpush1.msra.mxu0 0.0
        %1610 = vmatprep.subr.mxu0 0.0
        %1611 = vmatpush1.msra.mxu0 0.0
        %1612 = vmatprep.subr.mxu0 0.0
        %1613 = vmatpush1.msra.mxu0 0.0
        %1614 = vmatprep.subr.mxu0 0.0
        %1615 = vmatpush1.msra.mxu0 0.0
        %1616 = vmatprep.subr.mxu0 0.0
        %1617 = vmatpush1.msra.mxu0 0.0
        %1618 = vmatprep.subr.mxu0 0.0
        %1619 = vmatpush1.msra.mxu0 0.0
        %1620 = vmatprep.subr.mxu0 0.0
        %1621 = vmatpush1.msra.mxu0 0.0
        %1622 = vmatprep.subr.mxu0 0.0
        %1623 = vmatpush1.msra.mxu0 0.0
        %1624 = vmatprep.subr.mxu0 0.0
        %1625 = vmatpush1.msra.mxu0 0.0
        %1626 = vmatprep.subr.mxu0 0.0
        %1627 = vmatpush1.msra.mxu0 0.0
        %1628 = vmatprep.subr.mxu0 0.0
        %1629 = vmatpush1.msra.mxu0 0.0
        %1630 = vmatprep.subr.mxu0 0.0
        %1631 = vmatpush1.msra.mxu0 0.0
        %1632 = vmatprep.subr.mxu0 0.0
        %1633 = vmatpush1.msra.mxu0 0.0
        %1634 = vmatprep.subr.mxu0 0.0
        %1635 = vmatpush1.msra.mxu0 0.0
        %1636 = vmatprep.subr.mxu0 0.0
        %1637 = vmatpush1.msra.mxu0 0.0
        %1638 = vmatprep.subr.mxu0 0.0
        %1639 = vmatpush1.msra.mxu0 0.0
        %1640 = vmatprep.subr.mxu0 0.0
        %1641 = vmatpush1.msra.mxu0 0.0
        %1642 = vmatprep.subr.mxu0 0.0
        %1643 = vmatpush1.msra.mxu0 0.0
        %1644 = vmatprep.subr.mxu0 0.0
        %1645 = vmatpush1.msra.mxu0 0.0
        %1646 = vmatprep.subr.mxu0 0.0
        %1647 = vmatpush1.msra.mxu0 0.0
        %1648 = vmatprep.mubr.f32.mxu0 0.0
        %1649 = vmatmul.mubr.f32.gmra.mrb[0].mxu0 %v1582
        %v1650 = vpop.f32.mrb[0].mxu0
        %v1651 = vadd.f32 0.0, %v1650
        %v1652 = vpop.f32.mrb[0].mxu0
        %1653 = vdwg.mxu0
        %1654 = vmatprep.subr.mxu0 0.0
        %1655 = vmatpush1.msra.mxu0 %v1434
        %1656 = vmatprep.subr.mxu0 0.0
        %1657 = vmatpush1.msra.mxu0 %v1435
        %1658 = vmatprep.subr.mxu0 0.0
        %1659 = vmatpush1.msra.mxu0 %v1436
        %1660 = vmatprep.subr.mxu0 0.0
        %1661 = vmatpush1.msra.mxu0 %v1437
        %1662 = vmatprep.subr.mxu0 0.0
        %1663 = vmatpush1.msra.mxu0 0.0
        %1664 = vmatprep.subr.mxu0 0.0
        %1665 = vmatpush1.msra.mxu0 0.0
        %1666 = vmatprep.subr.mxu0 0.0
        %1667 = vmatpush1.msra.mxu0 0.0
        %1668 = vmatprep.subr.mxu0 0.0
        %1669 = vmatpush1.msra.mxu0 0.0
        %1670 = vmatprep.subr.mxu0 0.0
        %1671 = vmatpush1.msra.mxu0 0.0
        %1672 = vmatprep.subr.mxu0 0.0
        %1673 = vmatpush1.msra.mxu0 0.0
        %1674 = vmatprep.subr.mxu0 0.0
        %1675 = vmatpush1.msra.mxu0 0.0
        %1676 = vmatprep.subr.mxu0 0.0
        %1677 = vmatpush1.msra.mxu0 0.0
        %1678 = vmatprep.subr.mxu0 0.0
        %1679 = vmatpush1.msra.mxu0 0.0
        %1680 = vmatprep.subr.mxu0 0.0
        %1681 = vmatpush1.msra.mxu0 0.0
        %1682 = vmatprep.subr.mxu0 0.0
        %1683 = vmatpush1.msra.mxu0 0.0
        %1684 = vmatprep.subr.mxu0 0.0
        %1685 = vmatpush1.msra.mxu0 0.0
        %1686 = vmatprep.subr.mxu0 0.0
        %1687 = vmatpush1.msra.mxu0 0.0
        %1688 = vmatprep.subr.mxu0 0.0
        %1689 = vmatpush1.msra.mxu0 0.0
        %1690 = vmatprep.subr.mxu0 0.0
        %1691 = vmatpush1.msra.mxu0 0.0
        %1692 = vmatprep.subr.mxu0 0.0
        %1693 = vmatpush1.msra.mxu0 0.0
        %1694 = vmatprep.subr.mxu0 0.0
        %1695 = vmatpush1.msra.mxu0 0.0
        %1696 = vmatprep.subr.mxu0 0.0
        %1697 = vmatpush1.msra.mxu0 0.0
        %1698 = vmatprep.subr.mxu0 0.0
        %1699 = vmatpush1.msra.mxu0 0.0
        %1700 = vmatprep.subr.mxu0 0.0
        %1701 = vmatpush1.msra.mxu0 0.0
        %1702 = vmatprep.subr.mxu0 0.0
        %1703 = vmatpush1.msra.mxu0 0.0
        %1704 = vmatprep.subr.mxu0 0.0
        %1705 = vmatpush1.msra.mxu0 0.0
        %1706 = vmatprep.subr.mxu0 0.0
        %1707 = vmatpush1.msra.mxu0 0.0
        %1708 = vmatprep.subr.mxu0 0.0
        %1709 = vmatpush1.msra.mxu0 0.0
        %1710 = vmatprep.subr.mxu0 0.0
        %1711 = vmatpush1.msra.mxu0 0.0
        %1712 = vmatprep.subr.mxu0 0.0
        %1713 = vmatpush1.msra.mxu0 0.0
        %1714 = vmatprep.subr.mxu0 0.0
        %1715 = vmatpush1.msra.mxu0 0.0
        %1716 = vmatprep.subr.mxu0 0.0
        %1717 = vmatpush1.msra.mxu0 0.0
        %1718 = vmatprep.mubr.f32.mxu0 0.0
        %1719 = vmatmul.mubr.f32.gmra.mrb[0].mxu0 %v1582
        %v1720 = vpop.f32.mrb[0].mxu0
        %v1721 = vadd.f32 0.0, %v1720
        %v1722 = vpop.f32.mrb[0].mxu0
        %1723 = vdwg.mxu0
        %v1725 = vsel %vm1321, %v1422, 0
        %1727 = vmatprep.subr.mxu0 0.0
        %1728 = vmatpush1.msra.mxu0 %v1430
        %1729 = vmatprep.subr.mxu0 0.0
        %1730 = vmatpush1.msra.mxu0 %v1431
        %1731 = vmatprep.subr.mxu0 0.0
        %1732 = vmatpush1.msra.mxu0 %v1432
        %1733 = vmatprep.subr.mxu0 0.0
        %1734 = vmatpush1.msra.mxu0 %v1433
        %1735 = vmatprep.subr.mxu0 0.0
        %1736 = vmatpush1.msra.mxu0 0.0
        %1737 = vmatprep.subr.mxu0 0.0
        %1738 = vmatpush1.msra.mxu0 0.0
        %1739 = vmatprep.subr.mxu0 0.0
        %1740 = vmatpush1.msra.mxu0 0.0
        %1741 = vmatprep.subr.mxu0 0.0
        %1742 = vmatpush1.msra.mxu0 0.0
        %1743 = vmatprep.subr.mxu0 0.0
        %1744 = vmatpush1.msra.mxu0 0.0
        %1745 = vmatprep.subr.mxu0 0.0
        %1746 = vmatpush1.msra.mxu0 0.0
        %1747 = vmatprep.subr.mxu0 0.0
        %1748 = vmatpush1.msra.mxu0 0.0
        %1749 = vmatprep.subr.mxu0 0.0
        %1750 = vmatpush1.msra.mxu0 0.0
        %1751 = vmatprep.subr.mxu0 0.0
        %1752 = vmatpush1.msra.mxu0 0.0
        %1753 = vmatprep.subr.mxu0 0.0
        %1754 = vmatpush1.msra.mxu0 0.0
        %1755 = vmatprep.subr.mxu0 0.0
        %1756 = vmatpush1.msra.mxu0 0.0
        %1757 = vmatprep.subr.mxu0 0.0
        %1758 = vmatpush1.msra.mxu0 0.0
        %1759 = vmatprep.subr.mxu0 0.0
        %1760 = vmatpush1.msra.mxu0 0.0
        %1761 = vmatprep.subr.mxu0 0.0
        %1762 = vmatpush1.msra.mxu0 0.0
        %1763 = vmatprep.subr.mxu0 0.0
        %1764 = vmatpush1.msra.mxu0 0.0
        %1765 = vmatprep.subr.mxu0 0.0
        %1766 = vmatpush1.msra.mxu0 0.0
        %1767 = vmatprep.subr.mxu0 0.0
        %1768 = vmatpush1.msra.mxu0 0.0
        %1769 = vmatprep.subr.mxu0 0.0
        %1770 = vmatpush1.msra.mxu0 0.0
        %1771 = vmatprep.subr.mxu0 0.0
        %1772 = vmatpush1.msra.mxu0 0.0
        %1773 = vmatprep.subr.mxu0 0.0
        %1774 = vmatpush1.msra.mxu0 0.0
        %1775 = vmatprep.subr.mxu0 0.0
        %1776 = vmatpush1.msra.mxu0 0.0
        %1777 = vmatprep.subr.mxu0 0.0
        %1778 = vmatpush1.msra.mxu0 0.0
        %1779 = vmatprep.subr.mxu0 0.0
        %1780 = vmatpush1.msra.mxu0 0.0
        %1781 = vmatprep.subr.mxu0 0.0
        %1782 = vmatpush1.msra.mxu0 0.0
        %1783 = vmatprep.subr.mxu0 0.0
        %1784 = vmatpush1.msra.mxu0 0.0
        %1785 = vmatprep.subr.mxu0 0.0
        %1786 = vmatpush1.msra.mxu0 0.0
        %1787 = vmatprep.subr.mxu0 0.0
        %1788 = vmatpush1.msra.mxu0 0.0
        %1789 = vmatprep.subr.mxu0 0.0
        %1790 = vmatpush1.msra.mxu0 0.0
        %1791 = vmatprep.mubr.f32.mxu0 0.0
        %1792 = vmatmul.mubr.f32.gmra.mrb[0].mxu0 %v1725
        %v1793 = vpop.f32.mrb[0].mxu0
        %v1794 = vadd.f32 0.0, %v1793
        %v1795 = vpop.f32.mrb[0].mxu0
        %1796 = vdwg.mxu0
        %1797 = vmatprep.subr.mxu0 0.0
        %1798 = vmatpush1.msra.mxu0 %v1434
        %1799 = vmatprep.subr.mxu0 0.0
        %1800 = vmatpush1.msra.mxu0 %v1435
        %1801 = vmatprep.subr.mxu0 0.0
        %1802 = vmatpush1.msra.mxu0 %v1436
        %1803 = vmatprep.subr.mxu0 0.0
        %1804 = vmatpush1.msra.mxu0 %v1437
        %1805 = vmatprep.subr.mxu0 0.0
        %1806 = vmatpush1.msra.mxu0 0.0
        %1807 = vmatprep.subr.mxu0 0.0
        %1808 = vmatpush1.msra.mxu0 0.0
        %1809 = vmatprep.subr.mxu0 0.0
        %1810 = vmatpush1.msra.mxu0 0.0
        %1811 = vmatprep.subr.mxu0 0.0
        %1812 = vmatpush1.msra.mxu0 0.0
        %1813 = vmatprep.subr.mxu0 0.0
        %1814 = vmatpush1.msra.mxu0 0.0
        %1815 = vmatprep.subr.mxu0 0.0
        %1816 = vmatpush1.msra.mxu0 0.0
        %1817 = vmatprep.subr.mxu0 0.0
        %1818 = vmatpush1.msra.mxu0 0.0
        %1819 = vmatprep.subr.mxu0 0.0
        %1820 = vmatpush1.msra.mxu0 0.0
        %1821 = vmatprep.subr.mxu0 0.0
        %1822 = vmatpush1.msra.mxu0 0.0
        %1823 = vmatprep.subr.mxu0 0.0
        %1824 = vmatpush1.msra.mxu0 0.0
        %1825 = vmatprep.subr.mxu0 0.0
        %1826 = vmatpush1.msra.mxu0 0.0
        %1827 = vmatprep.subr.mxu0 0.0
        %1828 = vmatpush1.msra.mxu0 0.0
        %1829 = vmatprep.subr.mxu0 0.0
        %1830 = vmatpush1.msra.mxu0 0.0
        %1831 = vmatprep.subr.mxu0 0.0
        %1832 = vmatpush1.msra.mxu0 0.0
        %1833 = vmatprep.subr.mxu0 0.0
        %1834 = vmatpush1.msra.mxu0 0.0
        %1835 = vmatprep.subr.mxu0 0.0
        %1836 = vmatpush1.msra.mxu0 0.0
        %1837 = vmatprep.subr.mxu0 0.0
        %1838 = vmatpush1.msra.mxu0 0.0
        %1839 = vmatprep.subr.mxu0 0.0
        %1840 = vmatpush1.msra.mxu0 0.0
        %1841 = vmatprep.subr.mxu0 0.0
        %1842 = vmatpush1.msra.mxu0 0.0
        %1843 = vmatprep.subr.mxu0 0.0
        %1844 = vmatpush1.msra.mxu0 0.0
        %1845 = vmatprep.subr.mxu0 0.0
        %1846 = vmatpush1.msra.mxu0 0.0
        %1847 = vmatprep.subr.mxu0 0.0
        %1848 = vmatpush1.msra.mxu0 0.0
        %1849 = vmatprep.subr.mxu0 0.0
        %1850 = vmatpush1.msra.mxu0 0.0
        %1851 = vmatprep.subr.mxu0 0.0
        %1852 = vmatpush1.msra.mxu0 0.0
        %1853 = vmatprep.subr.mxu0 0.0
        %1854 = vmatpush1.msra.mxu0 0.0
        %1855 = vmatprep.subr.mxu0 0.0
        %1856 = vmatpush1.msra.mxu0 0.0
        %1857 = vmatprep.subr.mxu0 0.0
        %1858 = vmatpush1.msra.mxu0 0.0
        %1859 = vmatprep.subr.mxu0 0.0
        %1860 = vmatpush1.msra.mxu0 0.0
        %1861 = vmatprep.mubr.f32.mxu0 0.0
        %1862 = vmatmul.mubr.f32.gmra.mrb[0].mxu0 %v1725
        %v1863 = vpop.f32.mrb[0].mxu0
        %v1864 = vadd.f32 0.0, %v1863
        %v1865 = vpop.f32.mrb[0].mxu0
        %1866 = vdwg.mxu0
        %v1868 = vsel %vm1321, %v1429, 0
        %1870 = vmatprep.subr.mxu0 0.0
        %1871 = vmatpush1.msra.mxu0 %v1430
        %1872 = vmatprep.subr.mxu0 0.0
        %1873 = vmatpush1.msra.mxu0 %v1431
        %1874 = vmatprep.subr.mxu0 0.0
        %1875 = vmatpush1.msra.mxu0 %v1432
        %1876 = vmatprep.subr.mxu0 0.0
        %1877 = vmatpush1.msra.mxu0 %v1433
        %1878 = vmatprep.subr.mxu0 0.0
        %1879 = vmatpush1.msra.mxu0 0.0
        %1880 = vmatprep.subr.mxu0 0.0
        %1881 = vmatpush1.msra.mxu0 0.0
        %1882 = vmatprep.subr.mxu0 0.0
        %1883 = vmatpush1.msra.mxu0 0.0
        %1884 = vmatprep.subr.mxu0 0.0
        %1885 = vmatpush1.msra.mxu0 0.0
        %1886 = vmatprep.subr.mxu0 0.0
        %1887 = vmatpush1.msra.mxu0 0.0
        %1888 = vmatprep.subr.mxu0 0.0
        %1889 = vmatpush1.msra.mxu0 0.0
        %1890 = vmatprep.subr.mxu0 0.0
        %1891 = vmatpush1.msra.mxu0 0.0
        %1892 = vmatprep.subr.mxu0 0.0
        %1893 = vmatpush1.msra.mxu0 0.0
        %1894 = vmatprep.subr.mxu0 0.0
        %1895 = vmatpush1.msra.mxu0 0.0
        %1896 = vmatprep.subr.mxu0 0.0
        %1897 = vmatpush1.msra.mxu0 0.0
        %1898 = vmatprep.subr.mxu0 0.0
        %1899 = vmatpush1.msra.mxu0 0.0
        %1900 = vmatprep.subr.mxu0 0.0
        %1901 = vmatpush1.msra.mxu0 0.0
        %1902 = vmatprep.subr.mxu0 0.0
        %1903 = vmatpush1.msra.mxu0 0.0
        %1904 = vmatprep.subr.mxu0 0.0
        %1905 = vmatpush1.msra.mxu0 0.0
        %1906 = vmatprep.subr.mxu0 0.0
        %1907 = vmatpush1.msra.mxu0 0.0
        %1908 = vmatprep.subr.mxu0 0.0
        %1909 = vmatpush1.msra.mxu0 0.0
        %1910 = vmatprep.subr.mxu0 0.0
        %1911 = vmatpush1.msra.mxu0 0.0
        %1912 = vmatprep.subr.mxu0 0.0
        %1913 = vmatpush1.msra.mxu0 0.0
        %1914 = vmatprep.subr.mxu0 0.0
        %1915 = vmatpush1.msra.mxu0 0.0
        %1916 = vmatprep.subr.mxu0 0.0
        %1917 = vmatpush1.msra.mxu0 0.0
        %1918 = vmatprep.subr.mxu0 0.0
        %1919 = vmatpush1.msra.mxu0 0.0
        %1920 = vmatprep.subr.mxu0 0.0
        %1921 = vmatpush1.msra.mxu0 0.0
        %1922 = vmatprep.subr.mxu0 0.0
        %1923 = vmatpush1.msra.mxu0 0.0
        %1924 = vmatprep.subr.mxu0 0.0
        %1925 = vmatpush1.msra.mxu0 0.0
        %1926 = vmatprep.subr.mxu0 0.0
        %1927 = vmatpush1.msra.mxu0 0.0
        %1928 = vmatprep.subr.mxu0 0.0
        %1929 = vmatpush1.msra.mxu0 0.0
        %1930 = vmatprep.subr.mxu0 0.0
        %1931 = vmatpush1.msra.mxu0 0.0
        %1932 = vmatprep.subr.mxu0 0.0
        %1933 = vmatpush1.msra.mxu0 0.0
        %1934 = vmatprep.mubr.f32.mxu0 0.0
        %1935 = vmatmul.mubr.f32.gmra.mrb[0].mxu0 %v1868
        %v1936 = vpop.f32.mrb[0].mxu0
        %v1937 = vadd.f32 0.0, %v1936
        %v1938 = vpop.f32.mrb[0].mxu0
        %1939 = vdwg.mxu0
        %1940 = vmatprep.subr.mxu0 0.0
        %1941 = vmatpush1.msra.mxu0 %v1434
        %1942 = vmatprep.subr.mxu0 0.0
        %1943 = vmatpush1.msra.mxu0 %v1435
        %1944 = vmatprep.subr.mxu0 0.0
        %1945 = vmatpush1.msra.mxu0 %v1436
        %1946 = vmatprep.subr.mxu0 0.0
        %1947 = vmatpush1.msra.mxu0 %v1437
        %1948 = vmatprep.subr.mxu0 0.0
        %1949 = vmatpush1.msra.mxu0 0.0
        %1950 = vmatprep.subr.mxu0 0.0
        %1951 = vmatpush1.msra.mxu0 0.0
        %1952 = vmatprep.subr.mxu0 0.0
        %1953 = vmatpush1.msra.mxu0 0.0
        %1954 = vmatprep.subr.mxu0 0.0
        %1955 = vmatpush1.msra.mxu0 0.0
        %1956 = vmatprep.subr.mxu0 0.0
        %1957 = vmatpush1.msra.mxu0 0.0
        %1958 = vmatprep.subr.mxu0 0.0
        %1959 = vmatpush1.msra.mxu0 0.0
        %1960 = vmatprep.subr.mxu0 0.0
        %1961 = vmatpush1.msra.mxu0 0.0
        %1962 = vmatprep.subr.mxu0 0.0
        %1963 = vmatpush1.msra.mxu0 0.0
        %1964 = vmatprep.subr.mxu0 0.0
        %1965 = vmatpush1.msra.mxu0 0.0
        %1966 = vmatprep.subr.mxu0 0.0
        %1967 = vmatpush1.msra.mxu0 0.0
        %1968 = vmatprep.subr.mxu0 0.0
        %1969 = vmatpush1.msra.mxu0 0.0
        %1970 = vmatprep.subr.mxu0 0.0
        %1971 = vmatpush1.msra.mxu0 0.0
        %1972 = vmatprep.subr.mxu0 0.0
        %1973 = vmatpush1.msra.mxu0 0.0
        %1974 = vmatprep.subr.mxu0 0.0
        %1975 = vmatpush1.msra.mxu0 0.0
        %1976 = vmatprep.subr.mxu0 0.0
        %1977 = vmatpush1.msra.mxu0 0.0
        %1978 = vmatprep.subr.mxu0 0.0
        %1979 = vmatpush1.msra.mxu0 0.0
        %1980 = vmatprep.subr.mxu0 0.0
        %1981 = vmatpush1.msra.mxu0 0.0
        %1982 = vmatprep.subr.mxu0 0.0
        %1983 = vmatpush1.msra.mxu0 0.0
        %1984 = vmatprep.subr.mxu0 0.0
        %1985 = vmatpush1.msra.mxu0 0.0
        %1986 = vmatprep.subr.mxu0 0.0
        %1987 = vmatpush1.msra.mxu0 0.0
        %1988 = vmatprep.subr.mxu0 0.0
        %1989 = vmatpush1.msra.mxu0 0.0
        %1990 = vmatprep.subr.mxu0 0.0
        %1991 = vmatpush1.msra.mxu0 0.0
        %1992 = vmatprep.subr.mxu0 0.0
        %1993 = vmatpush1.msra.mxu0 0.0
        %1994 = vmatprep.subr.mxu0 0.0
        %1995 = vmatpush1.msra.mxu0 0.0
        %1996 = vmatprep.subr.mxu0 0.0
        %1997 = vmatpush1.msra.mxu0 0.0
        %1998 = vmatprep.subr.mxu0 0.0
        %1999 = vmatpush1.msra.mxu0 0.0
        %2000 = vmatprep.subr.mxu0 0.0
        %2001 = vmatpush1.msra.mxu0 0.0
        %2002 = vmatprep.subr.mxu0 0.0
        %2003 = vmatpush1.msra.mxu0 0.0
        %2004 = vmatprep.mubr.f32.mxu0 0.0
        %2005 = vmatmul.mubr.f32.gmra.mrb[0].mxu0 %v1868
        %v2006 = vpop.f32.mrb[0].mxu0
        %v2007 = vadd.f32 0.0, %v2006
        %v2008 = vpop.f32.mrb[0].mxu0
        %2009 = vdwg.mxu0
        %v2010 = vld [vmem:[%s27] sm:$0xff]
        %v2011 = vld [vmem:[%s27 + $0x8] sm:$0xff]
        %v2012 = vld [vmem:[%s27 + $0x10] sm:$0xff]
        %v2013 = vld [vmem:[%s27 + $0x18] sm:$0xff]
        %v2014 = vld [vmem:[%s27 + $0x20] sm:$0xff]
        %v2015 = vld [vmem:[%s27 + $0x28] sm:$0xff]
        %v2016 = vld [vmem:[%s29] sm:$0xff]
        %v2017 = vld [vmem:[%s29 + $0x8] sm:$0xff]
        %v2018 = vld [vmem:[%s29 + $0x10] sm:$0xff]
        %v2019 = vld [vmem:[%s29 + $0x18] sm:$0xff]
        %v2020 = vld [vmem:[%s29 + $0x20] sm:$0xff]
        %v2021 = vld [vmem:[%s29 + $0x28] sm:$0xff]
        %2023 = vset.pattern.permute.xlu0 0
        %2024 = vperm.xlu0 %2023, %v2016
        %v2025 = vpop.permute.xlu0 %2024
        %2028 = vset.pattern.permute.xlu0 0
        %2029 = vperm.xlu0 %2028, %v2017
        %v2030 = vpop.permute.xlu0 %2029
        %2033 = vset.pattern.permute.xlu0 0
        %2034 = vperm.xlu0 %2033, %v2018
        %v2035 = vpop.permute.xlu0 %2034
        %2038 = vset.pattern.permute.xlu0 0
        %2039 = vperm.xlu0 %2038, %v2019
        %v2040 = vpop.permute.xlu0 %2039
        %2043 = vset.pattern.permute.xlu0 0
        %2044 = vperm.xlu0 %2043, %v2020
        %v2045 = vpop.permute.xlu0 %2044
        %2048 = vset.pattern.permute.xlu0 0
        %2049 = vperm.xlu0 %2048, %v2021
        %v2050 = vpop.permute.xlu0 %2049
        %vm2052 = vcmask 785408
        %v2054 = vsel %vm2052, %v2010, 0
        %v2057 = vsel %vm2052, %v2011, 0
        %v2060 = vsel %vm2052, %v2012, 0
        %v2063 = vsel %vm2052, %v2013, 0
        %v2066 = vsel %vm2052, %v2014, 0
        %v2069 = vsel %vm2052, %v2015, 0
        %2071 = vmatprep.subr.mxu0 0.0
        %2072 = vmatpush1.msra.mxu0 %v1508
        %2073 = vmatprep.subr.mxu0 0.0
        %2074 = vmatpush1.msra.mxu0 %v1404
        %2075 = vmatprep.subr.mxu0 0.0
        %2076 = vmatpush1.msra.mxu0 %v1578
        %2077 = vmatprep.subr.mxu0 0.0
        %2078 = vmatpush1.msra.mxu0 %v1651
        %2079 = vmatprep.subr.mxu0 0.0
        %2080 = vmatpush1.msra.mxu0 %v1413
        %2081 = vmatprep.subr.mxu0 0.0
        %2082 = vmatpush1.msra.mxu0 %v1721
        %2083 = vmatprep.subr.mxu0 0.0
        %2084 = vmatpush1.msra.mxu0 %v1794
        %2085 = vmatprep.subr.mxu0 0.0
        %2086 = vmatpush1.msra.mxu0 %v1422
        %2087 = vmatprep.subr.mxu0 0.0
        %2088 = vmatpush1.msra.mxu0 %v1864
        %2089 = vmatprep.subr.mxu0 0.0
        %2090 = vmatpush1.msra.mxu0 %v1937
        %2091 = vmatprep.subr.mxu0 0.0
        %2092 = vmatpush1.msra.mxu0 %v1429
        %2093 = vmatprep.subr.mxu0 0.0
        %2094 = vmatpush1.msra.mxu0 %v2007
        %2095 = vmatprep.subr.mxu0 0.0
        %2096 = vmatpush1.msra.mxu0 0.0
        %2097 = vmatprep.subr.mxu0 0.0
        %2098 = vmatpush1.msra.mxu0 0.0
        %2099 = vmatprep.subr.mxu0 0.0
        %2100 = vmatpush1.msra.mxu0 0.0
        %2101 = vmatprep.subr.mxu0 0.0
        %2102 = vmatpush1.msra.mxu0 0.0
        %2103 = vmatprep.subr.mxu0 0.0
        %2104 = vmatpush1.msra.mxu0 0.0
        %2105 = vmatprep.subr.mxu0 0.0
        %2106 = vmatpush1.msra.mxu0 0.0
        %2107 = vmatprep.subr.mxu0 0.0
        %2108 = vmatpush1.msra.mxu0 0.0
        %2109 = vmatprep.subr.mxu0 0.0
        %2110 = vmatpush1.msra.mxu0 0.0
        %2111 = vmatprep.subr.mxu0 0.0
        %2112 = vmatpush1.msra.mxu0 0.0
        %2113 = vmatprep.subr.mxu0 0.0
        %2114 = vmatpush1.msra.mxu0 0.0
        %2115 = vmatprep.subr.mxu0 0.0
        %2116 = vmatpush1.msra.mxu0 0.0
        %2117 = vmatprep.subr.mxu0 0.0
        %2118 = vmatpush1.msra.mxu0 0.0
        %2119 = vmatprep.subr.mxu0 0.0
        %2120 = vmatpush1.msra.mxu0 0.0
        %2121 = vmatprep.subr.mxu0 0.0
        %2122 = vmatpush1.msra.mxu0 0.0
        %2123 = vmatprep.subr.mxu0 0.0
        %2124 = vmatpush1.msra.mxu0 0.0
        %2125 = vmatprep.subr.mxu0 0.0
        %2126 = vmatpush1.msra.mxu0 0.0
        %2127 = vmatprep.subr.mxu0 0.0
        %2128 = vmatpush1.msra.mxu0 0.0
        %2129 = vmatprep.subr.mxu0 0.0
        %2130 = vmatpush1.msra.mxu0 0.0
        %2131 = vmatprep.subr.mxu0 0.0
        %2132 = vmatpush1.msra.mxu0 0.0
        %2133 = vmatprep.subr.mxu0 0.0
        %2134 = vmatpush1.msra.mxu0 0.0
        %2135 = vmatprep.mubr.f32.mxu0 0.0
        %2136 = vmatmul.mubr.f32.gmra.mrb[0].mxu0 %v2054
        %v2137 = vpop.f32.mrb[0].mxu0
        %v2138 = vadd.f32 %v2025, %v2137
        %v2139 = vpop.f32.mrb[0].mxu0
        %2140 = vmatprep.mubr.f32.mxu0 0.0
        %2141 = vmatmul.mubr.f32.gmra.mrb[0].mxu0 %v2057
        %v2142 = vpop.f32.mrb[0].mxu0
        %v2143 = vadd.f32 %v2030, %v2142
        %v2144 = vpop.f32.mrb[0].mxu0
        %2145 = vmatprep.mubr.f32.mxu0 0.0
        %2146 = vmatmul.mubr.f32.gmra.mrb[0].mxu0 %v2060
        %v2147 = vpop.f32.mrb[0].mxu0
        %v2148 = vadd.f32 %v2035, %v2147
        %v2149 = vpop.f32.mrb[0].mxu0
        %2150 = vmatprep.mubr.f32.mxu0 0.0
        %2151 = vmatmul.mubr.f32.gmra.mrb[0].mxu0 %v2063
        %v2152 = vpop.f32.mrb[0].mxu0
        %v2153 = vadd.f32 %v2040, %v2152
        %v2154 = vpop.f32.mrb[0].mxu0
        %2155 = vmatprep.mubr.f32.mxu0 0.0
        %2156 = vmatmul.mubr.f32.gmra.mrb[0].mxu0 %v2066
        %v2157 = vpop.f32.mrb[0].mxu0
        %v2158 = vadd.f32 %v2045, %v2157
        %v2159 = vpop.f32.mrb[0].mxu0
        %2160 = vmatprep.mubr.f32.mxu0 0.0
        %2161 = vmatmul.mubr.f32.gmra.mrb[0].mxu0 %v2069
        %v2162 = vpop.f32.mrb[0].mxu0
        %v2163 = vadd.f32 %v2050, %v2162
        %v2164 = vpop.f32.mrb[0].mxu0
        %2165 = vdwg.mxu0
        %v2167 = vsel %vm1321, %v2138, 0
        %v2170 = vsel %vm1321, %v2148, 0
        %2172 = vmatprep.subr.mxu0 0.0
        %2173 = vmatpush1.xpose.msra.mxu0 %v2170
        %2174 = vmatprep.subr.mxu0 0.0
        %2175 = vmatpush1.xpose.msra.mxu0 0.0
        %2176 = vmatprep.subr.mxu0 0.0
        %2177 = vmatpush1.xpose.msra.mxu0 0.0
        %2178 = vmatprep.subr.mxu0 0.0
        %2179 = vmatpush1.xpose.msra.mxu0 0.0
        %2180 = vmatprep.subr.mxu0 0.0
        %2181 = vmatpush1.xpose.msra.mxu0 0.0
        %2182 = vmatprep.subr.mxu0 0.0
        %2183 = vmatpush1.xpose.msra.mxu0 0.0
        %2184 = vmatprep.subr.mxu0 0.0
        %2185 = vmatpush1.xpose.msra.mxu0 0.0
        %2186 = vmatprep.subr.mxu0 0.0
        %2187 = vmatpush1.xpose.msra.mxu0 0.0
        %2188 = vmatprep.subr.mxu0 0.0
        %2189 = vmatpush1.xpose.msra.mxu0 0.0
        %2190 = vmatprep.subr.mxu0 0.0
        %2191 = vmatpush1.xpose.msra.mxu0 0.0
        %2192 = vmatprep.subr.mxu0 0.0
        %2193 = vmatpush1.xpose.msra.mxu0 0.0
        %2194 = vmatprep.subr.mxu0 0.0
        %2195 = vmatpush1.xpose.msra.mxu0 0.0
        %2196 = vmatprep.subr.mxu0 0.0
        %2197 = vmatpush1.xpose.msra.mxu0 0.0
        %2198 = vmatprep.subr.mxu0 0.0
        %2199 = vmatpush1.xpose.msra.mxu0 0.0
        %2200 = vmatprep.subr.mxu0 0.0
        %2201 = vmatpush1.xpose.msra.mxu0 0.0
        %2202 = vmatprep.subr.mxu0 0.0
        %2203 = vmatpush1.xpose.msra.mxu0 0.0
        %2204 = vmatprep.subr.mxu0 0.0
        %2205 = vmatpush1.xpose.msra.mxu0 0.0
        %2206 = vmatprep.subr.mxu0 0.0
        %2207 = vmatpush1.xpose.msra.mxu0 0.0
        %2208 = vmatprep.subr.mxu0 0.0
        %2209 = vmatpush1.xpose.msra.mxu0 0.0
        %2210 = vmatprep.subr.mxu0 0.0
        %2211 = vmatpush1.xpose.msra.mxu0 0.0
        %2212 = vmatprep.subr.mxu0 0.0
        %2213 = vmatpush1.xpose.msra.mxu0 0.0
        %2214 = vmatprep.subr.mxu0 0.0
        %2215 = vmatpush1.xpose.msra.mxu0 0.0
        %2216 = vmatprep.subr.mxu0 0.0
        %2217 = vmatpush1.xpose.msra.mxu0 0.0
        %2218 = vmatprep.subr.mxu0 0.0
        %2219 = vmatpush1.xpose.msra.mxu0 0.0
        %2220 = vmatprep.subr.mxu0 0.0
        %2221 = vmatpush1.xpose.msra.mxu0 0.0
        %2222 = vmatprep.subr.mxu0 0.0
        %2223 = vmatpush1.xpose.msra.mxu0 0.0
        %2224 = vmatprep.subr.mxu0 0.0
        %2225 = vmatpush1.xpose.msra.mxu0 0.0
        %2226 = vmatprep.subr.mxu0 0.0
        %2227 = vmatpush1.xpose.msra.mxu0 0.0
        %2228 = vmatprep.subr.mxu0 0.0
        %2229 = vmatpush1.xpose.msra.mxu0 0.0
        %2230 = vmatprep.subr.mxu0 0.0
        %2231 = vmatpush1.xpose.msra.mxu0 0.0
        %2232 = vmatprep.subr.mxu0 0.0
        %2233 = vmatpush1.xpose.msra.mxu0 0.0
        %2234 = vmatprep.subr.mxu0 0.0
        %2235 = vmatpush1.xpose.msra.mxu0 0.0
        %2236 = vmatprep.mubr.f32.mxu0 0.0
        %2237 = vmatmul.mubr.f32.gmra.mrb[0].mxu0 %v2167
        %v2238 = vpop.f32.mrb[0].mxu0
        %v2239 = vadd.f32 0.0, %v2238
        %v2240 = vpop.f32.mrb[0].mxu0
        %2241 = vdwg.mxu0
        %v2242 = vmul.f32 %v2239, 0.17677669
        %vm2243 = vcmask 64512
        %v2244 = vsel %vm2243, %v2242, -inf
        %2245 = vmax.xlane.f32.xlu0 %v2244
        %v2246 = vpop.xlane.xlu0 %2245
        %v2247 = vsub.f32 %v2242, %v2246
        %v2248 = vmul.f32 %v2247, 1.442695
        %v2249 = vpow.pop %v2248
        %v2250 = vsel %vm2243, %v2249, 0.0
        %2251 = vadd.xlane.f32.xlu0 %v2250
        %v2252 = vpop.xlane.xlu0 %2251
        %v2253 = vrcp.pop %v2252
        %v2254 = vmul.f32 %v2249, %v2253
        %v2256 = vsel %vm2243, %v2254, 0
        %2258 = vmatprep.subr.mxu0 0.0
        %2259 = vmatpush1.msra.mxu0 %v2158
        %2260 = vmatprep.subr.mxu0 0.0
        %2261 = vmatpush1.msra.mxu0 0.0
        %2262 = vmatprep.subr.mxu0 0.0
        %2263 = vmatpush1.msra.mxu0 0.0
        %2264 = vmatprep.subr.mxu0 0.0
        %2265 = vmatpush1.msra.mxu0 0.0
        %2266 = vmatprep.subr.mxu0 0.0
        %2267 = vmatpush1.msra.mxu0 0.0
        %2268 = vmatprep.subr.mxu0 0.0
        %2269 = vmatpush1.msra.mxu0 0.0
        %2270 = vmatprep.subr.mxu0 0.0
        %2271 = vmatpush1.msra.mxu0 0.0
        %2272 = vmatprep.subr.mxu0 0.0
        %2273 = vmatpush1.msra.mxu0 0.0
        %2274 = vmatprep.subr.mxu0 0.0
        %2275 = vmatpush1.msra.mxu0 0.0
        %2276 = vmatprep.subr.mxu0 0.0
        %2277 = vmatpush1.msra.mxu0 0.0
        %2278 = vmatprep.subr.mxu0 0.0
        %2279 = vmatpush1.msra.mxu0 0.0
        %2280 = vmatprep.subr.mxu0 0.0
        %2281 = vmatpush1.msra.mxu0 0.0
        %2282 = vmatprep.subr.mxu0 0.0
        %2283 = vmatpush1.msra.mxu0 0.0
        %2284 = vmatprep.subr.mxu0 0.0
        %2285 = vmatpush1.msra.mxu0 0.0
        %2286 = vmatprep.subr.mxu0 0.0
        %2287 = vmatpush1.msra.mxu0 0.0
        %2288 = vmatprep.subr.mxu0 0.0
        %2289 = vmatpush1.msra.mxu0 0.0
        %2290 = vmatprep.subr.mxu0 0.0
        %2291 = vmatpush1.msra.mxu0 0.0
        %2292 = vmatprep.subr.mxu0 0.0
        %2293 = vmatpush1.msra.mxu0 0.0
        %2294 = vmatprep.subr.mxu0 0.0
        %2295 = vmatpush1.msra.mxu0 0.0
        %2296 = vmatprep.subr.mxu0 0.0
        %2297 = vmatpush1.msra.mxu0 0.0
        %2298 = vmatprep.subr.mxu0 0.0
        %2299 = vmatpush1.msra.mxu0 0.0
        %2300 = vmatprep.subr.mxu0 0.0
        %2301 = vmatpush1.msra.mxu0 0.0
        %2302 = vmatprep.subr.mxu0 0.0
        %2303 = vmatpush1.msra.mxu0 0.0
        %2304 = vmatprep.subr.mxu0 0.0
        %2305 = vmatpush1.msra.mxu0 0.0
        %2306 = vmatprep.subr.mxu0 0.0
        %2307 = vmatpush1.msra.mxu0 0.0
        %2308 = vmatprep.subr.mxu0 0.0
        %2309 = vmatpush1.msra.mxu0 0.0
        %2310 = vmatprep.subr.mxu0 0.0
        %2311 = vmatpush1.msra.mxu0 0.0
        %2312 = vmatprep.subr.mxu0 0.0
        %2313 = vmatpush1.msra.mxu0 0.0
        %2314 = vmatprep.subr.mxu0 0.0
        %2315 = vmatpush1.msra.mxu0 0.0
        %2316 = vmatprep.subr.mxu0 0.0
        %2317 = vmatpush1.msra.mxu0 0.0
        %2318 = vmatprep.subr.mxu0 0.0
        %2319 = vmatpush1.msra.mxu0 0.0
        %2320 = vmatprep.subr.mxu0 0.0
        %2321 = vmatpush1.msra.mxu0 0.0
        %2322 = vmatprep.mubr.f32.mxu0 0.0
        %2323 = vmatmul.mubr.f32.gmra.mrb[0].mxu0 %v2256
        %v2324 = vpop.f32.mrb[0].mxu0
        %v2325 = vadd.f32 %v2138, %v2324
        %v2326 = vpop.f32.mrb[0].mxu0
        %2327 = vdwg.mxu0
        %s2328 = sld [smem:[#allocation22]]
        %v2329 = vstv %s2328
        %v2330 = vmul.f32 %v2325, %v2329
        %s2331 = sld [smem:[#allocation23]]
        %v2332 = vstv %s2331
        %v2333 = vadd.f32 %v2330, %v2332
        %v2335 = vsel %vm1321, %v2143, 0
        %v2338 = vsel %vm1321, %v2153, 0
        %2340 = vmatprep.subr.mxu0 0.0
        %2341 = vmatpush1.xpose.msra.mxu0 %v2338
        %2342 = vmatprep.subr.mxu0 0.0
        %2343 = vmatpush1.xpose.msra.mxu0 0.0
        %2344 = vmatprep.subr.mxu0 0.0
        %2345 = vmatpush1.xpose.msra.mxu0 0.0
        %2346 = vmatprep.subr.mxu0 0.0
        %2347 = vmatpush1.xpose.msra.mxu0 0.0
        %2348 = vmatprep.subr.mxu0 0.0
        %2349 = vmatpush1.xpose.msra.mxu0 0.0
        %2350 = vmatprep.subr.mxu0 0.0
        %2351 = vmatpush1.xpose.msra.mxu0 0.0
        %2352 = vmatprep.subr.mxu0 0.0
        %2353 = vmatpush1.xpose.msra.mxu0 0.0
        %2354 = vmatprep.subr.mxu0 0.0
        %2355 = vmatpush1.xpose.msra.mxu0 0.0
        %2356 = vmatprep.subr.mxu0 0.0
        %2357 = vmatpush1.xpose.msra.mxu0 0.0
        %2358 = vmatprep.subr.mxu0 0.0
        %2359 = vmatpush1.xpose.msra.mxu0 0.0
        %2360 = vmatprep.subr.mxu0 0.0
        %2361 = vmatpush1.xpose.msra.mxu0 0.0
        %2362 = vmatprep.subr.mxu0 0.0
        %2363 = vmatpush1.xpose.msra.mxu0 0.0
        %2364 = vmatprep.subr.mxu0 0.0
        %2365 = vmatpush1.xpose.msra.mxu0 0.0
        %2366 = vmatprep.subr.mxu0 0.0
        %2367 = vmatpush1.xpose.msra.mxu0 0.0
        %2368 = vmatprep.subr.mxu0 0.0
        %2369 = vmatpush1.xpose.msra.mxu0 0.0
        %2370 = vmatprep.subr.mxu0 0.0
        %2371 = vmatpush1.xpose.msra.mxu0 0.0
        %2372 = vmatprep.subr.mxu0 0.0
        %2373 = vmatpush1.xpose.msra.mxu0 0.0
        %2374 = vmatprep.subr.mxu0 0.0
        %2375 = vmatpush1.xpose.msra.mxu0 0.0
        %2376 = vmatprep.subr.mxu0 0.0
        %2377 = vmatpush1.xpose.msra.mxu0 0.0
        %2378 = vmatprep.subr.mxu0 0.0
        %2379 = vmatpush1.xpose.msra.mxu0 0.0
        %2380 = vmatprep.subr.mxu0 0.0
        %2381 = vmatpush1.xpose.msra.mxu0 0.0
        %2382 = vmatprep.subr.mxu0 0.0
        %2383 = vmatpush1.xpose.msra.mxu0 0.0
        %2384 = vmatprep.subr.mxu0 0.0
        %2385 = vmatpush1.xpose.msra.mxu0 0.0
        %2386 = vmatprep.subr.mxu0 0.0
        %2387 = vmatpush1.xpose.msra.mxu0 0.0
        %2388 = vmatprep.subr.mxu0 0.0
        %2389 = vmatpush1.xpose.msra.mxu0 0.0
        %2390 = vmatprep.subr.mxu0 0.0
        %2391 = vmatpush1.xpose.msra.mxu0 0.0
        %2392 = vmatprep.subr.mxu0 0.0
        %2393 = vmatpush1.xpose.msra.mxu0 0.0
        %2394 = vmatprep.subr.mxu0 0.0
        %2395 = vmatpush1.xpose.msra.mxu0 0.0
        %2396 = vmatprep.subr.mxu0 0.0
        %2397 = vmatpush1.xpose.msra.mxu0 0.0
        %2398 = vmatprep.subr.mxu0 0.0
        %2399 = vmatpush1.xpose.msra.mxu0 0.0
        %2400 = vmatprep.subr.mxu0 0.0
        %2401 = vmatpush1.xpose.msra.mxu0 0.0
        %2402 = vmatprep.subr.mxu0 0.0
        %2403 = vmatpush1.xpose.msra.mxu0 0.0
        %2404 = vmatprep.mubr.f32.mxu0 0.0
        %2405 = vmatmul.mubr.f32.gmra.mrb[0].mxu0 %v2335
        %v2406 = vpop.f32.mrb[0].mxu0
        %v2407 = vadd.f32 0.0, %v2406
        %v2408 = vpop.f32.mrb[0].mxu0
        %2409 = vdwg.mxu0
        %v2410 = vmul.f32 %v2407, 0.17677669
        %v2411 = vsel %vm2243, %v2410, -inf
        %2412 = vmax.xlane.f32.xlu0 %v2411
        %v2413 = vpop.xlane.xlu0 %2412
        %v2414 = vsub.f32 %v2410, %v2413
        %v2415 = vmul.f32 %v2414, 1.442695
        %v2416 = vpow.pop %v2415
        %v2417 = vsel %vm2243, %v2416, 0.0
        %2418 = vadd.xlane.f32.xlu0 %v2417
        %v2419 = vpop.xlane.xlu0 %2418
        %v2420 = vrcp.pop %v2419
        %v2421 = vmul.f32 %v2416, %v2420
        %v2423 = vsel %vm2243, %v2421, 0
        %2425 = vmatprep.subr.mxu0 0.0
        %2426 = vmatpush1.msra.mxu0 %v2163
        %2427 = vmatprep.subr.mxu0 0.0
        %2428 = vmatpush1.msra.mxu0 0.0
        %2429 = vmatprep.subr.mxu0 0.0
        %2430 = vmatpush1.msra.mxu0 0.0
        %2431 = vmatprep.subr.mxu0 0.0
        %2432 = vmatpush1.msra.mxu0 0.0
        %2433 = vmatprep.subr.mxu0 0.0
        %2434 = vmatpush1.msra.mxu0 0.0
        %2435 = vmatprep.subr.mxu0 0.0
        %2436 = vmatpush1.msra.mxu0 0.0
        %2437 = vmatprep.subr.mxu0 0.0
        %2438 = vmatpush1.msra.mxu0 0.0
        %2439 = vmatprep.subr.mxu0 0.0
        %2440 = vmatpush1.msra.mxu0 0.0
        %2441 = vmatprep.subr.mxu0 0.0
        %2442 = vmatpush1.msra.mxu0 0.0
        %2443 = vmatprep.subr.mxu0 0.0
        %2444 = vmatpush1.msra.mxu0 0.0
        %2445 = vmatprep.subr.mxu0 0.0
        %2446 = vmatpush1.msra.mxu0 0.0
        %2447 = vmatprep.subr.mxu0 0.0
        %2448 = vmatpush1.msra.mxu0 0.0
        %2449 = vmatprep.subr.mxu0 0.0
        %2450 = vmatpush1.msra.mxu0 0.0
        %2451 = vmatprep.subr.mxu0 0.0
        %2452 = vmatpush1.msra.mxu0 0.0
        %2453 = vmatprep.subr.mxu0 0.0
        %2454 = vmatpush1.msra.mxu0 0.0
        %2455 = vmatprep.subr.mxu0 0.0
        %2456 = vmatpush1.msra.mxu0 0.0
        %2457 = vmatprep.subr.mxu0 0.0
        %2458 = vmatpush1.msra.mxu0 0.0
        %2459 = vmatprep.subr.mxu0 0.0
        %2460 = vmatpush1.msra.mxu0 0.0
        %2461 = vmatprep.subr.mxu0 0.0
        %2462 = vmatpush1.msra.mxu0 0.0
        %2463 = vmatprep.subr.mxu0 0.0
        %2464 = vmatpush1.msra.mxu0 0.0
        %2465 = vmatprep.subr.mxu0 0.0
        %2466 = vmatpush1.msra.mxu0 0.0
        %2467 = vmatprep.subr.mxu0 0.0
        %2468 = vmatpush1.msra.mxu0 0.0
        %2469 = vmatprep.subr.mxu0 0.0
        %2470 = vmatpush1.msra.mxu0 0.0
        %2471 = vmatprep.subr.mxu0 0.0
        %2472 = vmatpush1.msra.mxu0 0.0
        %2473 = vmatprep.subr.mxu0 0.0
        %2474 = vmatpush1.msra.mxu0 0.0
        %2475 = vmatprep.subr.mxu0 0.0
        %2476 = vmatpush1.msra.mxu0 0.0
        %2477 = vmatprep.subr.mxu0 0.0
        %2478 = vmatpush1.msra.mxu0 0.0
        %2479 = vmatprep.subr.mxu0 0.0
        %2480 = vmatpush1.msra.mxu0 0.0
        %2481 = vmatprep.subr.mxu0 0.0
        %2482 = vmatpush1.msra.mxu0 0.0
        %2483 = vmatprep.subr.mxu0 0.0
        %2484 = vmatpush1.msra.mxu0 0.0
        %2485 = vmatprep.subr.mxu0 0.0
        %2486 = vmatpush1.msra.mxu0 0.0
        %2487 = vmatprep.subr.mxu0 0.0
        %2488 = vmatpush1.msra.mxu0 0.0
        %2489 = vmatprep.mubr.f32.mxu0 0.0
        %2490 = vmatmul.mubr.f32.gmra.mrb[0].mxu0 %v2423
        %v2491 = vpop.f32.mrb[0].mxu0
        %v2492 = vadd.f32 %v2143, %v2491
        %v2493 = vpop.f32.mrb[0].mxu0
        %2494 = vdwg.mxu0
        %s2495 = sld [smem:[#allocation22 + $0x1]]
        %v2496 = vstv %s2495
        %v2497 = vmul.f32 %v2492, %v2496
        %s2498 = sld [smem:[#allocation23 + $0x1]]
        %v2499 = vstv %s2498
        %v2500 = vadd.f32 %v2497, %v2499
        %v2502 = vsel %vm1321, %v2333, 0
        %2504 = vmatprep.subr.mxu0 0.0
        %2505 = vmatpush1.msra.mxu0 %v1430
        %2506 = vmatprep.subr.mxu0 0.0
        %2507 = vmatpush1.msra.mxu0 %v1431
        %2508 = vmatprep.subr.mxu0 0.0
        %2509 = vmatpush1.msra.mxu0 %v1432
        %2510 = vmatprep.subr.mxu0 0.0
        %2511 = vmatpush1.msra.mxu0 %v1433
        %2512 = vmatprep.subr.mxu0 0.0
        %2513 = vmatpush1.msra.mxu0 0.0
        %2514 = vmatprep.subr.mxu0 0.0
        %2515 = vmatpush1.msra.mxu0 0.0
        %2516 = vmatprep.subr.mxu0 0.0
        %2517 = vmatpush1.msra.mxu0 0.0
        %2518 = vmatprep.subr.mxu0 0.0
        %2519 = vmatpush1.msra.mxu0 0.0
        %2520 = vmatprep.subr.mxu0 0.0
        %2521 = vmatpush1.msra.mxu0 0.0
        %2522 = vmatprep.subr.mxu0 0.0
        %2523 = vmatpush1.msra.mxu0 0.0
        %2524 = vmatprep.subr.mxu0 0.0
        %2525 = vmatpush1.msra.mxu0 0.0
        %2526 = vmatprep.subr.mxu0 0.0
        %2527 = vmatpush1.msra.mxu0 0.0
        %2528 = vmatprep.subr.mxu0 0.0
        %2529 = vmatpush1.msra.mxu0 0.0
        %2530 = vmatprep.subr.mxu0 0.0
        %2531 = vmatpush1.msra.mxu0 0.0
        %2532 = vmatprep.subr.mxu0 0.0
        %2533 = vmatpush1.msra.mxu0 0.0
        %2534 = vmatprep.subr.mxu0 0.0
        %2535 = vmatpush1.msra.mxu0 0.0
        %2536 = vmatprep.subr.mxu0 0.0
        %2537 = vmatpush1.msra.mxu0 0.0
        %2538 = vmatprep.subr.mxu0 0.0
        %2539 = vmatpush1.msra.mxu0 0.0
        %2540 = vmatprep.subr.mxu0 0.0
        %2541 = vmatpush1.msra.mxu0 0.0
        %2542 = vmatprep.subr.mxu0 0.0
        %2543 = vmatpush1.msra.mxu0 0.0
        %2544 = vmatprep.subr.mxu0 0.0
        %2545 = vmatpush1.msra.mxu0 0.0
        %2546 = vmatprep.subr.mxu0 0.0
        %2547 = vmatpush1.msra.mxu0 0.0
        %2548 = vmatprep.subr.mxu0 0.0
        %2549 = vmatpush1.msra.mxu0 0.0
        %2550 = vmatprep.subr.mxu0 0.0
        %2551 = vmatpush1.msra.mxu0 0.0
        %2552 = vmatprep.subr.mxu0 0.0
        %2553 = vmatpush1.msra.mxu0 0.0
        %2554 = vmatprep.subr.mxu0 0.0
        %2555 = vmatpush1.msra.mxu0 0.0
        %2556 = vmatprep.subr.mxu0 0.0
        %2557 = vmatpush1.msra.mxu0 0.0
        %2558 = vmatprep.subr.mxu0 0.0
        %2559 = vmatpush1.msra.mxu0 0.0
        %2560 = vmatprep.subr.mxu0 0.0
        %2561 = vmatpush1.msra.mxu0 0.0
        %2562 = vmatprep.subr.mxu0 0.0
        %2563 = vmatpush1.msra.mxu0 0.0
        %2564 = vmatprep.subr.mxu0 0.0
        %2565 = vmatpush1.msra.mxu0 0.0
        %2566 = vmatprep.subr.mxu0 0.0
        %2567 = vmatpush1.msra.mxu0 0.0
        %2568 = vmatprep.mubr.f32.mxu0 0.0
        %2569 = vmatmul.mubr.f32.gmra.mrb[0].mxu0 %v2502
        %v2570 = vpop.f32.mrb[0].mxu0
        %v2571 = vadd.f32 0.0, %v2570
        %v2572 = vpop.f32.mrb[0].mxu0
        %2573 = vdwg.mxu0
        %2574 = vmatprep.subr.mxu0 0.0
        %2575 = vmatpush1.msra.mxu0 %v1434
        %2576 = vmatprep.subr.mxu0 0.0
        %2577 = vmatpush1.msra.mxu0 %v1435
        %2578 = vmatprep.subr.mxu0 0.0
        %2579 = vmatpush1.msra.mxu0 %v1436
        %2580 = vmatprep.subr.mxu0 0.0
        %2581 = vmatpush1.msra.mxu0 %v1437
        %2582 = vmatprep.subr.mxu0 0.0
        %2583 = vmatpush1.msra.mxu0 0.0
        %2584 = vmatprep.subr.mxu0 0.0
        %2585 = vmatpush1.msra.mxu0 0.0
        %2586 = vmatprep.subr.mxu0 0.0
        %2587 = vmatpush1.msra.mxu0 0.0
        %2588 = vmatprep.subr.mxu0 0.0
        %2589 = vmatpush1.msra.mxu0 0.0
        %2590 = vmatprep.subr.mxu0 0.0
        %2591 = vmatpush1.msra.mxu0 0.0
        %2592 = vmatprep.subr.mxu0 0.0
        %2593 = vmatpush1.msra.mxu0 0.0
        %2594 = vmatprep.subr.mxu0 0.0
        %2595 = vmatpush1.msra.mxu0 0.0
        %2596 = vmatprep.subr.mxu0 0.0
        %2597 = vmatpush1.msra.mxu0 0.0
        %2598 = vmatprep.subr.mxu0 0.0
        %2599 = vmatpush1.msra.mxu0 0.0
        %2600 = vmatprep.subr.mxu0 0.0
        %2601 = vmatpush1.msra.mxu0 0.0
        %2602 = vmatprep.subr.mxu0 0.0
        %2603 = vmatpush1.msra.mxu0 0.0
        %2604 = vmatprep.subr.mxu0 0.0
        %2605 = vmatpush1.msra.mxu0 0.0
        %2606 = vmatprep.subr.mxu0 0.0
        %2607 = vmatpush1.msra.mxu0 0.0
        %2608 = vmatprep.subr.mxu0 0.0
        %2609 = vmatpush1.msra.mxu0 0.0
        %2610 = vmatprep.subr.mxu0 0.0
        %2611 = vmatpush1.msra.mxu0 0.0
        %2612 = vmatprep.subr.mxu0 0.0
        %2613 = vmatpush1.msra.mxu0 0.0
        %2614 = vmatprep.subr.mxu0 0.0
        %2615 = vmatpush1.msra.mxu0 0.0
        %2616 = vmatprep.subr.mxu0 0.0
        %2617 = vmatpush1.msra.mxu0 0.0
        %2618 = vmatprep.subr.mxu0 0.0
        %2619 = vmatpush1.msra.mxu0 0.0
        %2620 = vmatprep.subr.mxu0 0.0
        %2621 = vmatpush1.msra.mxu0 0.0
        %2622 = vmatprep.subr.mxu0 0.0
        %2623 = vmatpush1.msra.mxu0 0.0
        %2624 = vmatprep.subr.mxu0 0.0
        %2625 = vmatpush1.msra.mxu0 0.0
        %2626 = vmatprep.subr.mxu0 0.0
        %2627 = vmatpush1.msra.mxu0 0.0
        %2628 = vmatprep.subr.mxu0 0.0
        %2629 = vmatpush1.msra.mxu0 0.0
        %2630 = vmatprep.subr.mxu0 0.0
        %2631 = vmatpush1.msra.mxu0 0.0
        %2632 = vmatprep.subr.mxu0 0.0
        %2633 = vmatpush1.msra.mxu0 0.0
        %2634 = vmatprep.subr.mxu0 0.0
        %2635 = vmatpush1.msra.mxu0 0.0
        %2636 = vmatprep.subr.mxu0 0.0
        %2637 = vmatpush1.msra.mxu0 0.0
        %2638 = vmatprep.mubr.f32.mxu0 0.0
        %2639 = vmatmul.mubr.f32.gmra.mrb[0].mxu0 %v2502
        %v2640 = vpop.f32.mrb[0].mxu0
        %v2641 = vadd.f32 0.0, %v2640
        %v2642 = vpop.f32.mrb[0].mxu0
        %2643 = vdwg.mxu0
        %v2645 = vsel %vm1321, %v2500, 0
        %2647 = vmatprep.subr.mxu0 0.0
        %2648 = vmatpush1.msra.mxu0 %v1430
        %2649 = vmatprep.subr.mxu0 0.0
        %2650 = vmatpush1.msra.mxu0 %v1431
        %2651 = vmatprep.subr.mxu0 0.0
        %2652 = vmatpush1.msra.mxu0 %v1432
        %2653 = vmatprep.subr.mxu0 0.0
        %2654 = vmatpush1.msra.mxu0 %v1433
        %2655 = vmatprep.subr.mxu0 0.0
        %2656 = vmatpush1.msra.mxu0 0.0
        %2657 = vmatprep.subr.mxu0 0.0
        %2658 = vmatpush1.msra.mxu0 0.0
        %2659 = vmatprep.subr.mxu0 0.0
        %2660 = vmatpush1.msra.mxu0 0.0
        %2661 = vmatprep.subr.mxu0 0.0
        %2662 = vmatpush1.msra.mxu0 0.0
        %2663 = vmatprep.subr.mxu0 0.0
        %2664 = vmatpush1.msra.mxu0 0.0
        %2665 = vmatprep.subr.mxu0 0.0
        %2666 = vmatpush1.msra.mxu0 0.0
        %2667 = vmatprep.subr.mxu0 0.0
        %2668 = vmatpush1.msra.mxu0 0.0
        %2669 = vmatprep.subr.mxu0 0.0
        %2670 = vmatpush1.msra.mxu0 0.0
        %2671 = vmatprep.subr.mxu0 0.0
        %2672 = vmatpush1.msra.mxu0 0.0
        %2673 = vmatprep.subr.mxu0 0.0
        %2674 = vmatpush1.msra.mxu0 0.0
        %2675 = vmatprep.subr.mxu0 0.0
        %2676 = vmatpush1.msra.mxu0 0.0
        %2677 = vmatprep.subr.mxu0 0.0
        %2678 = vmatpush1.msra.mxu0 0.0
        %2679 = vmatprep.subr.mxu0 0.0
        %2680 = vmatpush1.msra.mxu0 0.0
        %2681 = vmatprep.subr.mxu0 0.0
        %2682 = vmatpush1.msra.mxu0 0.0
        %2683 = vmatprep.subr.mxu0 0.0
        %2684 = vmatpush1.msra.mxu0 0.0
        %2685 = vmatprep.subr.mxu0 0.0
        %2686 = vmatpush1.msra.mxu0 0.0
        %2687 = vmatprep.subr.mxu0 0.0
        %2688 = vmatpush1.msra.mxu0 0.0
        %2689 = vmatprep.subr.mxu0 0.0
        %2690 = vmatpush1.msra.mxu0 0.0
        %2691 = vmatprep.subr.mxu0 0.0
        %2692 = vmatpush1.msra.mxu0 0.0
        %2693 = vmatprep.subr.mxu0 0.0
        %2694 = vmatpush1.msra.mxu0 0.0
        %2695 = vmatprep.subr.mxu0 0.0
        %2696 = vmatpush1.msra.mxu0 0.0
        %2697 = vmatprep.subr.mxu0 0.0
        %2698 = vmatpush1.msra.mxu0 0.0
        %2699 = vmatprep.subr.mxu0 0.0
        %2700 = vmatpush1.msra.mxu0 0.0
        %2701 = vmatprep.subr.mxu0 0.0
        %2702 = vmatpush1.msra.mxu0 0.0
        %2703 = vmatprep.subr.mxu0 0.0
        %2704 = vmatpush1.msra.mxu0 0.0
        %2705 = vmatprep.subr.mxu0 0.0
        %2706 = vmatpush1.msra.mxu0 0.0
        %2707 = vmatprep.subr.mxu0 0.0
        %2708 = vmatpush1.msra.mxu0 0.0
        %2709 = vmatprep.subr.mxu0 0.0
        %2710 = vmatpush1.msra.mxu0 0.0
        %2711 = vmatprep.mubr.f32.mxu0 0.0
        %2712 = vmatmul.mubr.f32.gmra.mrb[0].mxu0 %v2645
        %v2713 = vpop.f32.mrb[0].mxu0
        %v2714 = vadd.f32 0.0, %v2713
        %v2715 = vpop.f32.mrb[0].mxu0
        %2716 = vdwg.mxu0
        %2717 = vmatprep.subr.mxu0 0.0
        %2718 = vmatpush1.msra.mxu0 %v1434
        %2719 = vmatprep.subr.mxu0 0.0
        %2720 = vmatpush1.msra.mxu0 %v1435
        %2721 = vmatprep.subr.mxu0 0.0
        %2722 = vmatpush1.msra.mxu0 %v1436
        %2723 = vmatprep.subr.mxu0 0.0
        %2724 = vmatpush1.msra.mxu0 %v1437
        %2725 = vmatprep.subr.mxu0 0.0
        %2726 = vmatpush1.msra.mxu0 0.0
        %2727 = vmatprep.subr.mxu0 0.0
        %2728 = vmatpush1.msra.mxu0 0.0
        %2729 = vmatprep.subr.mxu0 0.0
        %2730 = vmatpush1.msra.mxu0 0.0
        %2731 = vmatprep.subr.mxu0 0.0
        %2732 = vmatpush1.msra.mxu0 0.0
        %2733 = vmatprep.subr.mxu0 0.0
        %2734 = vmatpush1.msra.mxu0 0.0
        %2735 = vmatprep.subr.mxu0 0.0
        %2736 = vmatpush1.msra.mxu0 0.0
        %2737 = vmatprep.subr.mxu0 0.0
        %2738 = vmatpush1.msra.mxu0 0.0
        %2739 = vmatprep.subr.mxu0 0.0
        %2740 = vmatpush1.msra.mxu0 0.0
        %2741 = vmatprep.subr.mxu0 0.0
        %2742 = vmatpush1.msra.mxu0 0.0
        %2743 = vmatprep.subr.mxu0 0.0
        %2744 = vmatpush1.msra.mxu0 0.0
        %2745 = vmatprep.subr.mxu0 0.0
        %2746 = vmatpush1.msra.mxu0 0.0
        %2747 = vmatprep.subr.mxu0 0.0
        %2748 = vmatpush1.msra.mxu0 0.0
        %2749 = vmatprep.subr.mxu0 0.0
        %2750 = vmatpush1.msra.mxu0 0.0
        %2751 = vmatprep.subr.mxu0 0.0
        %2752 = vmatpush1.msra.mxu0 0.0
        %2753 = vmatprep.subr.mxu0 0.0
        %2754 = vmatpush1.msra.mxu0 0.0
        %2755 = vmatprep.subr.mxu0 0.0
        %2756 = vmatpush1.msra.mxu0 0.0
        %2757 = vmatprep.subr.mxu0 0.0
        %2758 = vmatpush1.msra.mxu0 0.0
        %2759 = vmatprep.subr.mxu0 0.0
        %2760 = vmatpush1.msra.mxu0 0.0
        %2761 = vmatprep.subr.mxu0 0.0
        %2762 = vmatpush1.msra.mxu0 0.0
        %2763 = vmatprep.subr.mxu0 0.0
        %2764 = vmatpush1.msra.mxu0 0.0
        %2765 = vmatprep.subr.mxu0 0.0
        %2766 = vmatpush1.msra.mxu0 0.0
        %2767 = vmatprep.subr.mxu0 0.0
        %2768 = vmatpush1.msra.mxu0 0.0
        %2769 = vmatprep.subr.mxu0 0.0
        %2770 = vmatpush1.msra.mxu0 0.0
        %2771 = vmatprep.subr.mxu0 0.0
        %2772 = vmatpush1.msra.mxu0 0.0
        %2773 = vmatprep.subr.mxu0 0.0
        %2774 = vmatpush1.msra.mxu0 0.0
        %2775 = vmatprep.subr.mxu0 0.0
        %2776 = vmatpush1.msra.mxu0 0.0
        %2777 = vmatprep.subr.mxu0 0.0
        %2778 = vmatpush1.msra.mxu0 0.0
        %2779 = vmatprep.subr.mxu0 0.0
        %2780 = vmatpush1.msra.mxu0 0.0
        %2781 = vmatprep.mubr.f32.mxu0 0.0
        %2782 = vmatmul.mubr.f32.gmra.mrb[0].mxu0 %v2645
        %v2783 = vpop.f32.mrb[0].mxu0
        %v2784 = vadd.f32 0.0, %v2783
        %v2785 = vpop.f32.mrb[0].mxu0
        %2786 = vdwg.mxu0
        %v2787 = vld [vmem:[#allocation25] sm:$0xff]
        %v2788 = vld [vmem:[#allocation25 + $0x8] sm:$0xff]
        %v2789 = vld [vmem:[#allocation25 + $0x10] sm:$0xff]
        %v2790 = vld [vmem:[%s37] sm:$0xff]
        %v2791 = vld [vmem:[%s37 + $0x8] sm:$0xff]
        %v2792 = vld [vmem:[%s37 + $0x10] sm:$0xff]
        %2794 = vset.pattern.permute.xlu0 0
        %2795 = vperm.xlu0 %2794, %v2790
        %v2796 = vpop.permute.xlu0 %2795
        %2799 = vset.pattern.permute.xlu0 0
        %2800 = vperm.xlu0 %2799, %v2791
        %v2801 = vpop.permute.xlu0 %2800
        %2804 = vset.pattern.permute.xlu0 0
        %2805 = vperm.xlu0 %2804, %v2792
        %v2806 = vpop.permute.xlu0 %2805
        %vm2808 = vcmask 392192
        %v2810 = vsel %vm2808, %v2787, 0
        %v2813 = vsel %vm2808, %v2788, 0
        %v2816 = vsel %vm2808, %v2789, 0
        %2818 = vmatprep.subr.mxu0 0.0
        %2819 = vmatpush1.msra.mxu0 %v2571
        %2820 = vmatprep.subr.mxu0 0.0
        %2821 = vmatpush1.msra.mxu0 %v2333
        %2822 = vmatprep.subr.mxu0 0.0
        %2823 = vmatpush1.msra.mxu0 %v2641
        %2824 = vmatprep.subr.mxu0 0.0
        %2825 = vmatpush1.msra.mxu0 %v2714
        %2826 = vmatprep.subr.mxu0 0.0
        %2827 = vmatpush1.msra.mxu0 %v2500
        %2828 = vmatprep.subr.mxu0 0.0
        %2829 = vmatpush1.msra.mxu0 %v2784
        %2830 = vmatprep.subr.mxu0 0.0
        %2831 = vmatpush1.msra.mxu0 0.0
        %2832 = vmatprep.subr.mxu0 0.0
        %2833 = vmatpush1.msra.mxu0 0.0
        %2834 = vmatprep.subr.mxu0 0.0
        %2835 = vmatpush1.msra.mxu0 0.0
        %2836 = vmatprep.subr.mxu0 0.0
        %2837 = vmatpush1.msra.mxu0 0.0
        %2838 = vmatprep.subr.mxu0 0.0
        %2839 = vmatpush1.msra.mxu0 0.0
        %2840 = vmatprep.subr.mxu0 0.0
        %2841 = vmatpush1.msra.mxu0 0.0
        %2842 = vmatprep.subr.mxu0 0.0
        %2843 = vmatpush1.msra.mxu0 0.0
        %2844 = vmatprep.subr.mxu0 0.0
        %2845 = vmatpush1.msra.mxu0 0.0
        %2846 = vmatprep.subr.mxu0 0.0
        %2847 = vmatpush1.msra.mxu0 0.0
        %2848 = vmatprep.subr.mxu0 0.0
        %2849 = vmatpush1.msra.mxu0 0.0
        %2850 = vmatprep.subr.mxu0 0.0
        %2851 = vmatpush1.msra.mxu0 0.0
        %2852 = vmatprep.subr.mxu0 0.0
        %2853 = vmatpush1.msra.mxu0 0.0
        %2854 = vmatprep.subr.mxu0 0.0
        %2855 = vmatpush1.msra.mxu0 0.0
        %2856 = vmatprep.subr.mxu0 0.0
        %2857 = vmatpush1.msra.mxu0 0.0
        %2858 = vmatprep.subr.mxu0 0.0
        %2859 = vmatpush1.msra.mxu0 0.0
        %2860 = vmatprep.subr.mxu0 0.0
        %2861 = vmatpush1.msra.mxu0 0.0
        %2862 = vmatprep.subr.mxu0 0.0
        %2863 = vmatpush1.msra.mxu0 0.0
        %2864 = vmatprep.subr.mxu0 0.0
        %2865 = vmatpush1.msra.mxu0 0.0
        %2866 = vmatprep.subr.mxu0 0.0
        %2867 = vmatpush1.msra.mxu0 0.0
        %2868 = vmatprep.subr.mxu0 0.0
        %2869 = vmatpush1.msra.mxu0 0.0
        %2870 = vmatprep.subr.mxu0 0.0
        %2871 = vmatpush1.msra.mxu0 0.0
        %2872 = vmatprep.subr.mxu0 0.0
        %2873 = vmatpush1.msra.mxu0 0.0
        %2874 = vmatprep.subr.mxu0 0.0
        %2875 = vmatpush1.msra.mxu0 0.0
        %2876 = vmatprep.subr.mxu0 0.0
        %2877 = vmatpush1.msra.mxu0 0.0
        %2878 = vmatprep.subr.mxu0 0.0
        %2879 = vmatpush1.msra.mxu0 0.0
        %2880 = vmatprep.subr.mxu0 0.0
        %2881 = vmatpush1.msra.mxu0 0.0
        %2882 = vmatprep.mubr.f32.mxu0 0.0
        %2883 = vmatmul.mubr.f32.gmra.mrb[0].mxu0 %v2810
        %v2884 = vpop.f32.mrb[0].mxu0
        %v2885 = vadd.f32 %v2796, %v2884
        %v2886 = vpop.f32.mrb[0].mxu0
        %2887 = vmatprep.mubr.f32.mxu0 0.0
        %2888 = vmatmul.mubr.f32.gmra.mrb[0].mxu0 %v2813
        %v2889 = vpop.f32.mrb[0].mxu0
        %v2890 = vadd.f32 %v2801, %v2889
        %v2891 = vpop.f32.mrb[0].mxu0
        %2892 = vmatprep.mubr.f32.mxu0 0.0
        %2893 = vmatmul.mubr.f32.gmra.mrb[0].mxu0 %v2816
        %v2894 = vpop.f32.mrb[0].mxu0
        %v2895 = vadd.f32 %v2806, %v2894
        %v2896 = vpop.f32.mrb[0].mxu0
        %2897 = vdwg.mxu0
        %v2899 = vsel %vm1321, %v2885, 0
        %v2902 = vsel %vm1321, %v2890, 0
        %2904 = vmatprep.subr.mxu0 0.0
        %2905 = vmatpush1.xpose.msra.mxu0 %v2902
        %2906 = vmatprep.subr.mxu0 0.0
        %2907 = vmatpush1.xpose.msra.mxu0 0.0
        %2908 = vmatprep.subr.mxu0 0.0
        %2909 = vmatpush1.xpose.msra.mxu0 0.0
        %2910 = vmatprep.subr.mxu0 0.0
        %2911 = vmatpush1.xpose.msra.mxu0 0.0
        %2912 = vmatprep.subr.mxu0 0.0
        %2913 = vmatpush1.xpose.msra.mxu0 0.0
        %2914 = vmatprep.subr.mxu0 0.0
        %2915 = vmatpush1.xpose.msra.mxu0 0.0
        %2916 = vmatprep.subr.mxu0 0.0
        %2917 = vmatpush1.xpose.msra.mxu0 0.0
        %2918 = vmatprep.subr.mxu0 0.0
        %2919 = vmatpush1.xpose.msra.mxu0 0.0
        %2920 = vmatprep.subr.mxu0 0.0
        %2921 = vmatpush1.xpose.msra.mxu0 0.0
        %2922 = vmatprep.subr.mxu0 0.0
        %2923 = vmatpush1.xpose.msra.mxu0 0.0
        %2924 = vmatprep.subr.mxu0 0.0
        %2925 = vmatpush1.xpose.msra.mxu0 0.0
        %2926 = vmatprep.subr.mxu0 0.0
        %2927 = vmatpush1.xpose.msra.mxu0 0.0
        %2928 = vmatprep.subr.mxu0 0.0
        %2929 = vmatpush1.xpose.msra.mxu0 0.0
        %2930 = vmatprep.subr.mxu0 0.0
        %2931 = vmatpush1.xpose.msra.mxu0 0.0
        %2932 = vmatprep.subr.mxu0 0.0
        %2933 = vmatpush1.xpose.msra.mxu0 0.0
        %2934 = vmatprep.subr.mxu0 0.0
        %2935 = vmatpush1.xpose.msra.mxu0 0.0
        %2936 = vmatprep.subr.mxu0 0.0
        %2937 = vmatpush1.xpose.msra.mxu0 0.0
        %2938 = vmatprep.subr.mxu0 0.0
        %2939 = vmatpush1.xpose.msra.mxu0 0.0
        %2940 = vmatprep.subr.mxu0 0.0
        %2941 = vmatpush1.xpose.msra.mxu0 0.0
        %2942 = vmatprep.subr.mxu0 0.0
        %2943 = vmatpush1.xpose.msra.mxu0 0.0
        %2944 = vmatprep.subr.mxu0 0.0
        %2945 = vmatpush1.xpose.msra.mxu0 0.0
        %2946 = vmatprep.subr.mxu0 0.0
        %2947 = vmatpush1.xpose.msra.mxu0 0.0
        %2948 = vmatprep.subr.mxu0 0.0
        %2949 = vmatpush1.xpose.msra.mxu0 0.0
        %2950 = vmatprep.subr.mxu0 0.0
        %2951 = vmatpush1.xpose.msra.mxu0 0.0
        %2952 = vmatprep.subr.mxu0 0.0
        %2953 = vmatpush1.xpose.msra.mxu0 0.0
        %2954 = vmatprep.subr.mxu0 0.0
        %2955 = vmatpush1.xpose.msra.mxu0 0.0
        %2956 = vmatprep.subr.mxu0 0.0
        %2957 = vmatpush1.xpose.msra.mxu0 0.0
        %2958 = vmatprep.subr.mxu0 0.0
        %2959 = vmatpush1.xpose.msra.mxu0 0.0
        %2960 = vmatprep.subr.mxu0 0.0
        %2961 = vmatpush1.xpose.msra.mxu0 0.0
        %2962 = vmatprep.subr.mxu0 0.0
        %2963 = vmatpush1.xpose.msra.mxu0 0.0
        %2964 = vmatprep.subr.mxu0 0.0
        %2965 = vmatpush1.xpose.msra.mxu0 0.0
        %2966 = vmatprep.subr.mxu0 0.0
        %2967 = vmatpush1.xpose.msra.mxu0 0.0
        %2968 = vmatprep.mubr.f32.mxu0 0.0
        %2969 = vmatmul.mubr.f32.gmra.mrb[0].mxu0 %v2899
        %v2970 = vpop.f32.mrb[0].mxu0
        %v2971 = vadd.f32 0.0, %v2970
        %v2972 = vpop.f32.mrb[0].mxu0
        %2973 = vdwg.mxu0
        %v2974 = vmul.f32 %v2971, 0.17677669
        %v2975 = vsel %vm2243, %v2974, -inf
        %2976 = vmax.xlane.f32.xlu0 %v2975
        %v2977 = vpop.xlane.xlu0 %2976
        %v2978 = vsub.f32 %v2974, %v2977
        %v2979 = vmul.f32 %v2978, 1.442695
        %v2980 = vpow.pop %v2979
        %v2981 = vsel %vm2243, %v2980, 0.0
        %2982 = vadd.xlane.f32.xlu0 %v2981
        %v2983 = vpop.xlane.xlu0 %2982
        %v2984 = vrcp.pop %v2983
        %v2985 = vmul.f32 %v2980, %v2984
        %v2987 = vsel %vm2243, %v2985, 0
        %2989 = vmatprep.subr.mxu0 0.0
        %2990 = vmatpush1.msra.mxu0 %v2895
        %2991 = vmatprep.subr.mxu0 0.0
        %2992 = vmatpush1.msra.mxu0 0.0
        %2993 = vmatprep.subr.mxu0 0.0
        %2994 = vmatpush1.msra.mxu0 0.0
        %2995 = vmatprep.subr.mxu0 0.0
        %2996 = vmatpush1.msra.mxu0 0.0
        %2997 = vmatprep.subr.mxu0 0.0
        %2998 = vmatpush1.msra.mxu0 0.0
        %2999 = vmatprep.subr.mxu0 0.0
        %3000 = vmatpush1.msra.mxu0 0.0
        %3001 = vmatprep.subr.mxu0 0.0
        %3002 = vmatpush1.msra.mxu0 0.0
        %3003 = vmatprep.subr.mxu0 0.0
        %3004 = vmatpush1.msra.mxu0 0.0
        %3005 = vmatprep.subr.mxu0 0.0
        %3006 = vmatpush1.msra.mxu0 0.0
        %3007 = vmatprep.subr.mxu0 0.0
        %3008 = vmatpush1.msra.mxu0 0.0
        %3009 = vmatprep.subr.mxu0 0.0
        %3010 = vmatpush1.msra.mxu0 0.0
        %3011 = vmatprep.subr.mxu0 0.0
        %3012 = vmatpush1.msra.mxu0 0.0
        %3013 = vmatprep.subr.mxu0 0.0
        %3014 = vmatpush1.msra.mxu0 0.0
        %3015 = vmatprep.subr.mxu0 0.0
        %3016 = vmatpush1.msra.mxu0 0.0
        %3017 = vmatprep.subr.mxu0 0.0
        %3018 = vmatpush1.msra.mxu0 0.0
        %3019 = vmatprep.subr.mxu0 0.0
        %3020 = vmatpush1.msra.mxu0 0.0
        %3021 = vmatprep.subr.mxu0 0.0
        %3022 = vmatpush1.msra.mxu0 0.0
        %3023 = vmatprep.subr.mxu0 0.0
        %3024 = vmatpush1.msra.mxu0 0.0
        %3025 = vmatprep.subr.mxu0 0.0
        %3026 = vmatpush1.msra.mxu0 0.0
        %3027 = vmatprep.subr.mxu0 0.0
        %3028 = vmatpush1.msra.mxu0 0.0
        %3029 = vmatprep.subr.mxu0 0.0
        %3030 = vmatpush1.msra.mxu0 0.0
        %3031 = vmatprep.subr.mxu0 0.0
        %3032 = vmatpush1.msra.mxu0 0.0
        %3033 = vmatprep.subr.mxu0 0.0
        %3034 = vmatpush1.msra.mxu0 0.0
        %3035 = vmatprep.subr.mxu0 0.0
        %3036 = vmatpush1.msra.mxu0 0.0
        %3037 = vmatprep.subr.mxu0 0.0
        %3038 = vmatpush1.msra.mxu0 0.0
        %3039 = vmatprep.subr.mxu0 0.0
        %3040 = vmatpush1.msra.mxu0 0.0
        %3041 = vmatprep.subr.mxu0 0.0
        %3042 = vmatpush1.msra.mxu0 0.0
        %3043 = vmatprep.subr.mxu0 0.0
        %3044 = vmatpush1.msra.mxu0 0.0
        %3045 = vmatprep.subr.mxu0 0.0
        %3046 = vmatpush1.msra.mxu0 0.0
        %3047 = vmatprep.subr.mxu0 0.0
        %3048 = vmatpush1.msra.mxu0 0.0
        %3049 = vmatprep.subr.mxu0 0.0
        %3050 = vmatpush1.msra.mxu0 0.0
        %3051 = vmatprep.subr.mxu0 0.0
        %3052 = vmatpush1.msra.mxu0 0.0
        %3053 = vmatprep.mubr.f32.mxu0 0.0
        %3054 = vmatmul.mubr.f32.gmra.mrb[0].mxu0 %v2987
        %v3055 = vpop.f32.mrb[0].mxu0
        %v3056 = vadd.f32 %v2885, %v3055
        %v3057 = vpop.f32.mrb[0].mxu0
        %3058 = vdwg.mxu0
        %s3059 = sld [smem:[#allocation2]]
        %v3060 = vstv %s3059
        %v3061 = vmul.f32 %v3056, %v3060
        %s3062 = sld [smem:[#allocation3]]
        %v3063 = vstv %s3062
        %v3064 = vadd.f32 %v3061, %v3063
        %v3065 = vld [vmem:[%s43] sm:$0xff]
        %v3066 = vld [vmem:[%s43 + $0x8] sm:$0xff]
        %v3067 = vld [vmem:[%s43 + $0x10] sm:$0xff]
        %v3068 = vld [vmem:[%s43 + $0x18] sm:$0xff]
        %v3069 = vld [vmem:[#allocation26] sm:$0x1]
        %v3071 = vlaneseq
        %v3072 = vshrl.u32 %v3071, 7
        %v3073 = vsub.s32 0, %v3072
        %v3074 = vrot.slane %v3069, %v3073
        %v3077 = vsel %vm1321, %v3064, 0
        %3079 = vmatprep.subr.mxu0 0.0
        %3080 = vmatpush1.msra.mxu0 %v3065
        %3081 = vmatprep.subr.mxu0 0.0
        %3082 = vmatpush1.msra.mxu0 %v3066
        %3083 = vmatprep.subr.mxu0 0.0
        %3084 = vmatpush1.msra.mxu0 %v3067
        %3085 = vmatprep.subr.mxu0 0.0
        %3086 = vmatpush1.msra.mxu0 %v3068
        %3087 = vmatprep.subr.mxu0 0.0
        %3088 = vmatpush1.msra.mxu0 0.0
        %3089 = vmatprep.subr.mxu0 0.0
        %3090 = vmatpush1.msra.mxu0 0.0
        %3091 = vmatprep.subr.mxu0 0.0
        %3092 = vmatpush1.msra.mxu0 0.0
        %3093 = vmatprep.subr.mxu0 0.0
        %3094 = vmatpush1.msra.mxu0 0.0
        %3095 = vmatprep.subr.mxu0 0.0
        %3096 = vmatpush1.msra.mxu0 0.0
        %3097 = vmatprep.subr.mxu0 0.0
        %3098 = vmatpush1.msra.mxu0 0.0
        %3099 = vmatprep.subr.mxu0 0.0
        %3100 = vmatpush1.msra.mxu0 0.0
        %3101 = vmatprep.subr.mxu0 0.0
        %3102 = vmatpush1.msra.mxu0 0.0
        %3103 = vmatprep.subr.mxu0 0.0
        %3104 = vmatpush1.msra.mxu0 0.0
        %3105 = vmatprep.subr.mxu0 0.0
        %3106 = vmatpush1.msra.mxu0 0.0
        %3107 = vmatprep.subr.mxu0 0.0
        %3108 = vmatpush1.msra.mxu0 0.0
        %3109 = vmatprep.subr.mxu0 0.0
        %3110 = vmatpush1.msra.mxu0 0.0
        %3111 = vmatprep.subr.mxu0 0.0
        %3112 = vmatpush1.msra.mxu0 0.0
        %3113 = vmatprep.subr.mxu0 0.0
        %3114 = vmatpush1.msra.mxu0 0.0
        %3115 = vmatprep.subr.mxu0 0.0
        %3116 = vmatpush1.msra.mxu0 0.0
        %3117 = vmatprep.subr.mxu0 0.0
        %3118 = vmatpush1.msra.mxu0 0.0
        %3119 = vmatprep.subr.mxu0 0.0
        %3120 = vmatpush1.msra.mxu0 0.0
        %3121 = vmatprep.subr.mxu0 0.0
        %3122 = vmatpush1.msra.mxu0 0.0
        %3123 = vmatprep.subr.mxu0 0.0
        %3124 = vmatpush1.msra.mxu0 0.0
        %3125 = vmatprep.subr.mxu0 0.0
        %3126 = vmatpush1.msra.mxu0 0.0
        %3127 = vmatprep.subr.mxu0 0.0
        %3128 = vmatpush1.msra.mxu0 0.0
        %3129 = vmatprep.subr.mxu0 0.0
        %3130 = vmatpush1.msra.mxu0 0.0
        %3131 = vmatprep.subr.mxu0 0.0
        %3132 = vmatpush1.msra.mxu0 0.0
        %3133 = vmatprep.subr.mxu0 0.0
        %3134 = vmatpush1.msra.mxu0 0.0
        %3135 = vmatprep.subr.mxu0 0.0
        %3136 = vmatpush1.msra.mxu0 0.0
        %3137 = vmatprep.subr.mxu0 0.0
        %3138 = vmatpush1.msra.mxu0 0.0
        %3139 = vmatprep.subr.mxu0 0.0
        %3140 = vmatpush1.msra.mxu0 0.0
        %3141 = vmatprep.subr.mxu0 0.0
        %3142 = vmatpush1.msra.mxu0 0.0
        %3143 = vmatprep.mubr.f32.mxu0 0.0
        %3144 = vmatmul.mubr.f32.gmra.mrb[0].mxu0 %v3077
        %v3145 = vpop.f32.mrb[0].mxu0
        %v3146 = vadd.f32 %v3074, %v3145
        %v3147 = vpop.f32.mrb[0].mxu0
        %3148 = vdwg.mxu0
        %v3149 = vmul.f32 %v3146, 0.5
        %v3150 = vmul.f32 %v3146, 0.70710677
        %v3151 = vand.u32 2147483647, %v3150
        %v3152 = vmul.f32 %v3151, 0.3275911
        %v3153 = vadd.f32 %v3152, 1.0
        %v3154 = vrcp.pop %v3153
        %v3155 = vmul.f32 1.0, %v3154
        %v3156 = vmul.f32 %v3155, 1.0614054
        %v3157 = vadd.f32 %v3156, -1.4531521
        %v3158 = vmul.f32 %v3157, %v3155
        %v3159 = vadd.f32 %v3158, 1.4214138
        %v3160 = vmul.f32 %v3159, %v3155
        %v3161 = vadd.f32 %v3160, -0.28449672
        %v3162 = vmul.f32 %v3161, %v3155
        %v3163 = vadd.f32 %v3162, 0.2548296
        %v3164 = vmul.f32 %v3163, %v3155
        %v3165 = vsub.f32 0.0, %v3151
        %v3166 = vmul.f32 %v3165, %v3151
        %v3167 = vmul.f32 %v3166, 1.442695
        %v3168 = vpow.pop %v3167
        %v3169 = vmul.f32 %v3164, %v3168
        %v3170 = vsub.f32 1.0, %v3169
        %vm3171 = vcmp.ge.f32.partialorder %v3150, 0.0
        %v3172 = vsub.f32 0.0, %v3170
        %v3173 = vsel %vm3171, %v3170, %v3172
        %v3174 = vadd.f32 %v3173, 1.0
        %v3175 = vmul.f32 %v3149, %v3174
        %v3176 = vld [vmem:[#allocation28] sm:$0xff]
        %v3177 = vld [vmem:[#allocation28 + $0x8] sm:$0xff]
        %v3178 = vld [vmem:[#allocation28 + $0x10] sm:$0xff]
        %v3179 = vld [vmem:[#allocation28 + $0x18] sm:$0xff]
        %v3180 = vld [vmem:[#allocation29] sm:$0x1]
        %v3182 = vlaneseq
        %v3183 = vshrl.u32 %v3182, 7
        %v3184 = vsub.s32 0, %v3183
        %v3185 = vrot.slane %v3180, %v3184
        %v3188 = vsel %vm1321, %v3175, 0
        %3190 = vmatprep.subr.mxu0 0.0
        %3191 = vmatpush1.msra.mxu0 %v3176
        %3192 = vmatprep.subr.mxu0 0.0
        %3193 = vmatpush1.msra.mxu0 %v3177
        %3194 = vmatprep.subr.mxu0 0.0
        %3195 = vmatpush1.msra.mxu0 %v3178
        %3196 = vmatprep.subr.mxu0 0.0
        %3197 = vmatpush1.msra.mxu0 %v3179
        %3198 = vmatprep.subr.mxu0 0.0
        %3199 = vmatpush1.msra.mxu0 0.0
        %3200 = vmatprep.subr.mxu0 0.0
        %3201 = vmatpush1.msra.mxu0 0.0
        %3202 = vmatprep.subr.mxu0 0.0
        %3203 = vmatpush1.msra.mxu0 0.0
        %3204 = vmatprep.subr.mxu0 0.0
        %3205 = vmatpush1.msra.mxu0 0.0
        %3206 = vmatprep.subr.mxu0 0.0
        %3207 = vmatpush1.msra.mxu0 0.0
        %3208 = vmatprep.subr.mxu0 0.0
        %3209 = vmatpush1.msra.mxu0 0.0
        %3210 = vmatprep.subr.mxu0 0.0
        %3211 = vmatpush1.msra.mxu0 0.0
        %3212 = vmatprep.subr.mxu0 0.0
        %3213 = vmatpush1.msra.mxu0 0.0
        %3214 = vmatprep.subr.mxu0 0.0
        %3215 = vmatpush1.msra.mxu0 0.0
        %3216 = vmatprep.subr.mxu0 0.0
        %3217 = vmatpush1.msra.mxu0 0.0
        %3218 = vmatprep.subr.mxu0 0.0
        %3219 = vmatpush1.msra.mxu0 0.0
        %3220 = vmatprep.subr.mxu0 0.0
        %3221 = vmatpush1.msra.mxu0 0.0
        %3222 = vmatprep.subr.mxu0 0.0
        %3223 = vmatpush1.msra.mxu0 0.0
        %3224 = vmatprep.subr.mxu0 0.0
        %3225 = vmatpush1.msra.mxu0 0.0
        %3226 = vmatprep.subr.mxu0 0.0
        %3227 = vmatpush1.msra.mxu0 0.0
        %3228 = vmatprep.subr.mxu0 0.0
        %3229 = vmatpush1.msra.mxu0 0.0
        %3230 = vmatprep.subr.mxu0 0.0
        %3231 = vmatpush1.msra.mxu0 0.0
        %3232 = vmatprep.subr.mxu0 0.0
        %3233 = vmatpush1.msra.mxu0 0.0
        %3234 = vmatprep.subr.mxu0 0.0
        %3235 = vmatpush1.msra.mxu0 0.0
        %3236 = vmatprep.subr.mxu0 0.0
        %3237 = vmatpush1.msra.mxu0 0.0
        %3238 = vmatprep.subr.mxu0 0.0
        %3239 = vmatpush1.msra.mxu0 0.0
        %3240 = vmatprep.subr.mxu0 0.0
        %3241 = vmatpush1.msra.mxu0 0.0
        %3242 = vmatprep.subr.mxu0 0.0
        %3243 = vmatpush1.msra.mxu0 0.0
        %3244 = vmatprep.subr.mxu0 0.0
        %3245 = vmatpush1.msra.mxu0 0.0
        %3246 = vmatprep.subr.mxu0 0.0
        %3247 = vmatpush1.msra.mxu0 0.0
        %3248 = vmatprep.subr.mxu0 0.0
        %3249 = vmatpush1.msra.mxu0 0.0
        %3250 = vmatprep.subr.mxu0 0.0
        %3251 = vmatpush1.msra.mxu0 0.0
        %3252 = vmatprep.subr.mxu0 0.0
        %3253 = vmatpush1.msra.mxu0 0.0
        %3254 = vmatprep.mubr.f32.mxu0 0.0
        %3255 = vmatmul.mubr.f32.gmra.mrb[0].mxu0 %v3188
        %v3256 = vpop.f32.mrb[0].mxu0
        %v3257 = vadd.f32 %v3185, %v3256
        %v3258 = vpop.f32.mrb[0].mxu0
        %3259 = vdwg.mxu0
        %v3260 = vld [vmem:[%s51] sm:$0x1]
        %v3261 = vld [vmem:[%s53] sm:$0x1]
        %v3262 = vsel %vm1321, %v3257, 0.0
        %3263 = vadd.xlane.f32.xlu0 %v3262
        %v3264 = vpop.xlane.xlu0 %3263
        %v3265 = vrcp.pop 32.0
        %v3266 = vmul.f32 %v3264, %v3265
        %v3267 = vsub.f32 %v3257, %v3266
        %v3268 = vmul.f32 %v3267, %v3267
        %v3269 = vsel %vm1321, %v3268, 0.0
        %3270 = vadd.xlane.f32.xlu0 %v3269
        %v3271 = vpop.xlane.xlu0 %3270
        %v3272 = vmul.f32 %v3271, %v3265
        %v3273 = vadd.f32 %v3272, 1e-05
        %v3274 = vrsqrt.pop %v3273
        %v3275 = vmul.f32 %v3267, %v3274
        %v3277 = vlaneseq
        %v3278 = vshrl.u32 %v3277, 7
        %v3279 = vsub.s32 0, %v3278
        %v3280 = vrot.slane %v3260, %v3279
        %v3282 = vmul.f32 %v3275, %v3280
        %v3284 = vlaneseq
        %v3285 = vshrl.u32 %v3284, 7
        %v3286 = vsub.s32 0, %v3285
        %v3287 = vrot.slane %v3261, %v3286
        %v3289 = vadd.f32 %v3282, %v3287
        %v3290 = vld [vmem:[%s55] sm:$0xff]
        %v3291 = vld [vmem:[%s55 + $0x8] sm:$0xff]
        %v3292 = vld [vmem:[%s55 + $0x10] sm:$0xff]
        %v3293 = vld [vmem:[%s55 + $0x18] sm:$0xff]
        %v3294 = vld [vmem:[%s57] sm:$0x1]
        %v3296 = vlaneseq
        %v3297 = vshrl.u32 %v3296, 7
        %v3298 = vsub.s32 0, %v3297
        %v3299 = vrot.slane %v3294, %v3298
        %v3302 = vsel %vm1321, %v3289, 0
        %3304 = vmatprep.subr.mxu0 0.0
        %3305 = vmatpush1.msra.mxu0 %v3290
        %3306 = vmatprep.subr.mxu0 0.0
        %3307 = vmatpush1.msra.mxu0 %v3291
        %3308 = vmatprep.subr.mxu0 0.0
        %3309 = vmatpush1.msra.mxu0 %v3292
        %3310 = vmatprep.subr.mxu0 0.0
        %3311 = vmatpush1.msra.mxu0 %v3293
        %3312 = vmatprep.subr.mxu0 0.0
        %3313 = vmatpush1.msra.mxu0 0.0
        %3314 = vmatprep.subr.mxu0 0.0
        %3315 = vmatpush1.msra.mxu0 0.0
        %3316 = vmatprep.subr.mxu0 0.0
        %3317 = vmatpush1.msra.mxu0 0.0
        %3318 = vmatprep.subr.mxu0 0.0
        %3319 = vmatpush1.msra.mxu0 0.0
        %3320 = vmatprep.subr.mxu0 0.0
        %3321 = vmatpush1.msra.mxu0 0.0
        %3322 = vmatprep.subr.mxu0 0.0
        %3323 = vmatpush1.msra.mxu0 0.0
        %3324 = vmatprep.subr.mxu0 0.0
        %3325 = vmatpush1.msra.mxu0 0.0
        %3326 = vmatprep.subr.mxu0 0.0
        %3327 = vmatpush1.msra.mxu0 0.0
        %3328 = vmatprep.subr.mxu0 0.0
        %3329 = vmatpush1.msra.mxu0 0.0
        %3330 = vmatprep.subr.mxu0 0.0
        %3331 = vmatpush1.msra.mxu0 0.0
        %3332 = vmatprep.subr.mxu0 0.0
        %3333 = vmatpush1.msra.mxu0 0.0
        %3334 = vmatprep.subr.mxu0 0.0
        %3335 = vmatpush1.msra.mxu0 0.0
        %3336 = vmatprep.subr.mxu0 0.0
        %3337 = vmatpush1.msra.mxu0 0.0
        %3338 = vmatprep.subr.mxu0 0.0
        %3339 = vmatpush1.msra.mxu0 0.0
        %3340 = vmatprep.subr.mxu0 0.0
        %3341 = vmatpush1.msra.mxu0 0.0
        %3342 = vmatprep.subr.mxu0 0.0
        %3343 = vmatpush1.msra.mxu0 0.0
        %3344 = vmatprep.subr.mxu0 0.0
        %3345 = vmatpush1.msra.mxu0 0.0
        %3346 = vmatprep.subr.mxu0 0.0
        %3347 = vmatpush1.msra.mxu0 0.0
        %3348 = vmatprep.subr.mxu0 0.0
        %3349 = vmatpush1.msra.mxu0 0.0
        %3350 = vmatprep.subr.mxu0 0.0
        %3351 = vmatpush1.msra.mxu0 0.0
        %3352 = vmatprep.subr.mxu0 0.0
        %3353 = vmatpush1.msra.mxu0 0.0
        %3354 = vmatprep.subr.mxu0 0.0
        %3355 = vmatpush1.msra.mxu0 0.0
        %3356 = vmatprep.subr.mxu0 0.0
        %3357 = vmatpush1.msra.mxu0 0.0
        %3358 = vmatprep.subr.mxu0 0.0
        %3359 = vmatpush1.msra.mxu0 0.0
        %3360 = vmatprep.subr.mxu0 0.0
        %3361 = vmatpush1.msra.mxu0 0.0
        %3362 = vmatprep.subr.mxu0 0.0
        %3363 = vmatpush1.msra.mxu0 0.0
        %3364 = vmatprep.subr.mxu0 0.0
        %3365 = vmatpush1.msra.mxu0 0.0
        %3366 = vmatprep.subr.mxu0 0.0
        %3367 = vmatpush1.msra.mxu0 0.0
        %3368 = vmatprep.mubr.f32.mxu0 0.0
        %3369 = vmatmul.mubr.f32.gmra.mrb[0].mxu0 %v3302
        %v3370 = vpop.f32.mrb[0].mxu0
        %v3371 = vadd.f32 %v3299, %v3370
        %v3372 = vpop.f32.mrb[0].mxu0
        %3373 = vdwg.mxu0
        %v3374 = vmax.f32 %v3371, 0.0
        %v3375 = vld [vmem:[#allocation31] sm:$0xff]
        %v3376 = vld [vmem:[#allocation31 + $0x8] sm:$0xff]
        %v3377 = vld [vmem:[#allocation31 + $0x10] sm:$0xff]
        %v3378 = vld [vmem:[#allocation31 + $0x18] sm:$0xff]
        %v3379 = vld [vmem:[%s61] sm:$0x1]
        %v3381 = vlaneseq
        %v3382 = vshrl.u32 %v3381, 7
        %v3383 = vsub.s32 0, %v3382
        %v3384 = vrot.slane %v3379, %v3383
        %v3387 = vsel %vm1321, %v3374, 0
        %3389 = vmatprep.subr.mxu0 0.0
        %3390 = vmatpush1.msra.mxu0 %v3375
        %3391 = vmatprep.subr.mxu0 0.0
        %3392 = vmatpush1.msra.mxu0 %v3376
        %3393 = vmatprep.subr.mxu0 0.0
        %3394 = vmatpush1.msra.mxu0 %v3377
        %3395 = vmatprep.subr.mxu0 0.0
        %3396 = vmatpush1.msra.mxu0 %v3378
        %3397 = vmatprep.subr.mxu0 0.0
        %3398 = vmatpush1.msra.mxu0 0.0
        %3399 = vmatprep.subr.mxu0 0.0
        %3400 = vmatpush1.msra.mxu0 0.0
        %3401 = vmatprep.subr.mxu0 0.0
        %3402 = vmatpush1.msra.mxu0 0.0
        %3403 = vmatprep.subr.mxu0 0.0
        %3404 = vmatpush1.msra.mxu0 0.0
        %3405 = vmatprep.subr.mxu0 0.0
        %3406 = vmatpush1.msra.mxu0 0.0
        %3407 = vmatprep.subr.mxu0 0.0
        %3408 = vmatpush1.msra.mxu0 0.0
        %3409 = vmatprep.subr.mxu0 0.0
        %3410 = vmatpush1.msra.mxu0 0.0
        %3411 = vmatprep.subr.mxu0 0.0
        %3412 = vmatpush1.msra.mxu0 0.0
        %3413 = vmatprep.subr.mxu0 0.0
        %3414 = vmatpush1.msra.mxu0 0.0
        %3415 = vmatprep.subr.mxu0 0.0
        %3416 = vmatpush1.msra.mxu0 0.0
        %3417 = vmatprep.subr.mxu0 0.0
        %3418 = vmatpush1.msra.mxu0 0.0
        %3419 = vmatprep.subr.mxu0 0.0
        %3420 = vmatpush1.msra.mxu0 0.0
        %3421 = vmatprep.subr.mxu0 0.0
        %3422 = vmatpush1.msra.mxu0 0.0
        %3423 = vmatprep.subr.mxu0 0.0
        %3424 = vmatpush1.msra.mxu0 0.0
        %3425 = vmatprep.subr.mxu0 0.0
        %3426 = vmatpush1.msra.mxu0 0.0
        %3427 = vmatprep.subr.mxu0 0.0
        %3428 = vmatpush1.msra.mxu0 0.0
        %3429 = vmatprep.subr.mxu0 0.0
        %3430 = vmatpush1.msra.mxu0 0.0
        %3431 = vmatprep.subr.mxu0 0.0
        %3432 = vmatpush1.msra.mxu0 0.0
        %3433 = vmatprep.subr.mxu0 0.0
        %3434 = vmatpush1.msra.mxu0 0.0
        %3435 = vmatprep.subr.mxu0 0.0
        %3436 = vmatpush1.msra.mxu0 0.0
        %3437 = vmatprep.subr.mxu0 0.0
        %3438 = vmatpush1.msra.mxu0 0.0
        %3439 = vmatprep.subr.mxu0 0.0
        %3440 = vmatpush1.msra.mxu0 0.0
        %3441 = vmatprep.subr.mxu0 0.0
        %3442 = vmatpush1.msra.mxu0 0.0
        %3443 = vmatprep.subr.mxu0 0.0
        %3444 = vmatpush1.msra.mxu0 0.0
        %3445 = vmatprep.subr.mxu0 0.0
        %3446 = vmatpush1.msra.mxu0 0.0
        %3447 = vmatprep.subr.mxu0 0.0
        %3448 = vmatpush1.msra.mxu0 0.0
        %3449 = vmatprep.subr.mxu0 0.0
        %3450 = vmatpush1.msra.mxu0 0.0
        %3451 = vmatprep.subr.mxu0 0.0
        %3452 = vmatpush1.msra.mxu0 0.0
        %3453 = vmatprep.mubr.f32.mxu0 0.0
        %3454 = vmatmul.mubr.f32.gmra.mrb[0].mxu0 %v3387
        %v3455 = vpop.f32.mrb[0].mxu0
        %v3456 = vadd.f32 %v3384, %v3455
        %v3457 = vpop.f32.mrb[0].mxu0
        %3458 = vdwg.mxu0
        %3459 = vst [vmem:[%s1183] sm:$0xff] %v3456
        %s3460 = sand.u32 %s758, 1
        %s3461 = scalar_lea.sflag [#allocation6], %s3460
        %s3462 = sand.u32 %s758, 1
        %s3463 = smul.addr %s3462, 8
        %s3464 = scalar_lea.vmem [#allocation32], %s3463
        // Predicated region
        $region213: #{tpu_custom_call.1} parent=143 // pred_check
          %p3465 = pneg %p768
        $region214: #{tpu_custom_call.1} parent=143 // pred_check_branch
          %3467 = sbr.rel (%p3465) target = $region216
        $region215: #{tpu_custom_call.1} parent=143 // pred_region
          %s3469 = ssub.s32 128, 128
          %3470 = vsyncadd %s3461, %s3469
          %s3471 = smul.addr %s89, 128
          %s3472 = scalar_lea.hbm %s63, %s3471
          %s3474 = sshll.u32 %s3464, 4
          %s3475 = int_to_ptr.vmem [resolvable:$true] %s3474
          %3477 = dma.vmem_to_hbm [thread:$0]  %s3475, 128, %s3472, %s3461
        $region216: #{tpu_custom_call.1} parent=143 // pred_fallthru
          _
      $region144: #{tpu_custom_call.1} parent=5 // pred_fallthru
        _
      %p3478 = scmp.le.s32.totalorder 2, %s84
      // Predicated region
      $region217: #{tpu_custom_call.1} parent=5 // pred_check
        %p3479 = pneg %p3478
      $region218: #{tpu_custom_call.1} parent=5 // pred_check_branch
        %3481 = sbr.rel (%p3479) target = $region220
      $region219: #{tpu_custom_call.1} parent=5 // pred_region
        %s3482 = ssub.s32 %s84, 2
        // Predicated region
        $region221: #{tpu_custom_call.1} parent=219 // pred_check
          %p3483 = pneg %p774
        $region222: #{tpu_custom_call.1} parent=219 // pred_check_branch
          %3485 = sbr.rel (%p3483) target = $region224
        $region223: #{tpu_custom_call.1} parent=219 // pred_region
          %s3486 = sand.u32 %s759, 1
          %s3487 = scalar_lea.sflag [#allocation6], %s3486
          %s3488 = sand.u32 %s759, 1
          %s3489 = smul.addr %s3488, 8
          %s3490 = scalar_lea.vmem [#allocation32], %s3489
          %3491 = dma.done %s3487, 128
        $region224: #{tpu_custom_call.1} parent=219 // pred_fallthru
          _
      $region220: #{tpu_custom_call.1} parent=5 // pred_fallthru
        _
    $region6: #{tpu_custom_call.1} parent=1 // loop_footer
      %s88 = sadd.s32 1, %s84
    $region7: #{tpu_custom_call.1} parent=1 // loop_footer_branch
      %83 = sbr.rel target = $region3
    $region8: #{tpu_custom_call.1} parent=1 // loop_exit
      _
    %3492 = vsyncpa [#allocation5], 1
    %s3493 = scalar_lea.sflag [#allocation5], 1
    %3494 = vsyncpa %s3493, 1
    %3495 = vsyncpa [#allocation9], 1
    %3496 = vsyncpa [#allocation12], 1
    %3497 = vsyncpa [#allocation15], 1
    %3498 = vsyncpa [#allocation21], 1
    %3499 = vsyncpa [#allocation27], 1
    %3500 = vsyncpa [#allocation30], 1
    %3501 = vsyncpa [#allocation6], 1
    %s3502 = scalar_lea.sflag [#allocation6], 1
    %3503 = vsyncpa %s3502, 1
    %3504 = vsyncpa [#allocation7], 1
    %s3505 = scalar_lea.sflag [#allocation7], 1
    %3506 = vsyncpa %s3505, 1
    %3507 = vsyncpa [#allocation18], 1
    %3508 = vsyncpa [#allocation24], 1

</llo_original>
